<compile_context>
chip_gen: v7x
topology: tpu7x:2x2x1
jax: 0.10.0
libtpu: 0.0.40
codegen_flags: <defaults>
</compile_context>

<pallas_src>
import math
from functools import partial

import numpy as np

import jax
import jax.numpy as jnp
from jax.experimental import pallas as pl
from jax.experimental.pallas import tpu as pltpu


# Rotation lookup tables used by ORN's ORConv2d.get_indices() (deterministic).
_KERNEL_INDICES = {
    1: {0: (1,)},
    3: {0:   (1, 2, 3, 4, 5, 6, 7, 8, 9),
        45:  (2, 3, 6, 1, 5, 9, 4, 7, 8),
        90:  (3, 6, 9, 2, 5, 8, 1, 4, 7),
        135: (6, 9, 8, 3, 5, 7, 2, 1, 4),
        180: (9, 8, 7, 6, 5, 4, 3, 2, 1),
        225: (8, 7, 4, 9, 5, 1, 6, 3, 2),
        270: (7, 4, 1, 8, 5, 2, 9, 6, 3),
        315: (4, 1, 2, 7, 5, 3, 8, 9, 6)},
}


def get_arf_indices(n_orientation, n_rotation, kernel_size):
    """Replicates ORN's get_indices(): (nOrientation, kH, kW, nRotation), 1-based int32."""
    kH, kW = kernel_size
    delta_orientation = 360 / n_orientation
    delta_rotation = 360 / n_rotation
    idx = [[[0] * n_rotation for _ in range(kH * kW)] for _ in range(n_orientation)]
    for i in range(n_orientation):
        for j in range(kH * kW):
            for k in range(n_rotation):
                angle = int(delta_rotation * k)
                layer = (i + math.floor(angle / delta_orientation)) % n_orientation
                kernel = _KERNEL_INDICES[kW][angle][j]
                idx[i][j][k] = int(layer * kH * kW + kernel)
    arr = jnp.asarray(idx, dtype=jnp.int32)          # (nOrientation, kH*kW, nRotation)
    return arr.reshape(n_orientation, kH, kW, n_rotation)


def _round_up(x, m):
    return ((x + m - 1) // m) * m


# ----------------------------- kernels ------------------------------------


def _arf_direct_kernel(w_ref, p_ref, o_ref, *, t_o, n_in, n_rot, precision):
    """Direct final-layout kernel (requires n_in % 8 == 0).

    w_ref: (t_o*n_in, E)       weight rows for this block of output planes
    p_ref: (n_rot, E, E)       one-hot permutation matrices (constant)
    o_ref: (t_o, n_rot, n_in, E)  final PyTorch layout for this block
    """
    e = w_ref.shape[-1]
    w = w_ref[...]
    for r in range(n_rot):                      # nRot is small (typ. 8): unroll
        res = jnp.dot(w, p_ref[r],
                      preferred_element_type=jnp.float32,
                      precision=precision)
        # n_in % 8 == 0 -> this split reshape is layout-preserving (whole slabs),
        # and the store is a full (n_in, E)-slab copy per (t, r): no masked row stores.
        o_ref[:, r, :, :] = res.reshape(t_o, n_in, e).astype(o_ref.dtype)


def _arf_fused_kernel(w_ref, p_ref, o_ref, *, precision):
    """Fallback: one fused matmul; output in (rows, nRot*E) order (XLA transpose after).

    w_ref: (tm, E);  p_ref: (E, nRot*E);  o_ref: (tm, nRot*E)
    """
    o_ref[...] = jnp.dot(w_ref[...], p_ref[...],
                         preferred_element_type=jnp.float32,
                         precision=precision).astype(o_ref.dtype)


# ----------------------------- wrapper ------------------------------------


def _build_perm_matrices(indices, n_ori, kh, kw, n_rot, dtype):
    """(nRot, E, E) one-hot matrices: P[r, l, m] = [indices_flat[l, r] - 1 == m]."""
    E = n_ori * kh * kw
    try:
        idx_np = np.asarray(indices).reshape(E, n_rot).astype(np.int64)
    except Exception:
        idx_np = None          # traced indices: build on device, validation skipped
    if idx_np is not None:
        if idx_np.min() < 1 or idx_np.max() > E:
            raise ValueError(f"arf indices must lie in [1, {E}]")
        for r in range(n_rot):
            if len(np.unique(idx_np[:, r])) != E:
                raise ValueError(
                    f"indices[..., {r}] is not a permutation of 1..{E}; "
                    "arf_forward scatter semantics require a permutation.")
        p_np = np.zeros((n_rot, E, E), dtype=np.float32)
        r_ix = np.repeat(np.arange(n_rot), E)
        l_ix = np.tile(np.arange(E), n_rot)
        m_ix = (idx_np - 1).T.reshape(-1)
        p_np[r_ix, l_ix, m_ix] = 1.0
        return jnp.asarray(p_np, dtype=dtype)
    idx0 = jnp.transpose(indices.reshape(E, n_rot).astype(jnp.int32) - 1, (1, 0))
    return jax.nn.one_hot(idx0, E, dtype=dtype)       # (nRot, E, E)


def active_rotating_filter(weight, indices):
    """Pallas implementation of orn_cuda.arf_forward (forward only)."""
    nOut, nIn, nOri, kH, kW = weight.shape
    nOri_i, kH_i, kW_i, nRot = indices.shape
    assert (nOri_i, kH_i, kW_i) == (nOri, kH, kW)
    E = nOri * kH * kW
    M = nOut * nIn

    # bf16 weights stay on the bf16-native MXU path; everything else computes in f32.
    compute_dtype = jnp.bfloat16 if weight.dtype == jnp.bfloat16 else jnp.float32
    # f32: pin HIGHEST so the one-hot matmul is a bit-exact copy regardless of any
    # ambient matmul-precision setting.  bf16: a single native pass is already exact.
    precision = None if compute_dtype == jnp.bfloat16 else jax.lax.Precision.HIGHEST

    p_all = _build_perm_matrices(indices, nOri, kH, kW, nRot, compute_dtype)  # (nRot,E,E)
    w2d = weight.reshape(M, E).astype(compute_dtype)                          # (M, E)

    # Weight rows per grid step.  1024 rows keeps per-step double-buffered VMEM at
    # roughly <= 10 MiB (f32, worst case), under v5e's 16 MiB default scoped limit.
    ROWS_CAP = 1024

    if nIn % 8 == 0 and nIn <= ROWS_CAP:
        # -------- direct final-layout path (no post-kernel transpose) --------
        t_o = max(1, min(ROWS_CAP // nIn, nOut))
        if nOut >= 2:
            # Keep >= 2 grid steps so both v7x TensorCores get work (harmless on v5e/v6e).
            t_o = max(1, min(t_o, -(-nOut // 2)))
        kernel = partial(_arf_direct_kernel, t_o=t_o, n_in=nIn, n_rot=nRot,
                         precision=precision)
        out = pl.pallas_call(
            kernel,
            out_shape=jax.ShapeDtypeStruct((nOut, nRot, nIn, E), weight.dtype),
            grid=(pl.cdiv(nOut, t_o),),
            in_specs=[
                pl.BlockSpec((t_o * nIn, E), lambda o: (o, 0)),    # weight rows
                pl.BlockSpec((nRot, E, E), lambda o: (0, 0, 0)),   # P (constant)
            ],
            out_specs=pl.BlockSpec((t_o, nRot, nIn, E), lambda o: (o, 0, 0, 0)),
            compiler_params=pltpu.CompilerParams(
                dimension_semantics=("parallel",)),
        )(w2d, p_all)
        # (nOut, nRot, nIn, E) -> final shape is a contiguous (free) reshape.
        return out.reshape(nOut * nRot, nIn * nOri, kH, kW)

    # -------- fallback path (nIn not a multiple of 8) --------
    # The direct-layout stores would need per-row sublane relayouts in-kernel, so keep
    # the fused single-matmul kernel + one XLA transpose (the previously verified path).
    p2d = jnp.transpose(p_all, (1, 0, 2)).reshape(E, nRot * E)     # (E, nRot*E)
    tm = M if M <= ROWS_CAP else ROWS_CAP
    if M >= 16:
        # Keep >= 2 grid steps for v7x; tm stays a multiple of 8 (tiled sublane dim).
        tm = min(tm, _round_up(-(-M // 2), 8))
    out = pl.pallas_call(
        partial(_arf_fused_kernel, precision=precision),
        out_shape=jax.ShapeDtypeStruct((M, nRot * E), weight.dtype),
        grid=(pl.cdiv(M, tm),),
        in_specs=[
            pl.BlockSpec((tm, E), lambda m: (m, 0)),               # weight tile
            pl.BlockSpec((E, nRot * E), lambda m: (0, 0)),         # concatenated P
        ],
        out_specs=pl.BlockSpec((tm, nRot * E), lambda m: (m, 0)),
        compiler_params=pltpu.CompilerParams(
            dimension_semantics=("parallel",)),
    )(w2d, p2d)
    # (M, nRot*E) -> (nOut, nIn, nRot, E) -> (nOut, nRot, nIn, E) -> final.
    out = out.reshape(nOut, nIn, nRot, E)
    out = jnp.transpose(out, (0, 2, 1, 3))
    return out.reshape(nOut * nRot, nIn * nOri, kH, kW)


class ActiveRotatingFilter:
    """Mirror of the PyTorch nn.Module (forward only)."""

    def __init__(self, indices):
        self.indices = indices

    def __call__(self, inp):
        return active_rotating_filter(inp, self.indices)


def _reference(weight, indices):
    """Pure-JAX reference of the arf_forward scatter semantics (f32 gather)."""
    nOut, nIn, nOri, kH, kW = weight.shape
    nRot = indices.shape[-1]
    E = nOri * kH * kW
    w2d = weight.astype(jnp.float32).reshape(nOut, nIn, E)
    idx0 = indices.reshape(E, nRot).astype(jnp.int32) - 1
    onehot = jax.nn.one_hot(idx0.T, E, dtype=jnp.float32)         # (nRot, E, E)
    ref = jnp.einsum('oie,rem->orim', w2d, onehot)
    return ref.reshape(nOut * nRot, nIn * nOri, kH, kW)


# TODO(synk): backward pass (orn_cuda.arf_backward) not implemented; forward only.

if __name__ == "__main__":
    nOrientation, nRotation = 8, 8
    kH = kW = 3
    indices = get_arf_indices(nOrientation, nRotation, (kH, kW))
    arf = ActiveRotatingFilter(indices)

    key = jax.random.PRNGKey(0)
    k1, k2 = jax.random.split(key)

    # Case 1: nInputPlane % 8 == 0 -> direct final-layout kernel (no XLA transpose).
    nOutputPlane, nInputPlane = 4, 8
    w1 = jax.random.normal(
        k1, (nOutputPlane, nInputPlane, nOrientation, kH, kW), dtype=jnp.float32)
    out1 = jax.block_until_ready(arf(w1))
    ref1 = _reference(w1, indices)
    assert out1.shape == (nOutputPlane * nRotation, nInputPlane * nOrientation, kH, kW)
    assert out1.dtype == w1.dtype
    assert jnp.array_equal(out1, ref1)

    # bfloat16 weights on the same path: bf16 MXU matmul with f32 acc is an exact copy.
    w1_bf16 = w1.astype(jnp.bfloat16)
    out1_bf16 = jax.block_until_ready(arf(w1_bf16))
    ref1_bf16 = _reference(w1_bf16, indices).astype(jnp.bfloat16)
    assert out1_bf16.dtype == jnp.bfloat16
    assert jnp.array_equal(out1_bf16, ref1_bf16)

    # Case 2: nInputPlane % 8 != 0 -> fused-matmul fallback path (with XLA transpose).
    nOutputPlane2, nInputPlane2 = 4, 2
    w2 = jax.random.normal(
        k2, (nOutputPlane2, nInputPlane2, nOrientation, kH, kW), dtype=jnp.float32)
    out2 = jax.block_until_ready(arf(w2))
    ref2 = _reference(w2, indices)
    assert out2.shape == (nOutputPlane2 * nRotation, nInputPlane2 * nOrientation, kH, kW)
    assert jnp.array_equal(out2, ref2)

    print("KERNEL_OK")
</pallas_src>

<mosaic_0001>
module attributes {stable_mosaic.version = 11 : i64} {
  func.func @_arf_direct_kernel(%arg0: i32, %arg1: memref<16x72xf32, #tpu.memory_space<vmem>>, %arg2: memref<8x72x72xf32, #tpu.memory_space<vmem>>, %arg3: memref<2x8x8x72xf32, #tpu.memory_space<vmem>>) attributes {dimension_semantics = [#tpu.dimension_semantics<parallel>], iteration_bounds = array<i64: 2>, scalar_prefetch = 0 : i64, scratch_operands = 0 : i64, tpu.core_type = #tpu.core_type<tc>, window_params = [{transform_indices = @transform_0, window_bounds = array<i64: 16, 72>}, {pipeline_mode = #tpu.pipeline_mode<synchronous>, transform_indices = @transform_1, window_bounds = array<i64: 8, 72, 72>}, {transform_indices = @transform_2, window_bounds = array<i64: 2, 8, 8, 72>}]} {
    %c0 = arith.constant 0 : index
    %c0_0 = arith.constant 0 : index
    %0 = vector.load %arg1[%c0, %c0_0] : memref<16x72xf32, #tpu.memory_space<vmem>>, vector<16x72xf32>
    %c0_1 = arith.constant 0 : index
    %c0_2 = arith.constant 0 : index
    %c0_3 = arith.constant 0 : index
    %1 = vector.load %arg2[%c0_1, %c0_2, %c0_3] : memref<8x72x72xf32, #tpu.memory_space<vmem>>, vector<1x72x72xf32>
    %2 = vector.shape_cast %1 : vector<1x72x72xf32> to vector<72x72xf32>
    %cst = arith.constant dense<0.000000e+00> : vector<16x72xf32>
    %3 = tpu.matmul %0, %2, %cst {dimension_numbers = #tpu.dot_dimension_numbers<[1], [0], [0], [1], [0, 0, 1, 1], [], []>, precision = #tpu.contract_precision<fp32>} : vector<16x72xf32>, vector<72x72xf32>, vector<16x72xf32> -> vector<16x72xf32>
    %4 = vector.shape_cast %3 : vector<16x72xf32> to vector<2x8x72xf32>
    %c0_4 = arith.constant 0 : index
    %c0_5 = arith.constant 0 : index
    %c0_6 = arith.constant 0 : index
    %c0_7 = arith.constant 0 : index
    %5 = vector.load %arg3[%c0_4, %c0_5, %c0_6, %c0_7] : memref<2x8x8x72xf32, #tpu.memory_space<vmem>>, vector<2x1x8x72xf32>
    %6 = vector.shape_cast %5 : vector<2x1x8x72xf32> to vector<2x8x72xf32>
    %7 = vector.shape_cast %4 : vector<2x8x72xf32> to vector<2x1x8x72xf32>
    tpu.vector_store %arg3[%c0_4, %c0_5, %c0_6, %c0_7], %7 {strides = array<i32>} : memref<2x8x8x72xf32, #tpu.memory_space<vmem>>, vector<2x1x8x72xf32>,
    %c1 = arith.constant 1 : index
    %c0_8 = arith.constant 0 : index
    %c0_9 = arith.constant 0 : index
    %8 = vector.load %arg2[%c1, %c0_8, %c0_9] : memref<8x72x72xf32, #tpu.memory_space<vmem>>, vector<1x72x72xf32>
    %9 = vector.shape_cast %8 : vector<1x72x72xf32> to vector<72x72xf32>
    %cst_10 = arith.constant dense<0.000000e+00> : vector<16x72xf32>
    %10 = tpu.matmul %0, %9, %cst_10 {dimension_numbers = #tpu.dot_dimension_numbers<[1], [0], [0], [1], [0, 0, 1, 1], [], []>, precision = #tpu.contract_precision<fp32>} : vector<16x72xf32>, vector<72x72xf32>, vector<16x72xf32> -> vector<16x72xf32>
    %11 = vector.shape_cast %10 : vector<16x72xf32> to vector<2x8x72xf32>
    %c0_11 = arith.constant 0 : index
    %c1_12 = arith.constant 1 : index
    %c0_13 = arith.constant 0 : index
    %c0_14 = arith.constant 0 : index
    %12 = vector.load %arg3[%c0_11, %c1_12, %c0_13, %c0_14] : memref<2x8x8x72xf32, #tpu.memory_space<vmem>>, vector<2x1x8x72xf32>
    %13 = vector.shape_cast %12 : vector<2x1x8x72xf32> to vector<2x8x72xf32>
    %14 = vector.shape_cast %11 : vector<2x8x72xf32> to vector<2x1x8x72xf32>
    tpu.vector_store %arg3[%c0_11, %c1_12, %c0_13, %c0_14], %14 {strides = array<i32>} : memref<2x8x8x72xf32, #tpu.memory_space<vmem>>, vector<2x1x8x72xf32>,
    %c2 = arith.constant 2 : index
    %c0_15 = arith.constant 0 : index
    %c0_16 = arith.constant 0 : index
    %15 = vector.load %arg2[%c2, %c0_15, %c0_16] : memref<8x72x72xf32, #tpu.memory_space<vmem>>, vector<1x72x72xf32>
    %16 = vector.shape_cast %15 : vector<1x72x72xf32> to vector<72x72xf32>
    %cst_17 = arith.constant dense<0.000000e+00> : vector<16x72xf32>
    %17 = tpu.matmul %0, %16, %cst_17 {dimension_numbers = #tpu.dot_dimension_numbers<[1], [0], [0], [1], [0, 0, 1, 1], [], []>, precision = #tpu.contract_precision<fp32>} : vector<16x72xf32>, vector<72x72xf32>, vector<16x72xf32> -> vector<16x72xf32>
    %18 = vector.shape_cast %17 : vector<16x72xf32> to vector<2x8x72xf32>
    %c0_18 = arith.constant 0 : index
    %c2_19 = arith.constant 2 : index
    %c0_20 = arith.constant 0 : index
    %c0_21 = arith.constant 0 : index
    %19 = vector.load %arg3[%c0_18, %c2_19, %c0_20, %c0_21] : memref<2x8x8x72xf32, #tpu.memory_space<vmem>>, vector<2x1x8x72xf32>
    %20 = vector.shape_cast %19 : vector<2x1x8x72xf32> to vector<2x8x72xf32>
    %21 = vector.shape_cast %18 : vector<2x8x72xf32> to vector<2x1x8x72xf32>
    tpu.vector_store %arg3[%c0_18, %c2_19, %c0_20, %c0_21], %21 {strides = array<i32>} : memref<2x8x8x72xf32, #tpu.memory_space<vmem>>, vector<2x1x8x72xf32>,
    %c3 = arith.constant 3 : index
    %c0_22 = arith.constant 0 : index
    %c0_23 = arith.constant 0 : index
    %22 = vector.load %arg2[%c3, %c0_22, %c0_23] : memref<8x72x72xf32, #tpu.memory_space<vmem>>, vector<1x72x72xf32>
    %23 = vector.shape_cast %22 : vector<1x72x72xf32> to vector<72x72xf32>
    %cst_24 = arith.constant dense<0.000000e+00> : vector<16x72xf32>
    %24 = tpu.matmul %0, %23, %cst_24 {dimension_numbers = #tpu.dot_dimension_numbers<[1], [0], [0], [1], [0, 0, 1, 1], [], []>, precision = #tpu.contract_precision<fp32>} : vector<16x72xf32>, vector<72x72xf32>, vector<16x72xf32> -> vector<16x72xf32>
    %25 = vector.shape_cast %24 : vector<16x72xf32> to vector<2x8x72xf32>
    %c0_25 = arith.constant 0 : index
    %c3_26 = arith.constant 3 : index
    %c0_27 = arith.constant 0 : index
    %c0_28 = arith.constant 0 : index
    %26 = vector.load %arg3[%c0_25, %c3_26, %c0_27, %c0_28] : memref<2x8x8x72xf32, #tpu.memory_space<vmem>>, vector<2x1x8x72xf32>
    %27 = vector.shape_cast %26 : vector<2x1x8x72xf32> to vector<2x8x72xf32>
    %28 = vector.shape_cast %25 : vector<2x8x72xf32> to vector<2x1x8x72xf32>
    tpu.vector_store %arg3[%c0_25, %c3_26, %c0_27, %c0_28], %28 {strides = array<i32>} : memref<2x8x8x72xf32, #tpu.memory_space<vmem>>, vector<2x1x8x72xf32>,
    %c4 = arith.constant 4 : index
    %c0_29 = arith.constant 0 : index
    %c0_30 = arith.constant 0 : index
    %29 = vector.load %arg2[%c4, %c0_29, %c0_30] : memref<8x72x72xf32, #tpu.memory_space<vmem>>, vector<1x72x72xf32>
    %30 = vector.shape_cast %29 : vector<1x72x72xf32> to vector<72x72xf32>
    %cst_31 = arith.constant dense<0.000000e+00> : vector<16x72xf32>
    %31 = tpu.matmul %0, %30, %cst_31 {dimension_numbers = #tpu.dot_dimension_numbers<[1], [0], [0], [1], [0, 0, 1, 1], [], []>, precision = #tpu.contract_precision<fp32>} : vector<16x72xf32>, vector<72x72xf32>, vector<16x72xf32> -> vector<16x72xf32>
    %32 = vector.shape_cast %31 : vector<16x72xf32> to vector<2x8x72xf32>
    %c0_32 = arith.constant 0 : index
    %c4_33 = arith.constant 4 : index
    %c0_34 = arith.constant 0 : index
    %c0_35 = arith.constant 0 : index
    %33 = vector.load %arg3[%c0_32, %c4_33, %c0_34, %c0_35] : memref<2x8x8x72xf32, #tpu.memory_space<vmem>>, vector<2x1x8x72xf32>
    %34 = vector.shape_cast %33 : vector<2x1x8x72xf32> to vector<2x8x72xf32>
    %35 = vector.shape_cast %32 : vector<2x8x72xf32> to vector<2x1x8x72xf32>
    tpu.vector_store %arg3[%c0_32, %c4_33, %c0_34, %c0_35], %35 {strides = array<i32>} : memref<2x8x8x72xf32, #tpu.memory_space<vmem>>, vector<2x1x8x72xf32>,
    %c5 = arith.constant 5 : index
    %c0_36 = arith.constant 0 : index
    %c0_37 = arith.constant 0 : index
    %36 = vector.load %arg2[%c5, %c0_36, %c0_37] : memref<8x72x72xf32, #tpu.memory_space<vmem>>, vector<1x72x72xf32>
    %37 = vector.shape_cast %36 : vector<1x72x72xf32> to vector<72x72xf32>
    %cst_38 = arith.constant dense<0.000000e+00> : vector<16x72xf32>
    %38 = tpu.matmul %0, %37, %cst_38 {dimension_numbers = #tpu.dot_dimension_numbers<[1], [0], [0], [1], [0, 0, 1, 1], [], []>, precision = #tpu.contract_precision<fp32>} : vector<16x72xf32>, vector<72x72xf32>, vector<16x72xf32> -> vector<16x72xf32>
    %39 = vector.shape_cast %38 : vector<16x72xf32> to vector<2x8x72xf32>
    %c0_39 = arith.constant 0 : index
    %c5_40 = arith.constant 5 : index
    %c0_41 = arith.constant 0 : index
    %c0_42 = arith.constant 0 : index
    %40 = vector.load %arg3[%c0_39, %c5_40, %c0_41, %c0_42] : memref<2x8x8x72xf32, #tpu.memory_space<vmem>>, vector<2x1x8x72xf32>
    %41 = vector.shape_cast %40 : vector<2x1x8x72xf32> to vector<2x8x72xf32>
    %42 = vector.shape_cast %39 : vector<2x8x72xf32> to vector<2x1x8x72xf32>
    tpu.vector_store %arg3[%c0_39, %c5_40, %c0_41, %c0_42], %42 {strides = array<i32>} : memref<2x8x8x72xf32, #tpu.memory_space<vmem>>, vector<2x1x8x72xf32>,
    %c6 = arith.constant 6 : index
    %c0_43 = arith.constant 0 : index
    %c0_44 = arith.constant 0 : index
    %43 = vector.load %arg2[%c6, %c0_43, %c0_44] : memref<8x72x72xf32, #tpu.memory_space<vmem>>, vector<1x72x72xf32>
    %44 = vector.shape_cast %43 : vector<1x72x72xf32> to vector<72x72xf32>
    %cst_45 = arith.constant dense<0.000000e+00> : vector<16x72xf32>
    %45 = tpu.matmul %0, %44, %cst_45 {dimension_numbers = #tpu.dot_dimension_numbers<[1], [0], [0], [1], [0, 0, 1, 1], [], []>, precision = #tpu.contract_precision<fp32>} : vector<16x72xf32>, vector<72x72xf32>, vector<16x72xf32> -> vector<16x72xf32>
    %46 = vector.shape_cast %45 : vector<16x72xf32> to vector<2x8x72xf32>
    %c0_46 = arith.constant 0 : index
    %c6_47 = arith.constant 6 : index
    %c0_48 = arith.constant 0 : index
    %c0_49 = arith.constant 0 : index
    %47 = vector.load %arg3[%c0_46, %c6_47, %c0_48, %c0_49] : memref<2x8x8x72xf32, #tpu.memory_space<vmem>>, vector<2x1x8x72xf32>
    %48 = vector.shape_cast %47 : vector<2x1x8x72xf32> to vector<2x8x72xf32>
    %49 = vector.shape_cast %46 : vector<2x8x72xf32> to vector<2x1x8x72xf32>
    tpu.vector_store %arg3[%c0_46, %c6_47, %c0_48, %c0_49], %49 {strides = array<i32>} : memref<2x8x8x72xf32, #tpu.memory_space<vmem>>, vector<2x1x8x72xf32>,
    %c7 = arith.constant 7 : index
    %c0_50 = arith.constant 0 : index
    %c0_51 = arith.constant 0 : index
    %50 = vector.load %arg2[%c7, %c0_50, %c0_51] : memref<8x72x72xf32, #tpu.memory_space<vmem>>, vector<1x72x72xf32>
    %51 = vector.shape_cast %50 : vector<1x72x72xf32> to vector<72x72xf32>
    %cst_52 = arith.constant dense<0.000000e+00> : vector<16x72xf32>
    %52 = tpu.matmul %0, %51, %cst_52 {dimension_numbers = #tpu.dot_dimension_numbers<[1], [0], [0], [1], [0, 0, 1, 1], [], []>, precision = #tpu.contract_precision<fp32>} : vector<16x72xf32>, vector<72x72xf32>, vector<16x72xf32> -> vector<16x72xf32>
    %53 = vector.shape_cast %52 : vector<16x72xf32> to vector<2x8x72xf32>
    %c0_53 = arith.constant 0 : index
    %c7_54 = arith.constant 7 : index
    %c0_55 = arith.constant 0 : index
    %c0_56 = arith.constant 0 : index
    %54 = vector.load %arg3[%c0_53, %c7_54, %c0_55, %c0_56] : memref<2x8x8x72xf32, #tpu.memory_space<vmem>>, vector<2x1x8x72xf32>
    %55 = vector.shape_cast %54 : vector<2x1x8x72xf32> to vector<2x8x72xf32>
    %56 = vector.shape_cast %53 : vector<2x8x72xf32> to vector<2x1x8x72xf32>
    tpu.vector_store %arg3[%c0_53, %c7_54, %c0_55, %c0_56], %56 {strides = array<i32>} : memref<2x8x8x72xf32, #tpu.memory_space<vmem>>, vector<2x1x8x72xf32>,
    return
  }
  func.func @transform_0(%arg0: i32) -> (i32, i32) {
    %c0_i32 = arith.constant 0 : i32
    %c0_i32_0 = arith.constant 0 : i32
    return %arg0, %c0_i32 : i32, i32
  }
  func.func @transform_1(%arg0: i32) -> (i32, i32, i32) {
    %c0_i32 = arith.constant 0 : i32
    %c0_i32_0 = arith.constant 0 : i32
    %c0_i32_1 = arith.constant 0 : i32
    %c0_i32_2 = arith.constant 0 : i32
    return %c0_i32, %c0_i32_0, %c0_i32_1 : i32, i32, i32
  }
  func.func @transform_2(%arg0: i32) -> (i32, i32, i32, i32) {
    %c0_i32 = arith.constant 0 : i32
    %c0_i32_0 = arith.constant 0 : i32
    %c0_i32_1 = arith.constant 0 : i32
    %c0_i32_2 = arith.constant 0 : i32
    return %arg0, %c0_i32, %c0_i32_0, %c0_i32_1 : i32, i32, i32, i32
  }
}

</mosaic_0001>

<llo_original>
// kernel: tpu_custom_call.1
$region0: #{tpu_custom_call.1}
  #allocation0 [shape = 'u32[]', space=smem, size = 0x4, offset = 0x4, fixed_abs, tag = 'smem constant byte address 0x4 - core index']
  #allocation1 [shape = 'u32[144,128]{1,0:T(1,128)}', space=vmem, size = 0x12000, scoped, tag = 'internal scratch']
  %s0 = inlined_call_operand.hbm [shape: f32[32,72], index: 0, kind: input, shape index: {}]
  %s1 = inlined_call_operand.hbm [shape: f32[8,72,72], index: 1, kind: input, shape index: {}]
  %s2 = inlined_call_operand.hbm [shape: f32[4,8,8,72], index: 2, kind: output, shape index: {}]
  %s3 = sld [smem:[#allocation0]]
  $region49: #{tpu_custom_call.1} parent=0
    _
  %s5 = ssub.s32 1, %s3
  %s6 = scalar_select 0, %s5, %s3
  $region1: #{tpu_custom_call.1} parent=0
    #allocation2 [shape = 'u8[16384]{0}', space=vmem, size = 0x4000, scoped, tag = 'input window, operand 0']
    #allocation3 [shape = 's32[2]{0}', space=sflag, size = 0x8, scoped, tag = 'scoped memory for tpu_custom_call.1']
    #allocation4 [shape = 's32[2]{0}', space=sflag, size = 0x8, scoped, tag = 'scoped memory for tpu_custom_call.1']
    #allocation5 [shape = 'u8[294912]{0}', space=vmem, size = 0x48000, scoped, tag = 'input window, operand 1, single buffered']
    #allocation6 [shape = 's32[1]{0}', space=sflag, size = 0x4, scoped, tag = 'scoped memory for tpu_custom_call.1']
    #allocation7 [shape = 'u8[131072]{0}', space=vmem, size = 0x20000, scoped, tag = 'output window, operand 0']
    %7 = vsyncpa [#allocation3], 0
    %s8 = scalar_lea.sflag [#allocation3], 1
    %9 = vsyncpa %s8, 0
    %10 = vsyncpa [#allocation6], 0
    %11 = vsyncpa [#allocation4], 0
    %s12 = scalar_lea.sflag [#allocation4], 1
    %13 = vsyncpa %s12, 0
    loop: start=0, step=1, limit=4
    $region2: #{tpu_custom_call.1} parent=1 // loop_pre_header
      _
    $region3: #{tpu_custom_call.1} parent=1 // loop_header
      %s15 = sphi 0, %s19
      %p16 = scmp.ge.s32.totalorder %s15, 4
      %s25 = sphi 0, %s27
      %s28 = sphi 0, %s25
      %s29 = sphi 0, %s28
      %s45 = sphi 0, %s29
      %s49 = sphi 0, %s49
      %s51 = sphi 0, %s49
      %s52 = sphi 0, %s51
      %s66 = sphi 0, %s52
      %s72 = sphi 0, %s74
      %s75 = sphi 0, %s72
      %s76 = sphi 0, %s75
      %s92 = sphi 0, %s76
    $region4: #{tpu_custom_call.1} parent=1 // loop_header_branch
      %18 = sbr.rel (%p16) target = $region8
    $region5: #{tpu_custom_call.1} parent=1 // loop_body
      %s20 = ssub.s32 %s15, 1
      %s21 = ssub.s32 %s15, 2
      %s22 = sadd.s32 %s15, 1
      %s23 = ssub.s32 %s15, %s22
      %p24 = scmp.eq.s32.totalorder %s23, 0
      %s26 = sadd.s32 %s25, 1
      %s27 = scalar_select %p24, %s25, %s26
      %p30 = pneg %p24
      %p31 = scmp.eq.s32.totalorder %s15, 1
      %p32 = por %p30, %p31
      %p33 = scmp.ne.s32.totalorder %s25, %s28
      %p34 = scmp.eq.s32.totalorder %s15, 0
      %p35 = por %p33, %p34
      %p36 = scmp.ne.s32.totalorder %s25, %s28
      %p37 = scmp.eq.s32.totalorder %s20, 1
      %p38 = por %p36, %p37
      %p39 = scmp.ne.s32.totalorder %s28, %s29
      %p40 = scmp.eq.s32.totalorder %s20, 0
      %p41 = por %p39, %p40
      %p42 = scmp.ne.s32.totalorder %s28, %s29
      %p43 = scmp.eq.s32.totalorder %s21, 1
      %p44 = por %p42, %p43
      %p46 = scmp.ne.s32.totalorder %s29, %s45
      %p47 = scmp.eq.s32.totalorder %s21, 0
      %p48 = por %p46, %p47
      %s50 = sadd.s32 %s49, 1
      %p53 = scmp.eq.s32.totalorder %s15, 1
      %p54 = scmp.ne.s32.totalorder %s49, %s51
      %p55 = scmp.eq.s32.totalorder %s15, 0
      %p56 = por %p54, %p55
      %p57 = scmp.ne.s32.totalorder %s49, %s51
      %p58 = scmp.eq.s32.totalorder %s20, 1
      %p59 = por %p57, %p58
      %p60 = scmp.ne.s32.totalorder %s51, %s52
      %p61 = scmp.eq.s32.totalorder %s20, 0
      %p62 = por %p60, %p61
      %p63 = scmp.ne.s32.totalorder %s51, %s52
      %p64 = scmp.eq.s32.totalorder %s21, 1
      %p65 = por %p63, %p64
      %p67 = scmp.ne.s32.totalorder %s52, %s66
      %p68 = scmp.eq.s32.totalorder %s21, 0
      %p69 = por %p67, %p68
      %s70 = ssub.s32 %s15, %s22
      %p71 = scmp.eq.s32.totalorder %s70, 0
      %s73 = sadd.s32 %s72, 1
      %s74 = scalar_select %p71, %s72, %s73
      %p77 = pneg %p71
      %p78 = scmp.eq.s32.totalorder %s15, 1
      %p79 = por %p77, %p78
      %p80 = scmp.ne.s32.totalorder %s72, %s75
      %p81 = scmp.eq.s32.totalorder %s15, 0
      %p82 = por %p80, %p81
      %p83 = scmp.ne.s32.totalorder %s72, %s75
      %p84 = scmp.eq.s32.totalorder %s20, 1
      %p85 = por %p83, %p84
      %p86 = scmp.ne.s32.totalorder %s75, %s76
      %p87 = scmp.eq.s32.totalorder %s20, 0
      %p88 = por %p86, %p87
      %p89 = scmp.ne.s32.totalorder %s75, %s76
      %p90 = scmp.eq.s32.totalorder %s21, 1
      %p91 = por %p89, %p90
      %p93 = scmp.ne.s32.totalorder %s76, %s92
      %p94 = scmp.eq.s32.totalorder %s21, 0
      %p95 = por %p93, %p94
      %p96 = scmp.le.s32.totalorder 1, %s15
      %p97 = scmp.lt.s32.totalorder %s15, 3
      %p98 = pnand %p96, %p97
      %p99 = pneg %p98
      // Predicated region
      $region9: #{tpu_custom_call.1} parent=5 // pred_check
        _
      $region10: #{tpu_custom_call.1} parent=5 // pred_check_branch
        %101 = sbr.rel (%p98) target = $region12
      $region11: #{tpu_custom_call.1} parent=5 // pred_region
        %s102 = ssub.s32 %s15, 1
        // Predicated region
        $region13: #{tpu_custom_call.1} parent=11 // pred_check
          %p103 = pneg %p62
        $region14: #{tpu_custom_call.1} parent=11 // pred_check_branch
          %105 = sbr.rel (%p103) target = $region16
        $region15: #{tpu_custom_call.1} parent=11 // pred_region
          %s107 = ssub.s32 9216, 9216
          %108 = vsyncadd [#allocation6], %s107
          %s109 = sshll.u32 [#allocation5], 4
          %s110 = int_to_ptr.vmem [resolvable:$true] %s109
          %115 = dma.hbm_to_vmem [thread:$0]  %s1, 9216, %s110, [#allocation6], 128, 128, 8
        $region16: #{tpu_custom_call.1} parent=11 // pred_fallthru
          _
      $region12: #{tpu_custom_call.1} parent=5 // pred_fallthru
        _
      %p116 = scmp.lt.s32.totalorder %s15, 2
      // Predicated region
      $region17: #{tpu_custom_call.1} parent=5 // pred_check
        %p117 = pneg %p116
      $region18: #{tpu_custom_call.1} parent=5 // pred_check_branch
        %119 = sbr.rel (%p117) target = $region20
      $region19: #{tpu_custom_call.1} parent=5 // pred_region
        // Predicated region
        $region21: #{tpu_custom_call.1} parent=19 // pred_check
          %p120 = pneg %p35
        $region22: #{tpu_custom_call.1} parent=19 // pred_check_branch
          %122 = sbr.rel (%p120) target = $region24
        $region23: #{tpu_custom_call.1} parent=19 // pred_region
          %s123 = sand.u32 %s25, 1
          %s124 = scalar_lea.sflag [#allocation3], %s123
          %s125 = sand.u32 %s25, 1
          %s126 = smul.addr %s125, 16
          %s127 = scalar_lea.vmem [#allocation2], %s126
          %s128 = smul.u32 2, %s15
          %s130 = ssub.s32 256, 256
          %131 = vsyncadd %s124, %s130
          %s132 = smul.addr %s128, 128
          %s133 = scalar_lea.hbm %s0, %s132
          %s134 = sshll.u32 %s127, 4
          %s135 = int_to_ptr.vmem [resolvable:$true] %s134
          %140 = dma.hbm_to_vmem [thread:$0]  %s133, 256, %s135, %s124, 128, 128, 8
        $region24: #{tpu_custom_call.1} parent=19 // pred_fallthru
          _
      $region20: #{tpu_custom_call.1} parent=5 // pred_fallthru
        _
      %p141 = scmp.le.s32.totalorder 1, %s15
      %p142 = scmp.lt.s32.totalorder %s15, 3
      %p143 = pnand %p141, %p142
      %p144 = pneg %p143
      // Predicated region
      $region25: #{tpu_custom_call.1} parent=5 // pred_check
        _
      $region26: #{tpu_custom_call.1} parent=5 // pred_check_branch
        %146 = sbr.rel (%p143) target = $region28
      $region27: #{tpu_custom_call.1} parent=5 // pred_region
        %s147 = ssub.s32 %s15, 1
        %s148 = sand.u32 %s28, 1
        %s149 = scalar_lea.sflag [#allocation3], %s148
        %s150 = sand.u32 %s28, 1
        %s151 = smul.addr %s150, 16
        %s152 = scalar_lea.vmem [#allocation2], %s151
        // Predicated region
        $region29: #{tpu_custom_call.1} parent=27 // pred_check
          %p153 = pneg %p41
        $region30: #{tpu_custom_call.1} parent=27 // pred_check_branch
          %155 = sbr.rel (%p153) target = $region32
        $region31: #{tpu_custom_call.1} parent=27 // pred_region
          %156 = dma.done %s149, 256
        $region32: #{tpu_custom_call.1} parent=27 // pred_fallthru
          _
        // Predicated region
        $region33: #{tpu_custom_call.1} parent=27 // pred_check
          %p157 = pneg %p62
        $region34: #{tpu_custom_call.1} parent=27 // pred_check_branch
          %159 = sbr.rel (%p157) target = $region36
        $region35: #{tpu_custom_call.1} parent=27 // pred_region
          %160 = dma.done [#allocation6], 9216
        $region36: #{tpu_custom_call.1} parent=27 // pred_fallthru
          _
        %s161 = sand.u32 %s28, 1
        %s162 = scalar_lea.sflag [#allocation3], %s161
        %s163 = sand.u32 %s28, 1
        %s164 = smul.addr %s163, 16
        %s165 = scalar_lea.vmem [#allocation2], %s164
        %p166 = pneg %p41
        %p167 = pneg %p38
        %p168 = pneg %p62
        %p169 = pneg %p59
        %p170 = pneg %p88
        %p171 = pneg %p85
        %s172 = sand.u32 %s75, 1
        %s173 = scalar_lea.sflag [#allocation4], %s172
        %s174 = sand.u32 %s75, 1
        %s175 = smul.addr %s174, 128
        %s176 = scalar_lea.vmem [#allocation7], %s175
        %s177 = smul.u32 2, %s20
        %s178 = smul.u32 2, %s20
        %v179 = vld [vmem:[%s152] sm:$0xff]
        %v180 = vld [vmem:[%s152 + $0x8] sm:$0xff]
        %v181 = vld [vmem:[#allocation5] sm:$0xff]
        %v182 = vld [vmem:[#allocation5 + $0x8] sm:$0xff]
        %v183 = vld [vmem:[#allocation5 + $0x10] sm:$0xff]
        %v184 = vld [vmem:[#allocation5 + $0x18] sm:$0xff]
        %v185 = vld [vmem:[#allocation5 + $0x20] sm:$0xff]
        %v186 = vld [vmem:[#allocation5 + $0x28] sm:$0xff]
        %v187 = vld [vmem:[#allocation5 + $0x30] sm:$0xff]
        %v188 = vld [vmem:[#allocation5 + $0x38] sm:$0xff]
        %v189 = vld [vmem:[#allocation5 + $0x40] sm:$0xff]
        %vm190 = vcmask 588800
        %v192 = vsel %vm190, %v179, 0
        %v195 = vsel %vm190, %v180, 0
        %197 = vmatprep.subr.mxu0 0.0
        %v198 = vand.u32 %v181, 4294901760
        %199 = vmatpush1.msra.mxu0 %v198
        %200 = vmatprep.subr.mxu0 0.0
        %v201 = vand.u32 %v182, 4294901760
        %202 = vmatpush1.msra.mxu0 %v201
        %203 = vmatprep.subr.mxu0 0.0
        %v204 = vand.u32 %v183, 4294901760
        %205 = vmatpush1.msra.mxu0 %v204
        %206 = vmatprep.subr.mxu0 0.0
        %v207 = vand.u32 %v184, 4294901760
        %208 = vmatpush1.msra.mxu0 %v207
        %209 = vmatprep.subr.mxu0 0.0
        %v210 = vand.u32 %v185, 4294901760
        %211 = vmatpush1.msra.mxu0 %v210
        %212 = vmatprep.subr.mxu0 0.0
        %v213 = vand.u32 %v186, 4294901760
        %214 = vmatpush1.msra.mxu0 %v213
        %215 = vmatprep.subr.mxu0 0.0
        %v216 = vand.u32 %v187, 4294901760
        %217 = vmatpush1.msra.mxu0 %v216
        %218 = vmatprep.subr.mxu0 0.0
        %v219 = vand.u32 %v188, 4294901760
        %220 = vmatpush1.msra.mxu0 %v219
        %221 = vmatprep.subr.mxu0 0.0
        %v222 = vand.u32 %v189, 4294901760
        %223 = vmatpush1.msra.mxu0 %v222
        %224 = vmatprep.subr.mxu0 0.0
        %225 = vmatpush1.msra.mxu0 0.0
        %226 = vmatprep.subr.mxu0 0.0
        %227 = vmatpush1.msra.mxu0 0.0
        %228 = vmatprep.subr.mxu0 0.0
        %229 = vmatpush1.msra.mxu0 0.0
        %230 = vmatprep.subr.mxu0 0.0
        %231 = vmatpush1.msra.mxu0 0.0
        %232 = vmatprep.subr.mxu0 0.0
        %233 = vmatpush1.msra.mxu0 0.0
        %234 = vmatprep.subr.mxu0 0.0
        %235 = vmatpush1.msra.mxu0 0.0
        %236 = vmatprep.subr.mxu0 0.0
        %237 = vmatpush1.msra.mxu0 0.0
        %238 = vmatprep.subr.mxu0 0.0
        %239 = vmatpush1.msra.mxu0 0.0
        %240 = vmatprep.subr.mxu0 0.0
        %241 = vmatpush1.msra.mxu0 0.0
        %242 = vmatprep.subr.mxu0 0.0
        %243 = vmatpush1.msra.mxu0 0.0
        %244 = vmatprep.subr.mxu0 0.0
        %245 = vmatpush1.msra.mxu0 0.0
        %246 = vmatprep.subr.mxu0 0.0
        %247 = vmatpush1.msra.mxu0 0.0
        %248 = vmatprep.subr.mxu0 0.0
        %249 = vmatpush1.msra.mxu0 0.0
        %250 = vmatprep.subr.mxu0 0.0
        %251 = vmatpush1.msra.mxu0 0.0
        %252 = vmatprep.subr.mxu0 0.0
        %253 = vmatpush1.msra.mxu0 0.0
        %254 = vmatprep.subr.mxu0 0.0
        %255 = vmatpush1.msra.mxu0 0.0
        %256 = vmatprep.subr.mxu0 0.0
        %257 = vmatpush1.msra.mxu0 0.0
        %258 = vmatprep.subr.mxu0 0.0
        %259 = vmatpush1.msra.mxu0 0.0
        %260 = vmatprep.subr.mxu0 0.0
        %261 = vmatpush1.msra.mxu0 0.0
        %262 = vmatprep.subr.mxu0 0.0
        %263 = vmatpush1.msra.mxu0 0.0
        %264 = vmatprep.subr.mxu0 0.0
        %265 = vmatpush1.msra.mxu0 0.0
        %266 = vmatprep.subr.mxu0 0.0
        %267 = vmatpush1.msra.mxu0 0.0
        %268 = vmatprep.subr.mxu0 0.0
        %269 = vmatpush1.msra.mxu0 0.0
        %270 = vmatprep.mubr.f32.mxu0 0.0
        %v271 = vand.u32 %v192, 4294901760
        %v272 = vsub.f32 %v192, %v271
        %v273 = vand.u32 %v272, 4294901760
        %v274 = vsub.f32 %v272, %v273
        %v275 = vand.u32 %v274, 4294901760
        %276 = vmatmul.mubr.f32.gmra.mrb[0].mxu0 %v275
        %v277 = vpop.f32.mrb[0].mxu0
        %v278 = vadd.f32 0.0, %v277
        %v279 = vpop.f32.mrb[0].mxu0
        %280 = vmatprep.mubr.f32.mxu0 0.0
        %v281 = vand.u32 %v195, 4294901760
        %v282 = vsub.f32 %v195, %v281
        %v283 = vand.u32 %v282, 4294901760
        %v284 = vsub.f32 %v282, %v283
        %v285 = vand.u32 %v284, 4294901760
        %286 = vmatmul.mubr.f32.gmra.mrb[0].mxu0 %v285
        %v287 = vpop.f32.mrb[0].mxu0
        %v288 = vadd.f32 0.0, %v287
        %v289 = vpop.f32.mrb[0].mxu0
        %290 = vdwg.mxu0
        %291 = vmatprep.subr.mxu0 0.0
        %v292 = vand.u32 %v181, 4294901760
        %v293 = vsub.f32 %v181, %v292
        %v294 = vand.u32 %v293, 4294901760
        %v295 = vsub.f32 %v293, %v294
        %v296 = vand.u32 %v295, 4294901760
        %297 = vmatpush1.msra.mxu0 %v296
        %298 = vmatprep.subr.mxu0 0.0
        %v299 = vand.u32 %v182, 4294901760
        %v300 = vsub.f32 %v182, %v299
        %v301 = vand.u32 %v300, 4294901760
        %v302 = vsub.f32 %v300, %v301
        %v303 = vand.u32 %v302, 4294901760
        %304 = vmatpush1.msra.mxu0 %v303
        %305 = vmatprep.subr.mxu0 0.0
        %v306 = vand.u32 %v183, 4294901760
        %v307 = vsub.f32 %v183, %v306
        %v308 = vand.u32 %v307, 4294901760
        %v309 = vsub.f32 %v307, %v308
        %v310 = vand.u32 %v309, 4294901760
        %311 = vmatpush1.msra.mxu0 %v310
        %312 = vmatprep.subr.mxu0 0.0
        %v313 = vand.u32 %v184, 4294901760
        %v314 = vsub.f32 %v184, %v313
        %v315 = vand.u32 %v314, 4294901760
        %v316 = vsub.f32 %v314, %v315
        %v317 = vand.u32 %v316, 4294901760
        %318 = vmatpush1.msra.mxu0 %v317
        %319 = vmatprep.subr.mxu0 0.0
        %v320 = vand.u32 %v185, 4294901760
        %v321 = vsub.f32 %v185, %v320
        %v322 = vand.u32 %v321, 4294901760
        %v323 = vsub.f32 %v321, %v322
        %v324 = vand.u32 %v323, 4294901760
        %325 = vmatpush1.msra.mxu0 %v324
        %326 = vmatprep.subr.mxu0 0.0
        %v327 = vand.u32 %v186, 4294901760
        %v328 = vsub.f32 %v186, %v327
        %v329 = vand.u32 %v328, 4294901760
        %v330 = vsub.f32 %v328, %v329
        %v331 = vand.u32 %v330, 4294901760
        %332 = vmatpush1.msra.mxu0 %v331
        %333 = vmatprep.subr.mxu0 0.0
        %v334 = vand.u32 %v187, 4294901760
        %v335 = vsub.f32 %v187, %v334
        %v336 = vand.u32 %v335, 4294901760
        %v337 = vsub.f32 %v335, %v336
        %v338 = vand.u32 %v337, 4294901760
        %339 = vmatpush1.msra.mxu0 %v338
        %340 = vmatprep.subr.mxu0 0.0
        %v341 = vand.u32 %v188, 4294901760
        %v342 = vsub.f32 %v188, %v341
        %v343 = vand.u32 %v342, 4294901760
        %v344 = vsub.f32 %v342, %v343
        %v345 = vand.u32 %v344, 4294901760
        %346 = vmatpush1.msra.mxu0 %v345
        %347 = vmatprep.subr.mxu0 0.0
        %v348 = vand.u32 %v189, 4294901760
        %v349 = vsub.f32 %v189, %v348
        %v350 = vand.u32 %v349, 4294901760
        %v351 = vsub.f32 %v349, %v350
        %v352 = vand.u32 %v351, 4294901760
        %353 = vmatpush1.msra.mxu0 %v352
        %354 = vmatprep.subr.mxu0 0.0
        %355 = vmatpush1.msra.mxu0 0.0
        %356 = vmatprep.subr.mxu0 0.0
        %357 = vmatpush1.msra.mxu0 0.0
        %358 = vmatprep.subr.mxu0 0.0
        %359 = vmatpush1.msra.mxu0 0.0
        %360 = vmatprep.subr.mxu0 0.0
        %361 = vmatpush1.msra.mxu0 0.0
        %362 = vmatprep.subr.mxu0 0.0
        %363 = vmatpush1.msra.mxu0 0.0
        %364 = vmatprep.subr.mxu0 0.0
        %365 = vmatpush1.msra.mxu0 0.0
        %366 = vmatprep.subr.mxu0 0.0
        %367 = vmatpush1.msra.mxu0 0.0
        %368 = vmatprep.subr.mxu0 0.0
        %369 = vmatpush1.msra.mxu0 0.0
        %370 = vmatprep.subr.mxu0 0.0
        %371 = vmatpush1.msra.mxu0 0.0
        %372 = vmatprep.subr.mxu0 0.0
        %373 = vmatpush1.msra.mxu0 0.0
        %374 = vmatprep.subr.mxu0 0.0
        %375 = vmatpush1.msra.mxu0 0.0
        %376 = vmatprep.subr.mxu0 0.0
        %377 = vmatpush1.msra.mxu0 0.0
        %378 = vmatprep.subr.mxu0 0.0
        %379 = vmatpush1.msra.mxu0 0.0
        %380 = vmatprep.subr.mxu0 0.0
        %381 = vmatpush1.msra.mxu0 0.0
        %382 = vmatprep.subr.mxu0 0.0
        %383 = vmatpush1.msra.mxu0 0.0
        %384 = vmatprep.subr.mxu0 0.0
        %385 = vmatpush1.msra.mxu0 0.0
        %386 = vmatprep.subr.mxu0 0.0
        %387 = vmatpush1.msra.mxu0 0.0
        %388 = vmatprep.subr.mxu0 0.0
        %389 = vmatpush1.msra.mxu0 0.0
        %390 = vmatprep.subr.mxu0 0.0
        %391 = vmatpush1.msra.mxu0 0.0
        %392 = vmatprep.subr.mxu0 0.0
        %393 = vmatpush1.msra.mxu0 0.0
        %394 = vmatprep.subr.mxu0 0.0
        %395 = vmatpush1.msra.mxu0 0.0
        %396 = vmatprep.subr.mxu0 0.0
        %397 = vmatpush1.msra.mxu0 0.0
        %398 = vmatprep.subr.mxu0 0.0
        %399 = vmatpush1.msra.mxu0 0.0
        %400 = vmatprep.mubr.f32.mxu0 0.0
        %v401 = vand.u32 %v192, 4294901760
        %402 = vmatmul.mubr.f32.gmra.mrb[0].mxu0 %v401
        %v403 = vpop.f32.mrb[0].mxu0
        %v404 = vadd.f32 %v278, %v403
        %v405 = vpop.f32.mrb[0].mxu0
        %406 = vmatprep.mubr.f32.mxu0 0.0
        %v407 = vand.u32 %v195, 4294901760
        %408 = vmatmul.mubr.f32.gmra.mrb[0].mxu0 %v407
        %v409 = vpop.f32.mrb[0].mxu0
        %v410 = vadd.f32 %v288, %v409
        %v411 = vpop.f32.mrb[0].mxu0
        %412 = vdwg.mxu0
        %413 = vmatprep.subr.mxu0 0.0
        %v414 = vand.u32 %v181, 4294901760
        %v415 = vsub.f32 %v181, %v414
        %416 = vmatpush1.msra.mxu0 %v415
        %417 = vmatprep.subr.mxu0 0.0
        %v418 = vand.u32 %v182, 4294901760
        %v419 = vsub.f32 %v182, %v418
        %420 = vmatpush1.msra.mxu0 %v419
        %421 = vmatprep.subr.mxu0 0.0
        %v422 = vand.u32 %v183, 4294901760
        %v423 = vsub.f32 %v183, %v422
        %424 = vmatpush1.msra.mxu0 %v423
        %425 = vmatprep.subr.mxu0 0.0
        %v426 = vand.u32 %v184, 4294901760
        %v427 = vsub.f32 %v184, %v426
        %428 = vmatpush1.msra.mxu0 %v427
        %429 = vmatprep.subr.mxu0 0.0
        %v430 = vand.u32 %v185, 4294901760
        %v431 = vsub.f32 %v185, %v430
        %432 = vmatpush1.msra.mxu0 %v431
        %433 = vmatprep.subr.mxu0 0.0
        %v434 = vand.u32 %v186, 4294901760
        %v435 = vsub.f32 %v186, %v434
        %436 = vmatpush1.msra.mxu0 %v435
        %437 = vmatprep.subr.mxu0 0.0
        %v438 = vand.u32 %v187, 4294901760
        %v439 = vsub.f32 %v187, %v438
        %440 = vmatpush1.msra.mxu0 %v439
        %441 = vmatprep.subr.mxu0 0.0
        %v442 = vand.u32 %v188, 4294901760
        %v443 = vsub.f32 %v188, %v442
        %444 = vmatpush1.msra.mxu0 %v443
        %445 = vmatprep.subr.mxu0 0.0
        %v446 = vand.u32 %v189, 4294901760
        %v447 = vsub.f32 %v189, %v446
        %448 = vmatpush1.msra.mxu0 %v447
        %449 = vmatprep.subr.mxu0 0.0
        %450 = vmatpush1.msra.mxu0 0.0
        %451 = vmatprep.subr.mxu0 0.0
        %452 = vmatpush1.msra.mxu0 0.0
        %453 = vmatprep.subr.mxu0 0.0
        %454 = vmatpush1.msra.mxu0 0.0
        %455 = vmatprep.subr.mxu0 0.0
        %456 = vmatpush1.msra.mxu0 0.0
        %457 = vmatprep.subr.mxu0 0.0
        %458 = vmatpush1.msra.mxu0 0.0
        %459 = vmatprep.subr.mxu0 0.0
        %460 = vmatpush1.msra.mxu0 0.0
        %461 = vmatprep.subr.mxu0 0.0
        %462 = vmatpush1.msra.mxu0 0.0
        %463 = vmatprep.subr.mxu0 0.0
        %464 = vmatpush1.msra.mxu0 0.0
        %465 = vmatprep.subr.mxu0 0.0
        %466 = vmatpush1.msra.mxu0 0.0
        %467 = vmatprep.subr.mxu0 0.0
        %468 = vmatpush1.msra.mxu0 0.0
        %469 = vmatprep.subr.mxu0 0.0
        %470 = vmatpush1.msra.mxu0 0.0
        %471 = vmatprep.subr.mxu0 0.0
        %472 = vmatpush1.msra.mxu0 0.0
        %473 = vmatprep.subr.mxu0 0.0
        %474 = vmatpush1.msra.mxu0 0.0
        %475 = vmatprep.subr.mxu0 0.0
        %476 = vmatpush1.msra.mxu0 0.0
        %477 = vmatprep.subr.mxu0 0.0
        %478 = vmatpush1.msra.mxu0 0.0
        %479 = vmatprep.subr.mxu0 0.0
        %480 = vmatpush1.msra.mxu0 0.0
        %481 = vmatprep.subr.mxu0 0.0
        %482 = vmatpush1.msra.mxu0 0.0
        %483 = vmatprep.subr.mxu0 0.0
        %484 = vmatpush1.msra.mxu0 0.0
        %485 = vmatprep.subr.mxu0 0.0
        %486 = vmatpush1.msra.mxu0 0.0
        %487 = vmatprep.subr.mxu0 0.0
        %488 = vmatpush1.msra.mxu0 0.0
        %489 = vmatprep.subr.mxu0 0.0
        %490 = vmatpush1.msra.mxu0 0.0
        %491 = vmatprep.subr.mxu0 0.0
        %492 = vmatpush1.msra.mxu0 0.0
        %493 = vmatprep.subr.mxu0 0.0
        %494 = vmatpush1.msra.mxu0 0.0
        %495 = vmatprep.mubr.f32.mxu0 0.0
        %v496 = vand.u32 %v192, 4294901760
        %v497 = vsub.f32 %v192, %v496
        %498 = vmatmul.mubr.f32.gmra.mrb[0].mxu0 %v497
        %v499 = vpop.f32.mrb[0].mxu0
        %v500 = vadd.f32 %v404, %v499
        %v501 = vpop.f32.mrb[0].mxu0
        %502 = vmatprep.mubr.f32.mxu0 0.0
        %v503 = vand.u32 %v195, 4294901760
        %v504 = vsub.f32 %v195, %v503
        %505 = vmatmul.mubr.f32.gmra.mrb[0].mxu0 %v504
        %v506 = vpop.f32.mrb[0].mxu0
        %v507 = vadd.f32 %v410, %v506
        %v508 = vpop.f32.mrb[0].mxu0
        %509 = vdwg.mxu0
        %510 = vmatprep.subr.mxu0 0.0
        %v511 = vand.u32 %v181, 4294901760
        %512 = vmatpush1.msra.mxu0 %v511
        %513 = vmatprep.subr.mxu0 0.0
        %v514 = vand.u32 %v182, 4294901760
        %515 = vmatpush1.msra.mxu0 %v514
        %516 = vmatprep.subr.mxu0 0.0
        %v517 = vand.u32 %v183, 4294901760
        %518 = vmatpush1.msra.mxu0 %v517
        %519 = vmatprep.subr.mxu0 0.0
        %v520 = vand.u32 %v184, 4294901760
        %521 = vmatpush1.msra.mxu0 %v520
        %522 = vmatprep.subr.mxu0 0.0
        %v523 = vand.u32 %v185, 4294901760
        %524 = vmatpush1.msra.mxu0 %v523
        %525 = vmatprep.subr.mxu0 0.0
        %v526 = vand.u32 %v186, 4294901760
        %527 = vmatpush1.msra.mxu0 %v526
        %528 = vmatprep.subr.mxu0 0.0
        %v529 = vand.u32 %v187, 4294901760
        %530 = vmatpush1.msra.mxu0 %v529
        %531 = vmatprep.subr.mxu0 0.0
        %v532 = vand.u32 %v188, 4294901760
        %533 = vmatpush1.msra.mxu0 %v532
        %534 = vmatprep.subr.mxu0 0.0
        %v535 = vand.u32 %v189, 4294901760
        %536 = vmatpush1.msra.mxu0 %v535
        %537 = vmatprep.subr.mxu0 0.0
        %538 = vmatpush1.msra.mxu0 0.0
        %539 = vmatprep.subr.mxu0 0.0
        %540 = vmatpush1.msra.mxu0 0.0
        %541 = vmatprep.subr.mxu0 0.0
        %542 = vmatpush1.msra.mxu0 0.0
        %543 = vmatprep.subr.mxu0 0.0
        %544 = vmatpush1.msra.mxu0 0.0
        %545 = vmatprep.subr.mxu0 0.0
        %546 = vmatpush1.msra.mxu0 0.0
        %547 = vmatprep.subr.mxu0 0.0
        %548 = vmatpush1.msra.mxu0 0.0
        %549 = vmatprep.subr.mxu0 0.0
        %550 = vmatpush1.msra.mxu0 0.0
        %551 = vmatprep.subr.mxu0 0.0
        %552 = vmatpush1.msra.mxu0 0.0
        %553 = vmatprep.subr.mxu0 0.0
        %554 = vmatpush1.msra.mxu0 0.0
        %555 = vmatprep.subr.mxu0 0.0
        %556 = vmatpush1.msra.mxu0 0.0
        %557 = vmatprep.subr.mxu0 0.0
        %558 = vmatpush1.msra.mxu0 0.0
        %559 = vmatprep.subr.mxu0 0.0
        %560 = vmatpush1.msra.mxu0 0.0
        %561 = vmatprep.subr.mxu0 0.0
        %562 = vmatpush1.msra.mxu0 0.0
        %563 = vmatprep.subr.mxu0 0.0
        %564 = vmatpush1.msra.mxu0 0.0
        %565 = vmatprep.subr.mxu0 0.0
        %566 = vmatpush1.msra.mxu0 0.0
        %567 = vmatprep.subr.mxu0 0.0
        %568 = vmatpush1.msra.mxu0 0.0
        %569 = vmatprep.subr.mxu0 0.0
        %570 = vmatpush1.msra.mxu0 0.0
        %571 = vmatprep.subr.mxu0 0.0
        %572 = vmatpush1.msra.mxu0 0.0
        %573 = vmatprep.subr.mxu0 0.0
        %574 = vmatpush1.msra.mxu0 0.0
        %575 = vmatprep.subr.mxu0 0.0
        %576 = vmatpush1.msra.mxu0 0.0
        %577 = vmatprep.subr.mxu0 0.0
        %578 = vmatpush1.msra.mxu0 0.0
        %579 = vmatprep.subr.mxu0 0.0
        %580 = vmatpush1.msra.mxu0 0.0
        %581 = vmatprep.subr.mxu0 0.0
        %582 = vmatpush1.msra.mxu0 0.0
        %583 = vmatprep.mubr.f32.mxu0 0.0
        %v584 = vand.u32 %v192, 4294901760
        %v585 = vsub.f32 %v192, %v584
        %v586 = vand.u32 %v585, 4294901760
        %587 = vmatmul.mubr.f32.gmra.mrb[0].mxu0 %v586
        %v588 = vpop.f32.mrb[0].mxu0
        %v589 = vadd.f32 %v500, %v588
        %v590 = vpop.f32.mrb[0].mxu0
        %591 = vmatprep.mubr.f32.mxu0 0.0
        %v592 = vand.u32 %v195, 4294901760
        %v593 = vsub.f32 %v195, %v592
        %v594 = vand.u32 %v593, 4294901760
        %595 = vmatmul.mubr.f32.gmra.mrb[0].mxu0 %v594
        %v596 = vpop.f32.mrb[0].mxu0
        %v597 = vadd.f32 %v507, %v596
        %v598 = vpop.f32.mrb[0].mxu0
        %599 = vdwg.mxu0
        %600 = vmatprep.subr.mxu0 0.0
        %v601 = vand.u32 %v181, 4294901760
        %v602 = vsub.f32 %v181, %v601
        %v603 = vand.u32 %v602, 4294901760
        %604 = vmatpush1.msra.mxu0 %v603
        %605 = vmatprep.subr.mxu0 0.0
        %v606 = vand.u32 %v182, 4294901760
        %v607 = vsub.f32 %v182, %v606
        %v608 = vand.u32 %v607, 4294901760
        %609 = vmatpush1.msra.mxu0 %v608
        %610 = vmatprep.subr.mxu0 0.0
        %v611 = vand.u32 %v183, 4294901760
        %v612 = vsub.f32 %v183, %v611
        %v613 = vand.u32 %v612, 4294901760
        %614 = vmatpush1.msra.mxu0 %v613
        %615 = vmatprep.subr.mxu0 0.0
        %v616 = vand.u32 %v184, 4294901760
        %v617 = vsub.f32 %v184, %v616
        %v618 = vand.u32 %v617, 4294901760
        %619 = vmatpush1.msra.mxu0 %v618
        %620 = vmatprep.subr.mxu0 0.0
        %v621 = vand.u32 %v185, 4294901760
        %v622 = vsub.f32 %v185, %v621
        %v623 = vand.u32 %v622, 4294901760
        %624 = vmatpush1.msra.mxu0 %v623
        %625 = vmatprep.subr.mxu0 0.0
        %v626 = vand.u32 %v186, 4294901760
        %v627 = vsub.f32 %v186, %v626
        %v628 = vand.u32 %v627, 4294901760
        %629 = vmatpush1.msra.mxu0 %v628
        %630 = vmatprep.subr.mxu0 0.0
        %v631 = vand.u32 %v187, 4294901760
        %v632 = vsub.f32 %v187, %v631
        %v633 = vand.u32 %v632, 4294901760
        %634 = vmatpush1.msra.mxu0 %v633
        %635 = vmatprep.subr.mxu0 0.0
        %v636 = vand.u32 %v188, 4294901760
        %v637 = vsub.f32 %v188, %v636
        %v638 = vand.u32 %v637, 4294901760
        %639 = vmatpush1.msra.mxu0 %v638
        %640 = vmatprep.subr.mxu0 0.0
        %v641 = vand.u32 %v189, 4294901760
        %v642 = vsub.f32 %v189, %v641
        %v643 = vand.u32 %v642, 4294901760
        %644 = vmatpush1.msra.mxu0 %v643
        %645 = vmatprep.subr.mxu0 0.0
        %646 = vmatpush1.msra.mxu0 0.0
        %647 = vmatprep.subr.mxu0 0.0
        %648 = vmatpush1.msra.mxu0 0.0
        %649 = vmatprep.subr.mxu0 0.0
        %650 = vmatpush1.msra.mxu0 0.0
        %651 = vmatprep.subr.mxu0 0.0
        %652 = vmatpush1.msra.mxu0 0.0
        %653 = vmatprep.subr.mxu0 0.0
        %654 = vmatpush1.msra.mxu0 0.0
        %655 = vmatprep.subr.mxu0 0.0
        %656 = vmatpush1.msra.mxu0 0.0
        %657 = vmatprep.subr.mxu0 0.0
        %658 = vmatpush1.msra.mxu0 0.0
        %659 = vmatprep.subr.mxu0 0.0
        %660 = vmatpush1.msra.mxu0 0.0
        %661 = vmatprep.subr.mxu0 0.0
        %662 = vmatpush1.msra.mxu0 0.0
        %663 = vmatprep.subr.mxu0 0.0
        %664 = vmatpush1.msra.mxu0 0.0
        %665 = vmatprep.subr.mxu0 0.0
        %666 = vmatpush1.msra.mxu0 0.0
        %667 = vmatprep.subr.mxu0 0.0
        %668 = vmatpush1.msra.mxu0 0.0
        %669 = vmatprep.subr.mxu0 0.0
        %670 = vmatpush1.msra.mxu0 0.0
        %671 = vmatprep.subr.mxu0 0.0
        %672 = vmatpush1.msra.mxu0 0.0
        %673 = vmatprep.subr.mxu0 0.0
        %674 = vmatpush1.msra.mxu0 0.0
        %675 = vmatprep.subr.mxu0 0.0
        %676 = vmatpush1.msra.mxu0 0.0
        %677 = vmatprep.subr.mxu0 0.0
        %678 = vmatpush1.msra.mxu0 0.0
        %679 = vmatprep.subr.mxu0 0.0
        %680 = vmatpush1.msra.mxu0 0.0
        %681 = vmatprep.subr.mxu0 0.0
        %682 = vmatpush1.msra.mxu0 0.0
        %683 = vmatprep.subr.mxu0 0.0
        %684 = vmatpush1.msra.mxu0 0.0
        %685 = vmatprep.subr.mxu0 0.0
        %686 = vmatpush1.msra.mxu0 0.0
        %687 = vmatprep.subr.mxu0 0.0
        %688 = vmatpush1.msra.mxu0 0.0
        %689 = vmatprep.subr.mxu0 0.0
        %690 = vmatpush1.msra.mxu0 0.0
        %691 = vmatprep.mubr.f32.mxu0 0.0
        %v692 = vand.u32 %v192, 4294901760
        %693 = vmatmul.mubr.f32.gmra.mrb[0].mxu0 %v692
        %v694 = vpop.f32.mrb[0].mxu0
        %v695 = vadd.f32 %v589, %v694
        %v696 = vpop.f32.mrb[0].mxu0
        %697 = vmatprep.mubr.f32.mxu0 0.0
        %v698 = vand.u32 %v195, 4294901760
        %699 = vmatmul.mubr.f32.gmra.mrb[0].mxu0 %v698
        %v700 = vpop.f32.mrb[0].mxu0
        %v701 = vadd.f32 %v597, %v700
        %v702 = vpop.f32.mrb[0].mxu0
        %703 = vdwg.mxu0
        %704 = vmatprep.subr.mxu0 0.0
        %v705 = vand.u32 %v181, 4294901760
        %706 = vmatpush1.msra.mxu0 %v705
        %707 = vmatprep.subr.mxu0 0.0
        %v708 = vand.u32 %v182, 4294901760
        %709 = vmatpush1.msra.mxu0 %v708
        %710 = vmatprep.subr.mxu0 0.0
        %v711 = vand.u32 %v183, 4294901760
        %712 = vmatpush1.msra.mxu0 %v711
        %713 = vmatprep.subr.mxu0 0.0
        %v714 = vand.u32 %v184, 4294901760
        %715 = vmatpush1.msra.mxu0 %v714
        %716 = vmatprep.subr.mxu0 0.0
        %v717 = vand.u32 %v185, 4294901760
        %718 = vmatpush1.msra.mxu0 %v717
        %719 = vmatprep.subr.mxu0 0.0
        %v720 = vand.u32 %v186, 4294901760
        %721 = vmatpush1.msra.mxu0 %v720
        %722 = vmatprep.subr.mxu0 0.0
        %v723 = vand.u32 %v187, 4294901760
        %724 = vmatpush1.msra.mxu0 %v723
        %725 = vmatprep.subr.mxu0 0.0
        %v726 = vand.u32 %v188, 4294901760
        %727 = vmatpush1.msra.mxu0 %v726
        %728 = vmatprep.subr.mxu0 0.0
        %v729 = vand.u32 %v189, 4294901760
        %730 = vmatpush1.msra.mxu0 %v729
        %731 = vmatprep.subr.mxu0 0.0
        %732 = vmatpush1.msra.mxu0 0.0
        %733 = vmatprep.subr.mxu0 0.0
        %734 = vmatpush1.msra.mxu0 0.0
        %735 = vmatprep.subr.mxu0 0.0
        %736 = vmatpush1.msra.mxu0 0.0
        %737 = vmatprep.subr.mxu0 0.0
        %738 = vmatpush1.msra.mxu0 0.0
        %739 = vmatprep.subr.mxu0 0.0
        %740 = vmatpush1.msra.mxu0 0.0
        %741 = vmatprep.subr.mxu0 0.0
        %742 = vmatpush1.msra.mxu0 0.0
        %743 = vmatprep.subr.mxu0 0.0
        %744 = vmatpush1.msra.mxu0 0.0
        %745 = vmatprep.subr.mxu0 0.0
        %746 = vmatpush1.msra.mxu0 0.0
        %747 = vmatprep.subr.mxu0 0.0
        %748 = vmatpush1.msra.mxu0 0.0
        %749 = vmatprep.subr.mxu0 0.0
        %750 = vmatpush1.msra.mxu0 0.0
        %751 = vmatprep.subr.mxu0 0.0
        %752 = vmatpush1.msra.mxu0 0.0
        %753 = vmatprep.subr.mxu0 0.0
        %754 = vmatpush1.msra.mxu0 0.0
        %755 = vmatprep.subr.mxu0 0.0
        %756 = vmatpush1.msra.mxu0 0.0
        %757 = vmatprep.subr.mxu0 0.0
        %758 = vmatpush1.msra.mxu0 0.0
        %759 = vmatprep.subr.mxu0 0.0
        %760 = vmatpush1.msra.mxu0 0.0
        %761 = vmatprep.subr.mxu0 0.0
        %762 = vmatpush1.msra.mxu0 0.0
        %763 = vmatprep.subr.mxu0 0.0
        %764 = vmatpush1.msra.mxu0 0.0
        %765 = vmatprep.subr.mxu0 0.0
        %766 = vmatpush1.msra.mxu0 0.0
        %767 = vmatprep.subr.mxu0 0.0
        %768 = vmatpush1.msra.mxu0 0.0
        %769 = vmatprep.subr.mxu0 0.0
        %770 = vmatpush1.msra.mxu0 0.0
        %771 = vmatprep.subr.mxu0 0.0
        %772 = vmatpush1.msra.mxu0 0.0
        %773 = vmatprep.subr.mxu0 0.0
        %774 = vmatpush1.msra.mxu0 0.0
        %775 = vmatprep.subr.mxu0 0.0
        %776 = vmatpush1.msra.mxu0 0.0
        %777 = vmatprep.mubr.f32.mxu0 0.0
        %v778 = vand.u32 %v192, 4294901760
        %779 = vmatmul.mubr.f32.gmra.mrb[0].mxu0 %v778
        %v780 = vpop.f32.mrb[0].mxu0
        %v781 = vadd.f32 %v695, %v780
        %v782 = vpop.f32.mrb[0].mxu0
        %783 = vmatprep.mubr.f32.mxu0 0.0
        %v784 = vand.u32 %v195, 4294901760
        %785 = vmatmul.mubr.f32.gmra.mrb[0].mxu0 %v784
        %v786 = vpop.f32.mrb[0].mxu0
        %v787 = vadd.f32 %v701, %v786
        %v788 = vpop.f32.mrb[0].mxu0
        %789 = vdwg.mxu0
        %790 = vst.msk [vmem:[%s176] sm:$0xff] %vm190, %v781
        %791 = vst.msk [vmem:[%s176 + $0x40] sm:$0xff] %vm190, %v787
        %s792 = scalar_lea.vmem [#allocation5], 72
        %v793 = vld [vmem:[%s792] sm:$0xff]
        %v794 = vld [vmem:[%s792 + $0x8] sm:$0xff]
        %v795 = vld [vmem:[%s792 + $0x10] sm:$0xff]
        %v796 = vld [vmem:[%s792 + $0x18] sm:$0xff]
        %v797 = vld [vmem:[%s792 + $0x20] sm:$0xff]
        %v798 = vld [vmem:[%s792 + $0x28] sm:$0xff]
        %v799 = vld [vmem:[%s792 + $0x30] sm:$0xff]
        %v800 = vld [vmem:[%s792 + $0x38] sm:$0xff]
        %v801 = vld [vmem:[%s792 + $0x40] sm:$0xff]
        %802 = vmatprep.subr.mxu0 0.0
        %v803 = vand.u32 %v793, 4294901760
        %804 = vmatpush1.msra.mxu0 %v803
        %805 = vmatprep.subr.mxu0 0.0
        %v806 = vand.u32 %v794, 4294901760
        %807 = vmatpush1.msra.mxu0 %v806
        %808 = vmatprep.subr.mxu0 0.0
        %v809 = vand.u32 %v795, 4294901760
        %810 = vmatpush1.msra.mxu0 %v809
        %811 = vmatprep.subr.mxu0 0.0
        %v812 = vand.u32 %v796, 4294901760
        %813 = vmatpush1.msra.mxu0 %v812
        %814 = vmatprep.subr.mxu0 0.0
        %v815 = vand.u32 %v797, 4294901760
        %816 = vmatpush1.msra.mxu0 %v815
        %817 = vmatprep.subr.mxu0 0.0
        %v818 = vand.u32 %v798, 4294901760
        %819 = vmatpush1.msra.mxu0 %v818
        %820 = vmatprep.subr.mxu0 0.0
        %v821 = vand.u32 %v799, 4294901760
        %822 = vmatpush1.msra.mxu0 %v821
        %823 = vmatprep.subr.mxu0 0.0
        %v824 = vand.u32 %v800, 4294901760
        %825 = vmatpush1.msra.mxu0 %v824
        %826 = vmatprep.subr.mxu0 0.0
        %v827 = vand.u32 %v801, 4294901760
        %828 = vmatpush1.msra.mxu0 %v827
        %829 = vmatprep.subr.mxu0 0.0
        %830 = vmatpush1.msra.mxu0 0.0
        %831 = vmatprep.subr.mxu0 0.0
        %832 = vmatpush1.msra.mxu0 0.0
        %833 = vmatprep.subr.mxu0 0.0
        %834 = vmatpush1.msra.mxu0 0.0
        %835 = vmatprep.subr.mxu0 0.0
        %836 = vmatpush1.msra.mxu0 0.0
        %837 = vmatprep.subr.mxu0 0.0
        %838 = vmatpush1.msra.mxu0 0.0
        %839 = vmatprep.subr.mxu0 0.0
        %840 = vmatpush1.msra.mxu0 0.0
        %841 = vmatprep.subr.mxu0 0.0
        %842 = vmatpush1.msra.mxu0 0.0
        %843 = vmatprep.subr.mxu0 0.0
        %844 = vmatpush1.msra.mxu0 0.0
        %845 = vmatprep.subr.mxu0 0.0
        %846 = vmatpush1.msra.mxu0 0.0
        %847 = vmatprep.subr.mxu0 0.0
        %848 = vmatpush1.msra.mxu0 0.0
        %849 = vmatprep.subr.mxu0 0.0
        %850 = vmatpush1.msra.mxu0 0.0
        %851 = vmatprep.subr.mxu0 0.0
        %852 = vmatpush1.msra.mxu0 0.0
        %853 = vmatprep.subr.mxu0 0.0
        %854 = vmatpush1.msra.mxu0 0.0
        %855 = vmatprep.subr.mxu0 0.0
        %856 = vmatpush1.msra.mxu0 0.0
        %857 = vmatprep.subr.mxu0 0.0
        %858 = vmatpush1.msra.mxu0 0.0
        %859 = vmatprep.subr.mxu0 0.0
        %860 = vmatpush1.msra.mxu0 0.0
        %861 = vmatprep.subr.mxu0 0.0
        %862 = vmatpush1.msra.mxu0 0.0
        %863 = vmatprep.subr.mxu0 0.0
        %864 = vmatpush1.msra.mxu0 0.0
        %865 = vmatprep.subr.mxu0 0.0
        %866 = vmatpush1.msra.mxu0 0.0
        %867 = vmatprep.subr.mxu0 0.0
        %868 = vmatpush1.msra.mxu0 0.0
        %869 = vmatprep.subr.mxu0 0.0
        %870 = vmatpush1.msra.mxu0 0.0
        %871 = vmatprep.subr.mxu0 0.0
        %872 = vmatpush1.msra.mxu0 0.0
        %873 = vmatprep.subr.mxu0 0.0
        %874 = vmatpush1.msra.mxu0 0.0
        %875 = vmatprep.mubr.f32.mxu0 0.0
        %v876 = vand.u32 %v192, 4294901760
        %v877 = vsub.f32 %v192, %v876
        %v878 = vand.u32 %v877, 4294901760
        %v879 = vsub.f32 %v877, %v878
        %v880 = vand.u32 %v879, 4294901760
        %881 = vmatmul.mubr.f32.gmra.mrb[0].mxu0 %v880
        %v882 = vpop.f32.mrb[0].mxu0
        %v883 = vadd.f32 0.0, %v882
        %v884 = vpop.f32.mrb[0].mxu0
        %885 = vmatprep.mubr.f32.mxu0 0.0
        %v886 = vand.u32 %v195, 4294901760
        %v887 = vsub.f32 %v195, %v886
        %v888 = vand.u32 %v887, 4294901760
        %v889 = vsub.f32 %v887, %v888
        %v890 = vand.u32 %v889, 4294901760
        %891 = vmatmul.mubr.f32.gmra.mrb[0].mxu0 %v890
        %v892 = vpop.f32.mrb[0].mxu0
        %v893 = vadd.f32 0.0, %v892
        %v894 = vpop.f32.mrb[0].mxu0
        %895 = vdwg.mxu0
        %896 = vmatprep.subr.mxu0 0.0
        %v897 = vand.u32 %v793, 4294901760
        %v898 = vsub.f32 %v793, %v897
        %v899 = vand.u32 %v898, 4294901760
        %v900 = vsub.f32 %v898, %v899
        %v901 = vand.u32 %v900, 4294901760
        %902 = vmatpush1.msra.mxu0 %v901
        %903 = vmatprep.subr.mxu0 0.0
        %v904 = vand.u32 %v794, 4294901760
        %v905 = vsub.f32 %v794, %v904
        %v906 = vand.u32 %v905, 4294901760
        %v907 = vsub.f32 %v905, %v906
        %v908 = vand.u32 %v907, 4294901760
        %909 = vmatpush1.msra.mxu0 %v908
        %910 = vmatprep.subr.mxu0 0.0
        %v911 = vand.u32 %v795, 4294901760
        %v912 = vsub.f32 %v795, %v911
        %v913 = vand.u32 %v912, 4294901760
        %v914 = vsub.f32 %v912, %v913
        %v915 = vand.u32 %v914, 4294901760
        %916 = vmatpush1.msra.mxu0 %v915
        %917 = vmatprep.subr.mxu0 0.0
        %v918 = vand.u32 %v796, 4294901760
        %v919 = vsub.f32 %v796, %v918
        %v920 = vand.u32 %v919, 4294901760
        %v921 = vsub.f32 %v919, %v920
        %v922 = vand.u32 %v921, 4294901760
        %923 = vmatpush1.msra.mxu0 %v922
        %924 = vmatprep.subr.mxu0 0.0
        %v925 = vand.u32 %v797, 4294901760
        %v926 = vsub.f32 %v797, %v925
        %v927 = vand.u32 %v926, 4294901760
        %v928 = vsub.f32 %v926, %v927
        %v929 = vand.u32 %v928, 4294901760
        %930 = vmatpush1.msra.mxu0 %v929
        %931 = vmatprep.subr.mxu0 0.0
        %v932 = vand.u32 %v798, 4294901760
        %v933 = vsub.f32 %v798, %v932
        %v934 = vand.u32 %v933, 4294901760
        %v935 = vsub.f32 %v933, %v934
        %v936 = vand.u32 %v935, 4294901760
        %937 = vmatpush1.msra.mxu0 %v936
        %938 = vmatprep.subr.mxu0 0.0
        %v939 = vand.u32 %v799, 4294901760
        %v940 = vsub.f32 %v799, %v939
        %v941 = vand.u32 %v940, 4294901760
        %v942 = vsub.f32 %v940, %v941
        %v943 = vand.u32 %v942, 4294901760
        %944 = vmatpush1.msra.mxu0 %v943
        %945 = vmatprep.subr.mxu0 0.0
        %v946 = vand.u32 %v800, 4294901760
        %v947 = vsub.f32 %v800, %v946
        %v948 = vand.u32 %v947, 4294901760
        %v949 = vsub.f32 %v947, %v948
        %v950 = vand.u32 %v949, 4294901760
        %951 = vmatpush1.msra.mxu0 %v950
        %952 = vmatprep.subr.mxu0 0.0
        %v953 = vand.u32 %v801, 4294901760
        %v954 = vsub.f32 %v801, %v953
        %v955 = vand.u32 %v954, 4294901760
        %v956 = vsub.f32 %v954, %v955
        %v957 = vand.u32 %v956, 4294901760
        %958 = vmatpush1.msra.mxu0 %v957
        %959 = vmatprep.subr.mxu0 0.0
        %960 = vmatpush1.msra.mxu0 0.0
        %961 = vmatprep.subr.mxu0 0.0
        %962 = vmatpush1.msra.mxu0 0.0
        %963 = vmatprep.subr.mxu0 0.0
        %964 = vmatpush1.msra.mxu0 0.0
        %965 = vmatprep.subr.mxu0 0.0
        %966 = vmatpush1.msra.mxu0 0.0
        %967 = vmatprep.subr.mxu0 0.0
        %968 = vmatpush1.msra.mxu0 0.0
        %969 = vmatprep.subr.mxu0 0.0
        %970 = vmatpush1.msra.mxu0 0.0
        %971 = vmatprep.subr.mxu0 0.0
        %972 = vmatpush1.msra.mxu0 0.0
        %973 = vmatprep.subr.mxu0 0.0
        %974 = vmatpush1.msra.mxu0 0.0
        %975 = vmatprep.subr.mxu0 0.0
        %976 = vmatpush1.msra.mxu0 0.0
        %977 = vmatprep.subr.mxu0 0.0
        %978 = vmatpush1.msra.mxu0 0.0
        %979 = vmatprep.subr.mxu0 0.0
        %980 = vmatpush1.msra.mxu0 0.0
        %981 = vmatprep.subr.mxu0 0.0
        %982 = vmatpush1.msra.mxu0 0.0
        %983 = vmatprep.subr.mxu0 0.0
        %984 = vmatpush1.msra.mxu0 0.0
        %985 = vmatprep.subr.mxu0 0.0
        %986 = vmatpush1.msra.mxu0 0.0
        %987 = vmatprep.subr.mxu0 0.0
        %988 = vmatpush1.msra.mxu0 0.0
        %989 = vmatprep.subr.mxu0 0.0
        %990 = vmatpush1.msra.mxu0 0.0
        %991 = vmatprep.subr.mxu0 0.0
        %992 = vmatpush1.msra.mxu0 0.0
        %993 = vmatprep.subr.mxu0 0.0
        %994 = vmatpush1.msra.mxu0 0.0
        %995 = vmatprep.subr.mxu0 0.0
        %996 = vmatpush1.msra.mxu0 0.0
        %997 = vmatprep.subr.mxu0 0.0
        %998 = vmatpush1.msra.mxu0 0.0
        %999 = vmatprep.subr.mxu0 0.0
        %1000 = vmatpush1.msra.mxu0 0.0
        %1001 = vmatprep.subr.mxu0 0.0
        %1002 = vmatpush1.msra.mxu0 0.0
        %1003 = vmatprep.subr.mxu0 0.0
        %1004 = vmatpush1.msra.mxu0 0.0
        %1005 = vmatprep.mubr.f32.mxu0 0.0
        %v1006 = vand.u32 %v192, 4294901760
        %1007 = vmatmul.mubr.f32.gmra.mrb[0].mxu0 %v1006
        %v1008 = vpop.f32.mrb[0].mxu0
        %v1009 = vadd.f32 %v883, %v1008
        %v1010 = vpop.f32.mrb[0].mxu0
        %1011 = vmatprep.mubr.f32.mxu0 0.0
        %v1012 = vand.u32 %v195, 4294901760
        %1013 = vmatmul.mubr.f32.gmra.mrb[0].mxu0 %v1012
        %v1014 = vpop.f32.mrb[0].mxu0
        %v1015 = vadd.f32 %v893, %v1014
        %v1016 = vpop.f32.mrb[0].mxu0
        %1017 = vdwg.mxu0
        %1018 = vmatprep.subr.mxu0 0.0
        %v1019 = vand.u32 %v793, 4294901760
        %v1020 = vsub.f32 %v793, %v1019
        %1021 = vmatpush1.msra.mxu0 %v1020
        %1022 = vmatprep.subr.mxu0 0.0
        %v1023 = vand.u32 %v794, 4294901760
        %v1024 = vsub.f32 %v794, %v1023
        %1025 = vmatpush1.msra.mxu0 %v1024
        %1026 = vmatprep.subr.mxu0 0.0
        %v1027 = vand.u32 %v795, 4294901760
        %v1028 = vsub.f32 %v795, %v1027
        %1029 = vmatpush1.msra.mxu0 %v1028
        %1030 = vmatprep.subr.mxu0 0.0
        %v1031 = vand.u32 %v796, 4294901760
        %v1032 = vsub.f32 %v796, %v1031
        %1033 = vmatpush1.msra.mxu0 %v1032
        %1034 = vmatprep.subr.mxu0 0.0
        %v1035 = vand.u32 %v797, 4294901760
        %v1036 = vsub.f32 %v797, %v1035
        %1037 = vmatpush1.msra.mxu0 %v1036
        %1038 = vmatprep.subr.mxu0 0.0
        %v1039 = vand.u32 %v798, 4294901760
        %v1040 = vsub.f32 %v798, %v1039
        %1041 = vmatpush1.msra.mxu0 %v1040
        %1042 = vmatprep.subr.mxu0 0.0
        %v1043 = vand.u32 %v799, 4294901760
        %v1044 = vsub.f32 %v799, %v1043
        %1045 = vmatpush1.msra.mxu0 %v1044
        %1046 = vmatprep.subr.mxu0 0.0
        %v1047 = vand.u32 %v800, 4294901760
        %v1048 = vsub.f32 %v800, %v1047
        %1049 = vmatpush1.msra.mxu0 %v1048
        %1050 = vmatprep.subr.mxu0 0.0
        %v1051 = vand.u32 %v801, 4294901760
        %v1052 = vsub.f32 %v801, %v1051
        %1053 = vmatpush1.msra.mxu0 %v1052
        %1054 = vmatprep.subr.mxu0 0.0
        %1055 = vmatpush1.msra.mxu0 0.0
        %1056 = vmatprep.subr.mxu0 0.0
        %1057 = vmatpush1.msra.mxu0 0.0
        %1058 = vmatprep.subr.mxu0 0.0
        %1059 = vmatpush1.msra.mxu0 0.0
        %1060 = vmatprep.subr.mxu0 0.0
        %1061 = vmatpush1.msra.mxu0 0.0
        %1062 = vmatprep.subr.mxu0 0.0
        %1063 = vmatpush1.msra.mxu0 0.0
        %1064 = vmatprep.subr.mxu0 0.0
        %1065 = vmatpush1.msra.mxu0 0.0
        %1066 = vmatprep.subr.mxu0 0.0
        %1067 = vmatpush1.msra.mxu0 0.0
        %1068 = vmatprep.subr.mxu0 0.0
        %1069 = vmatpush1.msra.mxu0 0.0
        %1070 = vmatprep.subr.mxu0 0.0
        %1071 = vmatpush1.msra.mxu0 0.0
        %1072 = vmatprep.subr.mxu0 0.0
        %1073 = vmatpush1.msra.mxu0 0.0
        %1074 = vmatprep.subr.mxu0 0.0
        %1075 = vmatpush1.msra.mxu0 0.0
        %1076 = vmatprep.subr.mxu0 0.0
        %1077 = vmatpush1.msra.mxu0 0.0
        %1078 = vmatprep.subr.mxu0 0.0
        %1079 = vmatpush1.msra.mxu0 0.0
        %1080 = vmatprep.subr.mxu0 0.0
        %1081 = vmatpush1.msra.mxu0 0.0
        %1082 = vmatprep.subr.mxu0 0.0
        %1083 = vmatpush1.msra.mxu0 0.0
        %1084 = vmatprep.subr.mxu0 0.0
        %1085 = vmatpush1.msra.mxu0 0.0
        %1086 = vmatprep.subr.mxu0 0.0
        %1087 = vmatpush1.msra.mxu0 0.0
        %1088 = vmatprep.subr.mxu0 0.0
        %1089 = vmatpush1.msra.mxu0 0.0
        %1090 = vmatprep.subr.mxu0 0.0
        %1091 = vmatpush1.msra.mxu0 0.0
        %1092 = vmatprep.subr.mxu0 0.0
        %1093 = vmatpush1.msra.mxu0 0.0
        %1094 = vmatprep.subr.mxu0 0.0
        %1095 = vmatpush1.msra.mxu0 0.0
        %1096 = vmatprep.subr.mxu0 0.0
        %1097 = vmatpush1.msra.mxu0 0.0
        %1098 = vmatprep.subr.mxu0 0.0
        %1099 = vmatpush1.msra.mxu0 0.0
        %1100 = vmatprep.mubr.f32.mxu0 0.0
        %v1101 = vand.u32 %v192, 4294901760
        %v1102 = vsub.f32 %v192, %v1101
        %1103 = vmatmul.mubr.f32.gmra.mrb[0].mxu0 %v1102
        %v1104 = vpop.f32.mrb[0].mxu0
        %v1105 = vadd.f32 %v1009, %v1104
        %v1106 = vpop.f32.mrb[0].mxu0
        %1107 = vmatprep.mubr.f32.mxu0 0.0
        %v1108 = vand.u32 %v195, 4294901760
        %v1109 = vsub.f32 %v195, %v1108
        %1110 = vmatmul.mubr.f32.gmra.mrb[0].mxu0 %v1109
        %v1111 = vpop.f32.mrb[0].mxu0
        %v1112 = vadd.f32 %v1015, %v1111
        %v1113 = vpop.f32.mrb[0].mxu0
        %1114 = vdwg.mxu0
        %1115 = vmatprep.subr.mxu0 0.0
        %v1116 = vand.u32 %v793, 4294901760
        %1117 = vmatpush1.msra.mxu0 %v1116
        %1118 = vmatprep.subr.mxu0 0.0
        %v1119 = vand.u32 %v794, 4294901760
        %1120 = vmatpush1.msra.mxu0 %v1119
        %1121 = vmatprep.subr.mxu0 0.0
        %v1122 = vand.u32 %v795, 4294901760
        %1123 = vmatpush1.msra.mxu0 %v1122
        %1124 = vmatprep.subr.mxu0 0.0
        %v1125 = vand.u32 %v796, 4294901760
        %1126 = vmatpush1.msra.mxu0 %v1125
        %1127 = vmatprep.subr.mxu0 0.0
        %v1128 = vand.u32 %v797, 4294901760
        %1129 = vmatpush1.msra.mxu0 %v1128
        %1130 = vmatprep.subr.mxu0 0.0
        %v1131 = vand.u32 %v798, 4294901760
        %1132 = vmatpush1.msra.mxu0 %v1131
        %1133 = vmatprep.subr.mxu0 0.0
        %v1134 = vand.u32 %v799, 4294901760
        %1135 = vmatpush1.msra.mxu0 %v1134
        %1136 = vmatprep.subr.mxu0 0.0
        %v1137 = vand.u32 %v800, 4294901760
        %1138 = vmatpush1.msra.mxu0 %v1137
        %1139 = vmatprep.subr.mxu0 0.0
        %v1140 = vand.u32 %v801, 4294901760
        %1141 = vmatpush1.msra.mxu0 %v1140
        %1142 = vmatprep.subr.mxu0 0.0
        %1143 = vmatpush1.msra.mxu0 0.0
        %1144 = vmatprep.subr.mxu0 0.0
        %1145 = vmatpush1.msra.mxu0 0.0
        %1146 = vmatprep.subr.mxu0 0.0
        %1147 = vmatpush1.msra.mxu0 0.0
        %1148 = vmatprep.subr.mxu0 0.0
        %1149 = vmatpush1.msra.mxu0 0.0
        %1150 = vmatprep.subr.mxu0 0.0
        %1151 = vmatpush1.msra.mxu0 0.0
        %1152 = vmatprep.subr.mxu0 0.0
        %1153 = vmatpush1.msra.mxu0 0.0
        %1154 = vmatprep.subr.mxu0 0.0
        %1155 = vmatpush1.msra.mxu0 0.0
        %1156 = vmatprep.subr.mxu0 0.0
        %1157 = vmatpush1.msra.mxu0 0.0
        %1158 = vmatprep.subr.mxu0 0.0
        %1159 = vmatpush1.msra.mxu0 0.0
        %1160 = vmatprep.subr.mxu0 0.0
        %1161 = vmatpush1.msra.mxu0 0.0
        %1162 = vmatprep.subr.mxu0 0.0
        %1163 = vmatpush1.msra.mxu0 0.0
        %1164 = vmatprep.subr.mxu0 0.0
        %1165 = vmatpush1.msra.mxu0 0.0
        %1166 = vmatprep.subr.mxu0 0.0
        %1167 = vmatpush1.msra.mxu0 0.0
        %1168 = vmatprep.subr.mxu0 0.0
        %1169 = vmatpush1.msra.mxu0 0.0
        %1170 = vmatprep.subr.mxu0 0.0
        %1171 = vmatpush1.msra.mxu0 0.0
        %1172 = vmatprep.subr.mxu0 0.0
        %1173 = vmatpush1.msra.mxu0 0.0
        %1174 = vmatprep.subr.mxu0 0.0
        %1175 = vmatpush1.msra.mxu0 0.0
        %1176 = vmatprep.subr.mxu0 0.0
        %1177 = vmatpush1.msra.mxu0 0.0
        %1178 = vmatprep.subr.mxu0 0.0
        %1179 = vmatpush1.msra.mxu0 0.0
        %1180 = vmatprep.subr.mxu0 0.0
        %1181 = vmatpush1.msra.mxu0 0.0
        %1182 = vmatprep.subr.mxu0 0.0
        %1183 = vmatpush1.msra.mxu0 0.0
        %1184 = vmatprep.subr.mxu0 0.0
        %1185 = vmatpush1.msra.mxu0 0.0
        %1186 = vmatprep.subr.mxu0 0.0
        %1187 = vmatpush1.msra.mxu0 0.0
        %1188 = vmatprep.mubr.f32.mxu0 0.0
        %v1189 = vand.u32 %v192, 4294901760
        %v1190 = vsub.f32 %v192, %v1189
        %v1191 = vand.u32 %v1190, 4294901760
        %1192 = vmatmul.mubr.f32.gmra.mrb[0].mxu0 %v1191
        %v1193 = vpop.f32.mrb[0].mxu0
        %v1194 = vadd.f32 %v1105, %v1193
        %v1195 = vpop.f32.mrb[0].mxu0
        %1196 = vmatprep.mubr.f32.mxu0 0.0
        %v1197 = vand.u32 %v195, 4294901760
        %v1198 = vsub.f32 %v195, %v1197
        %v1199 = vand.u32 %v1198, 4294901760
        %1200 = vmatmul.mubr.f32.gmra.mrb[0].mxu0 %v1199
        %v1201 = vpop.f32.mrb[0].mxu0
        %v1202 = vadd.f32 %v1112, %v1201
        %v1203 = vpop.f32.mrb[0].mxu0
        %1204 = vdwg.mxu0
        %1205 = vmatprep.subr.mxu0 0.0
        %v1206 = vand.u32 %v793, 4294901760
        %v1207 = vsub.f32 %v793, %v1206
        %v1208 = vand.u32 %v1207, 4294901760
        %1209 = vmatpush1.msra.mxu0 %v1208
        %1210 = vmatprep.subr.mxu0 0.0
        %v1211 = vand.u32 %v794, 4294901760
        %v1212 = vsub.f32 %v794, %v1211
        %v1213 = vand.u32 %v1212, 4294901760
        %1214 = vmatpush1.msra.mxu0 %v1213
        %1215 = vmatprep.subr.mxu0 0.0
        %v1216 = vand.u32 %v795, 4294901760
        %v1217 = vsub.f32 %v795, %v1216
        %v1218 = vand.u32 %v1217, 4294901760
        %1219 = vmatpush1.msra.mxu0 %v1218
        %1220 = vmatprep.subr.mxu0 0.0
        %v1221 = vand.u32 %v796, 4294901760
        %v1222 = vsub.f32 %v796, %v1221
        %v1223 = vand.u32 %v1222, 4294901760
        %1224 = vmatpush1.msra.mxu0 %v1223
        %1225 = vmatprep.subr.mxu0 0.0
        %v1226 = vand.u32 %v797, 4294901760
        %v1227 = vsub.f32 %v797, %v1226
        %v1228 = vand.u32 %v1227, 4294901760
        %1229 = vmatpush1.msra.mxu0 %v1228
        %1230 = vmatprep.subr.mxu0 0.0
        %v1231 = vand.u32 %v798, 4294901760
        %v1232 = vsub.f32 %v798, %v1231
        %v1233 = vand.u32 %v1232, 4294901760
        %1234 = vmatpush1.msra.mxu0 %v1233
        %1235 = vmatprep.subr.mxu0 0.0
        %v1236 = vand.u32 %v799, 4294901760
        %v1237 = vsub.f32 %v799, %v1236
        %v1238 = vand.u32 %v1237, 4294901760
        %1239 = vmatpush1.msra.mxu0 %v1238
        %1240 = vmatprep.subr.mxu0 0.0
        %v1241 = vand.u32 %v800, 4294901760
        %v1242 = vsub.f32 %v800, %v1241
        %v1243 = vand.u32 %v1242, 4294901760
        %1244 = vmatpush1.msra.mxu0 %v1243
        %1245 = vmatprep.subr.mxu0 0.0
        %v1246 = vand.u32 %v801, 4294901760
        %v1247 = vsub.f32 %v801, %v1246
        %v1248 = vand.u32 %v1247, 4294901760
        %1249 = vmatpush1.msra.mxu0 %v1248
        %1250 = vmatprep.subr.mxu0 0.0
        %1251 = vmatpush1.msra.mxu0 0.0
        %1252 = vmatprep.subr.mxu0 0.0
        %1253 = vmatpush1.msra.mxu0 0.0
        %1254 = vmatprep.subr.mxu0 0.0
        %1255 = vmatpush1.msra.mxu0 0.0
        %1256 = vmatprep.subr.mxu0 0.0
        %1257 = vmatpush1.msra.mxu0 0.0
        %1258 = vmatprep.subr.mxu0 0.0
        %1259 = vmatpush1.msra.mxu0 0.0
        %1260 = vmatprep.subr.mxu0 0.0
        %1261 = vmatpush1.msra.mxu0 0.0
        %1262 = vmatprep.subr.mxu0 0.0
        %1263 = vmatpush1.msra.mxu0 0.0
        %1264 = vmatprep.subr.mxu0 0.0
        %1265 = vmatpush1.msra.mxu0 0.0
        %1266 = vmatprep.subr.mxu0 0.0
        %1267 = vmatpush1.msra.mxu0 0.0
        %1268 = vmatprep.subr.mxu0 0.0
        %1269 = vmatpush1.msra.mxu0 0.0
        %1270 = vmatprep.subr.mxu0 0.0
        %1271 = vmatpush1.msra.mxu0 0.0
        %1272 = vmatprep.subr.mxu0 0.0
        %1273 = vmatpush1.msra.mxu0 0.0
        %1274 = vmatprep.subr.mxu0 0.0
        %1275 = vmatpush1.msra.mxu0 0.0
        %1276 = vmatprep.subr.mxu0 0.0
        %1277 = vmatpush1.msra.mxu0 0.0
        %1278 = vmatprep.subr.mxu0 0.0
        %1279 = vmatpush1.msra.mxu0 0.0
        %1280 = vmatprep.subr.mxu0 0.0
        %1281 = vmatpush1.msra.mxu0 0.0
        %1282 = vmatprep.subr.mxu0 0.0
        %1283 = vmatpush1.msra.mxu0 0.0
        %1284 = vmatprep.subr.mxu0 0.0
        %1285 = vmatpush1.msra.mxu0 0.0
        %1286 = vmatprep.subr.mxu0 0.0
        %1287 = vmatpush1.msra.mxu0 0.0
        %1288 = vmatprep.subr.mxu0 0.0
        %1289 = vmatpush1.msra.mxu0 0.0
        %1290 = vmatprep.subr.mxu0 0.0
        %1291 = vmatpush1.msra.mxu0 0.0
        %1292 = vmatprep.subr.mxu0 0.0
        %1293 = vmatpush1.msra.mxu0 0.0
        %1294 = vmatprep.subr.mxu0 0.0
        %1295 = vmatpush1.msra.mxu0 0.0
        %1296 = vmatprep.mubr.f32.mxu0 0.0
        %v1297 = vand.u32 %v192, 4294901760
        %1298 = vmatmul.mubr.f32.gmra.mrb[0].mxu0 %v1297
        %v1299 = vpop.f32.mrb[0].mxu0
        %v1300 = vadd.f32 %v1194, %v1299
        %v1301 = vpop.f32.mrb[0].mxu0
        %1302 = vmatprep.mubr.f32.mxu0 0.0
        %v1303 = vand.u32 %v195, 4294901760
        %1304 = vmatmul.mubr.f32.gmra.mrb[0].mxu0 %v1303
        %v1305 = vpop.f32.mrb[0].mxu0
        %v1306 = vadd.f32 %v1202, %v1305
        %v1307 = vpop.f32.mrb[0].mxu0
        %1308 = vdwg.mxu0
        %1309 = vmatprep.subr.mxu0 0.0
        %v1310 = vand.u32 %v793, 4294901760
        %1311 = vmatpush1.msra.mxu0 %v1310
        %1312 = vmatprep.subr.mxu0 0.0
        %v1313 = vand.u32 %v794, 4294901760
        %1314 = vmatpush1.msra.mxu0 %v1313
        %1315 = vmatprep.subr.mxu0 0.0
        %v1316 = vand.u32 %v795, 4294901760
        %1317 = vmatpush1.msra.mxu0 %v1316
        %1318 = vmatprep.subr.mxu0 0.0
        %v1319 = vand.u32 %v796, 4294901760
        %1320 = vmatpush1.msra.mxu0 %v1319
        %1321 = vmatprep.subr.mxu0 0.0
        %v1322 = vand.u32 %v797, 4294901760
        %1323 = vmatpush1.msra.mxu0 %v1322
        %1324 = vmatprep.subr.mxu0 0.0
        %v1325 = vand.u32 %v798, 4294901760
        %1326 = vmatpush1.msra.mxu0 %v1325
        %1327 = vmatprep.subr.mxu0 0.0
        %v1328 = vand.u32 %v799, 4294901760
        %1329 = vmatpush1.msra.mxu0 %v1328
        %1330 = vmatprep.subr.mxu0 0.0
        %v1331 = vand.u32 %v800, 4294901760
        %1332 = vmatpush1.msra.mxu0 %v1331
        %1333 = vmatprep.subr.mxu0 0.0
        %v1334 = vand.u32 %v801, 4294901760
        %1335 = vmatpush1.msra.mxu0 %v1334
        %1336 = vmatprep.subr.mxu0 0.0
        %1337 = vmatpush1.msra.mxu0 0.0
        %1338 = vmatprep.subr.mxu0 0.0
        %1339 = vmatpush1.msra.mxu0 0.0
        %1340 = vmatprep.subr.mxu0 0.0
        %1341 = vmatpush1.msra.mxu0 0.0
        %1342 = vmatprep.subr.mxu0 0.0
        %1343 = vmatpush1.msra.mxu0 0.0
        %1344 = vmatprep.subr.mxu0 0.0
        %1345 = vmatpush1.msra.mxu0 0.0
        %1346 = vmatprep.subr.mxu0 0.0
        %1347 = vmatpush1.msra.mxu0 0.0
        %1348 = vmatprep.subr.mxu0 0.0
        %1349 = vmatpush1.msra.mxu0 0.0
        %1350 = vmatprep.subr.mxu0 0.0
        %1351 = vmatpush1.msra.mxu0 0.0
        %1352 = vmatprep.subr.mxu0 0.0
        %1353 = vmatpush1.msra.mxu0 0.0
        %1354 = vmatprep.subr.mxu0 0.0
        %1355 = vmatpush1.msra.mxu0 0.0
        %1356 = vmatprep.subr.mxu0 0.0
        %1357 = vmatpush1.msra.mxu0 0.0
        %1358 = vmatprep.subr.mxu0 0.0
        %1359 = vmatpush1.msra.mxu0 0.0
        %1360 = vmatprep.subr.mxu0 0.0
        %1361 = vmatpush1.msra.mxu0 0.0
        %1362 = vmatprep.subr.mxu0 0.0
        %1363 = vmatpush1.msra.mxu0 0.0
        %1364 = vmatprep.subr.mxu0 0.0
        %1365 = vmatpush1.msra.mxu0 0.0
        %1366 = vmatprep.subr.mxu0 0.0
        %1367 = vmatpush1.msra.mxu0 0.0
        %1368 = vmatprep.subr.mxu0 0.0
        %1369 = vmatpush1.msra.mxu0 0.0
        %1370 = vmatprep.subr.mxu0 0.0
        %1371 = vmatpush1.msra.mxu0 0.0
        %1372 = vmatprep.subr.mxu0 0.0
        %1373 = vmatpush1.msra.mxu0 0.0
        %1374 = vmatprep.subr.mxu0 0.0
        %1375 = vmatpush1.msra.mxu0 0.0
        %1376 = vmatprep.subr.mxu0 0.0
        %1377 = vmatpush1.msra.mxu0 0.0
        %1378 = vmatprep.subr.mxu0 0.0
        %1379 = vmatpush1.msra.mxu0 0.0
        %1380 = vmatprep.subr.mxu0 0.0
        %1381 = vmatpush1.msra.mxu0 0.0
        %1382 = vmatprep.mubr.f32.mxu0 0.0
        %v1383 = vand.u32 %v192, 4294901760
        %1384 = vmatmul.mubr.f32.gmra.mrb[0].mxu0 %v1383
        %v1385 = vpop.f32.mrb[0].mxu0
        %v1386 = vadd.f32 %v1300, %v1385
        %v1387 = vpop.f32.mrb[0].mxu0
        %1388 = vmatprep.mubr.f32.mxu0 0.0
        %v1389 = vand.u32 %v195, 4294901760
        %1390 = vmatmul.mubr.f32.gmra.mrb[0].mxu0 %v1389
        %v1391 = vpop.f32.mrb[0].mxu0
        %v1392 = vadd.f32 %v1306, %v1391
        %v1393 = vpop.f32.mrb[0].mxu0
        %1394 = vdwg.mxu0
        %s1395 = scalar_lea.vmem %s176, 8 [#allocation7]
        %1396 = vst.msk [vmem:[%s1395] sm:$0xff] %vm190, %v1386
        %1397 = vst.msk [vmem:[%s1395 + $0x40] sm:$0xff] %vm190, %v1392
        %s1398 = scalar_lea.vmem [#allocation5], 144
        %v1399 = vld [vmem:[%s1398] sm:$0xff]
        %v1400 = vld [vmem:[%s1398 + $0x8] sm:$0xff]
        %v1401 = vld [vmem:[%s1398 + $0x10] sm:$0xff]
        %v1402 = vld [vmem:[%s1398 + $0x18] sm:$0xff]
        %v1403 = vld [vmem:[%s1398 + $0x20] sm:$0xff]
        %v1404 = vld [vmem:[%s1398 + $0x28] sm:$0xff]
        %v1405 = vld [vmem:[%s1398 + $0x30] sm:$0xff]
        %v1406 = vld [vmem:[%s1398 + $0x38] sm:$0xff]
        %v1407 = vld [vmem:[%s1398 + $0x40] sm:$0xff]
        %1408 = vmatprep.subr.mxu0 0.0
        %v1409 = vand.u32 %v1399, 4294901760
        %1410 = vmatpush1.msra.mxu0 %v1409
        %1411 = vmatprep.subr.mxu0 0.0
        %v1412 = vand.u32 %v1400, 4294901760
        %1413 = vmatpush1.msra.mxu0 %v1412
        %1414 = vmatprep.subr.mxu0 0.0
        %v1415 = vand.u32 %v1401, 4294901760
        %1416 = vmatpush1.msra.mxu0 %v1415
        %1417 = vmatprep.subr.mxu0 0.0
        %v1418 = vand.u32 %v1402, 4294901760
        %1419 = vmatpush1.msra.mxu0 %v1418
        %1420 = vmatprep.subr.mxu0 0.0
        %v1421 = vand.u32 %v1403, 4294901760
        %1422 = vmatpush1.msra.mxu0 %v1421
        %1423 = vmatprep.subr.mxu0 0.0
        %v1424 = vand.u32 %v1404, 4294901760
        %1425 = vmatpush1.msra.mxu0 %v1424
        %1426 = vmatprep.subr.mxu0 0.0
        %v1427 = vand.u32 %v1405, 4294901760
        %1428 = vmatpush1.msra.mxu0 %v1427
        %1429 = vmatprep.subr.mxu0 0.0
        %v1430 = vand.u32 %v1406, 4294901760
        %1431 = vmatpush1.msra.mxu0 %v1430
        %1432 = vmatprep.subr.mxu0 0.0
        %v1433 = vand.u32 %v1407, 4294901760
        %1434 = vmatpush1.msra.mxu0 %v1433
        %1435 = vmatprep.subr.mxu0 0.0
        %1436 = vmatpush1.msra.mxu0 0.0
        %1437 = vmatprep.subr.mxu0 0.0
        %1438 = vmatpush1.msra.mxu0 0.0
        %1439 = vmatprep.subr.mxu0 0.0
        %1440 = vmatpush1.msra.mxu0 0.0
        %1441 = vmatprep.subr.mxu0 0.0
        %1442 = vmatpush1.msra.mxu0 0.0
        %1443 = vmatprep.subr.mxu0 0.0
        %1444 = vmatpush1.msra.mxu0 0.0
        %1445 = vmatprep.subr.mxu0 0.0
        %1446 = vmatpush1.msra.mxu0 0.0
        %1447 = vmatprep.subr.mxu0 0.0
        %1448 = vmatpush1.msra.mxu0 0.0
        %1449 = vmatprep.subr.mxu0 0.0
        %1450 = vmatpush1.msra.mxu0 0.0
        %1451 = vmatprep.subr.mxu0 0.0
        %1452 = vmatpush1.msra.mxu0 0.0
        %1453 = vmatprep.subr.mxu0 0.0
        %1454 = vmatpush1.msra.mxu0 0.0
        %1455 = vmatprep.subr.mxu0 0.0
        %1456 = vmatpush1.msra.mxu0 0.0
        %1457 = vmatprep.subr.mxu0 0.0
        %1458 = vmatpush1.msra.mxu0 0.0
        %1459 = vmatprep.subr.mxu0 0.0
        %1460 = vmatpush1.msra.mxu0 0.0
        %1461 = vmatprep.subr.mxu0 0.0
        %1462 = vmatpush1.msra.mxu0 0.0
        %1463 = vmatprep.subr.mxu0 0.0
        %1464 = vmatpush1.msra.mxu0 0.0
        %1465 = vmatprep.subr.mxu0 0.0
        %1466 = vmatpush1.msra.mxu0 0.0
        %1467 = vmatprep.subr.mxu0 0.0
        %1468 = vmatpush1.msra.mxu0 0.0
        %1469 = vmatprep.subr.mxu0 0.0
        %1470 = vmatpush1.msra.mxu0 0.0
        %1471 = vmatprep.subr.mxu0 0.0
        %1472 = vmatpush1.msra.mxu0 0.0
        %1473 = vmatprep.subr.mxu0 0.0
        %1474 = vmatpush1.msra.mxu0 0.0
        %1475 = vmatprep.subr.mxu0 0.0
        %1476 = vmatpush1.msra.mxu0 0.0
        %1477 = vmatprep.subr.mxu0 0.0
        %1478 = vmatpush1.msra.mxu0 0.0
        %1479 = vmatprep.subr.mxu0 0.0
        %1480 = vmatpush1.msra.mxu0 0.0
        %1481 = vmatprep.mubr.f32.mxu0 0.0
        %v1482 = vand.u32 %v192, 4294901760
        %v1483 = vsub.f32 %v192, %v1482
        %v1484 = vand.u32 %v1483, 4294901760
        %v1485 = vsub.f32 %v1483, %v1484
        %v1486 = vand.u32 %v1485, 4294901760
        %1487 = vmatmul.mubr.f32.gmra.mrb[0].mxu0 %v1486
        %v1488 = vpop.f32.mrb[0].mxu0
        %v1489 = vadd.f32 0.0, %v1488
        %v1490 = vpop.f32.mrb[0].mxu0
        %1491 = vmatprep.mubr.f32.mxu0 0.0
        %v1492 = vand.u32 %v195, 4294901760
        %v1493 = vsub.f32 %v195, %v1492
        %v1494 = vand.u32 %v1493, 4294901760
        %v1495 = vsub.f32 %v1493, %v1494
        %v1496 = vand.u32 %v1495, 4294901760
        %1497 = vmatmul.mubr.f32.gmra.mrb[0].mxu0 %v1496
        %v1498 = vpop.f32.mrb[0].mxu0
        %v1499 = vadd.f32 0.0, %v1498
        %v1500 = vpop.f32.mrb[0].mxu0
        %1501 = vdwg.mxu0
        %1502 = vmatprep.subr.mxu0 0.0
        %v1503 = vand.u32 %v1399, 4294901760
        %v1504 = vsub.f32 %v1399, %v1503
        %v1505 = vand.u32 %v1504, 4294901760
        %v1506 = vsub.f32 %v1504, %v1505
        %v1507 = vand.u32 %v1506, 4294901760
        %1508 = vmatpush1.msra.mxu0 %v1507
        %1509 = vmatprep.subr.mxu0 0.0
        %v1510 = vand.u32 %v1400, 4294901760
        %v1511 = vsub.f32 %v1400, %v1510
        %v1512 = vand.u32 %v1511, 4294901760
        %v1513 = vsub.f32 %v1511, %v1512
        %v1514 = vand.u32 %v1513, 4294901760
        %1515 = vmatpush1.msra.mxu0 %v1514
        %1516 = vmatprep.subr.mxu0 0.0
        %v1517 = vand.u32 %v1401, 4294901760
        %v1518 = vsub.f32 %v1401, %v1517
        %v1519 = vand.u32 %v1518, 4294901760
        %v1520 = vsub.f32 %v1518, %v1519
        %v1521 = vand.u32 %v1520, 4294901760
        %1522 = vmatpush1.msra.mxu0 %v1521
        %1523 = vmatprep.subr.mxu0 0.0
        %v1524 = vand.u32 %v1402, 4294901760
        %v1525 = vsub.f32 %v1402, %v1524
        %v1526 = vand.u32 %v1525, 4294901760
        %v1527 = vsub.f32 %v1525, %v1526
        %v1528 = vand.u32 %v1527, 4294901760
        %1529 = vmatpush1.msra.mxu0 %v1528
        %1530 = vmatprep.subr.mxu0 0.0
        %v1531 = vand.u32 %v1403, 4294901760
        %v1532 = vsub.f32 %v1403, %v1531
        %v1533 = vand.u32 %v1532, 4294901760
        %v1534 = vsub.f32 %v1532, %v1533
        %v1535 = vand.u32 %v1534, 4294901760
        %1536 = vmatpush1.msra.mxu0 %v1535
        %1537 = vmatprep.subr.mxu0 0.0
        %v1538 = vand.u32 %v1404, 4294901760
        %v1539 = vsub.f32 %v1404, %v1538
        %v1540 = vand.u32 %v1539, 4294901760
        %v1541 = vsub.f32 %v1539, %v1540
        %v1542 = vand.u32 %v1541, 4294901760
        %1543 = vmatpush1.msra.mxu0 %v1542
        %1544 = vmatprep.subr.mxu0 0.0
        %v1545 = vand.u32 %v1405, 4294901760
        %v1546 = vsub.f32 %v1405, %v1545
        %v1547 = vand.u32 %v1546, 4294901760
        %v1548 = vsub.f32 %v1546, %v1547
        %v1549 = vand.u32 %v1548, 4294901760
        %1550 = vmatpush1.msra.mxu0 %v1549
        %1551 = vmatprep.subr.mxu0 0.0
        %v1552 = vand.u32 %v1406, 4294901760
        %v1553 = vsub.f32 %v1406, %v1552
        %v1554 = vand.u32 %v1553, 4294901760
        %v1555 = vsub.f32 %v1553, %v1554
        %v1556 = vand.u32 %v1555, 4294901760
        %1557 = vmatpush1.msra.mxu0 %v1556
        %1558 = vmatprep.subr.mxu0 0.0
        %v1559 = vand.u32 %v1407, 4294901760
        %v1560 = vsub.f32 %v1407, %v1559
        %v1561 = vand.u32 %v1560, 4294901760
        %v1562 = vsub.f32 %v1560, %v1561
        %v1563 = vand.u32 %v1562, 4294901760
        %1564 = vmatpush1.msra.mxu0 %v1563
        %1565 = vmatprep.subr.mxu0 0.0
        %1566 = vmatpush1.msra.mxu0 0.0
        %1567 = vmatprep.subr.mxu0 0.0
        %1568 = vmatpush1.msra.mxu0 0.0
        %1569 = vmatprep.subr.mxu0 0.0
        %1570 = vmatpush1.msra.mxu0 0.0
        %1571 = vmatprep.subr.mxu0 0.0
        %1572 = vmatpush1.msra.mxu0 0.0
        %1573 = vmatprep.subr.mxu0 0.0
        %1574 = vmatpush1.msra.mxu0 0.0
        %1575 = vmatprep.subr.mxu0 0.0
        %1576 = vmatpush1.msra.mxu0 0.0
        %1577 = vmatprep.subr.mxu0 0.0
        %1578 = vmatpush1.msra.mxu0 0.0
        %1579 = vmatprep.subr.mxu0 0.0
        %1580 = vmatpush1.msra.mxu0 0.0
        %1581 = vmatprep.subr.mxu0 0.0
        %1582 = vmatpush1.msra.mxu0 0.0
        %1583 = vmatprep.subr.mxu0 0.0
        %1584 = vmatpush1.msra.mxu0 0.0
        %1585 = vmatprep.subr.mxu0 0.0
        %1586 = vmatpush1.msra.mxu0 0.0
        %1587 = vmatprep.subr.mxu0 0.0
        %1588 = vmatpush1.msra.mxu0 0.0
        %1589 = vmatprep.subr.mxu0 0.0
        %1590 = vmatpush1.msra.mxu0 0.0
        %1591 = vmatprep.subr.mxu0 0.0
        %1592 = vmatpush1.msra.mxu0 0.0
        %1593 = vmatprep.subr.mxu0 0.0
        %1594 = vmatpush1.msra.mxu0 0.0
        %1595 = vmatprep.subr.mxu0 0.0
        %1596 = vmatpush1.msra.mxu0 0.0
        %1597 = vmatprep.subr.mxu0 0.0
        %1598 = vmatpush1.msra.mxu0 0.0
        %1599 = vmatprep.subr.mxu0 0.0
        %1600 = vmatpush1.msra.mxu0 0.0
        %1601 = vmatprep.subr.mxu0 0.0
        %1602 = vmatpush1.msra.mxu0 0.0
        %1603 = vmatprep.subr.mxu0 0.0
        %1604 = vmatpush1.msra.mxu0 0.0
        %1605 = vmatprep.subr.mxu0 0.0
        %1606 = vmatpush1.msra.mxu0 0.0
        %1607 = vmatprep.subr.mxu0 0.0
        %1608 = vmatpush1.msra.mxu0 0.0
        %1609 = vmatprep.subr.mxu0 0.0
        %1610 = vmatpush1.msra.mxu0 0.0
        %1611 = vmatprep.mubr.f32.mxu0 0.0
        %v1612 = vand.u32 %v192, 4294901760
        %1613 = vmatmul.mubr.f32.gmra.mrb[0].mxu0 %v1612
        %v1614 = vpop.f32.mrb[0].mxu0
        %v1615 = vadd.f32 %v1489, %v1614
        %v1616 = vpop.f32.mrb[0].mxu0
        %1617 = vmatprep.mubr.f32.mxu0 0.0
        %v1618 = vand.u32 %v195, 4294901760
        %1619 = vmatmul.mubr.f32.gmra.mrb[0].mxu0 %v1618
        %v1620 = vpop.f32.mrb[0].mxu0
        %v1621 = vadd.f32 %v1499, %v1620
        %v1622 = vpop.f32.mrb[0].mxu0
        %1623 = vdwg.mxu0
        %1624 = vmatprep.subr.mxu0 0.0
        %v1625 = vand.u32 %v1399, 4294901760
        %v1626 = vsub.f32 %v1399, %v1625
        %1627 = vmatpush1.msra.mxu0 %v1626
        %1628 = vmatprep.subr.mxu0 0.0
        %v1629 = vand.u32 %v1400, 4294901760
        %v1630 = vsub.f32 %v1400, %v1629
        %1631 = vmatpush1.msra.mxu0 %v1630
        %1632 = vmatprep.subr.mxu0 0.0
        %v1633 = vand.u32 %v1401, 4294901760
        %v1634 = vsub.f32 %v1401, %v1633
        %1635 = vmatpush1.msra.mxu0 %v1634
        %1636 = vmatprep.subr.mxu0 0.0
        %v1637 = vand.u32 %v1402, 4294901760
        %v1638 = vsub.f32 %v1402, %v1637
        %1639 = vmatpush1.msra.mxu0 %v1638
        %1640 = vmatprep.subr.mxu0 0.0
        %v1641 = vand.u32 %v1403, 4294901760
        %v1642 = vsub.f32 %v1403, %v1641
        %1643 = vmatpush1.msra.mxu0 %v1642
        %1644 = vmatprep.subr.mxu0 0.0
        %v1645 = vand.u32 %v1404, 4294901760
        %v1646 = vsub.f32 %v1404, %v1645
        %1647 = vmatpush1.msra.mxu0 %v1646
        %1648 = vmatprep.subr.mxu0 0.0
        %v1649 = vand.u32 %v1405, 4294901760
        %v1650 = vsub.f32 %v1405, %v1649
        %1651 = vmatpush1.msra.mxu0 %v1650
        %1652 = vmatprep.subr.mxu0 0.0
        %v1653 = vand.u32 %v1406, 4294901760
        %v1654 = vsub.f32 %v1406, %v1653
        %1655 = vmatpush1.msra.mxu0 %v1654
        %1656 = vmatprep.subr.mxu0 0.0
        %v1657 = vand.u32 %v1407, 4294901760
        %v1658 = vsub.f32 %v1407, %v1657
        %1659 = vmatpush1.msra.mxu0 %v1658
        %1660 = vmatprep.subr.mxu0 0.0
        %1661 = vmatpush1.msra.mxu0 0.0
        %1662 = vmatprep.subr.mxu0 0.0
        %1663 = vmatpush1.msra.mxu0 0.0
        %1664 = vmatprep.subr.mxu0 0.0
        %1665 = vmatpush1.msra.mxu0 0.0
        %1666 = vmatprep.subr.mxu0 0.0
        %1667 = vmatpush1.msra.mxu0 0.0
        %1668 = vmatprep.subr.mxu0 0.0
        %1669 = vmatpush1.msra.mxu0 0.0
        %1670 = vmatprep.subr.mxu0 0.0
        %1671 = vmatpush1.msra.mxu0 0.0
        %1672 = vmatprep.subr.mxu0 0.0
        %1673 = vmatpush1.msra.mxu0 0.0
        %1674 = vmatprep.subr.mxu0 0.0
        %1675 = vmatpush1.msra.mxu0 0.0
        %1676 = vmatprep.subr.mxu0 0.0
        %1677 = vmatpush1.msra.mxu0 0.0
        %1678 = vmatprep.subr.mxu0 0.0
        %1679 = vmatpush1.msra.mxu0 0.0
        %1680 = vmatprep.subr.mxu0 0.0
        %1681 = vmatpush1.msra.mxu0 0.0
        %1682 = vmatprep.subr.mxu0 0.0
        %1683 = vmatpush1.msra.mxu0 0.0
        %1684 = vmatprep.subr.mxu0 0.0
        %1685 = vmatpush1.msra.mxu0 0.0
        %1686 = vmatprep.subr.mxu0 0.0
        %1687 = vmatpush1.msra.mxu0 0.0
        %1688 = vmatprep.subr.mxu0 0.0
        %1689 = vmatpush1.msra.mxu0 0.0
        %1690 = vmatprep.subr.mxu0 0.0
        %1691 = vmatpush1.msra.mxu0 0.0
        %1692 = vmatprep.subr.mxu0 0.0
        %1693 = vmatpush1.msra.mxu0 0.0
        %1694 = vmatprep.subr.mxu0 0.0
        %1695 = vmatpush1.msra.mxu0 0.0
        %1696 = vmatprep.subr.mxu0 0.0
        %1697 = vmatpush1.msra.mxu0 0.0
        %1698 = vmatprep.subr.mxu0 0.0
        %1699 = vmatpush1.msra.mxu0 0.0
        %1700 = vmatprep.subr.mxu0 0.0
        %1701 = vmatpush1.msra.mxu0 0.0
        %1702 = vmatprep.subr.mxu0 0.0
        %1703 = vmatpush1.msra.mxu0 0.0
        %1704 = vmatprep.subr.mxu0 0.0
        %1705 = vmatpush1.msra.mxu0 0.0
        %1706 = vmatprep.mubr.f32.mxu0 0.0
        %v1707 = vand.u32 %v192, 4294901760
        %v1708 = vsub.f32 %v192, %v1707
        %1709 = vmatmul.mubr.f32.gmra.mrb[0].mxu0 %v1708
        %v1710 = vpop.f32.mrb[0].mxu0
        %v1711 = vadd.f32 %v1615, %v1710
        %v1712 = vpop.f32.mrb[0].mxu0
        %1713 = vmatprep.mubr.f32.mxu0 0.0
        %v1714 = vand.u32 %v195, 4294901760
        %v1715 = vsub.f32 %v195, %v1714
        %1716 = vmatmul.mubr.f32.gmra.mrb[0].mxu0 %v1715
        %v1717 = vpop.f32.mrb[0].mxu0
        %v1718 = vadd.f32 %v1621, %v1717
        %v1719 = vpop.f32.mrb[0].mxu0
        %1720 = vdwg.mxu0
        %1721 = vmatprep.subr.mxu0 0.0
        %v1722 = vand.u32 %v1399, 4294901760
        %1723 = vmatpush1.msra.mxu0 %v1722
        %1724 = vmatprep.subr.mxu0 0.0
        %v1725 = vand.u32 %v1400, 4294901760
        %1726 = vmatpush1.msra.mxu0 %v1725
        %1727 = vmatprep.subr.mxu0 0.0
        %v1728 = vand.u32 %v1401, 4294901760
        %1729 = vmatpush1.msra.mxu0 %v1728
        %1730 = vmatprep.subr.mxu0 0.0
        %v1731 = vand.u32 %v1402, 4294901760
        %1732 = vmatpush1.msra.mxu0 %v1731
        %1733 = vmatprep.subr.mxu0 0.0
        %v1734 = vand.u32 %v1403, 4294901760
        %1735 = vmatpush1.msra.mxu0 %v1734
        %1736 = vmatprep.subr.mxu0 0.0
        %v1737 = vand.u32 %v1404, 4294901760
        %1738 = vmatpush1.msra.mxu0 %v1737
        %1739 = vmatprep.subr.mxu0 0.0
        %v1740 = vand.u32 %v1405, 4294901760
        %1741 = vmatpush1.msra.mxu0 %v1740
        %1742 = vmatprep.subr.mxu0 0.0
        %v1743 = vand.u32 %v1406, 4294901760
        %1744 = vmatpush1.msra.mxu0 %v1743
        %1745 = vmatprep.subr.mxu0 0.0
        %v1746 = vand.u32 %v1407, 4294901760
        %1747 = vmatpush1.msra.mxu0 %v1746
        %1748 = vmatprep.subr.mxu0 0.0
        %1749 = vmatpush1.msra.mxu0 0.0
        %1750 = vmatprep.subr.mxu0 0.0
        %1751 = vmatpush1.msra.mxu0 0.0
        %1752 = vmatprep.subr.mxu0 0.0
        %1753 = vmatpush1.msra.mxu0 0.0
        %1754 = vmatprep.subr.mxu0 0.0
        %1755 = vmatpush1.msra.mxu0 0.0
        %1756 = vmatprep.subr.mxu0 0.0
        %1757 = vmatpush1.msra.mxu0 0.0
        %1758 = vmatprep.subr.mxu0 0.0
        %1759 = vmatpush1.msra.mxu0 0.0
        %1760 = vmatprep.subr.mxu0 0.0
        %1761 = vmatpush1.msra.mxu0 0.0
        %1762 = vmatprep.subr.mxu0 0.0
        %1763 = vmatpush1.msra.mxu0 0.0
        %1764 = vmatprep.subr.mxu0 0.0
        %1765 = vmatpush1.msra.mxu0 0.0
        %1766 = vmatprep.subr.mxu0 0.0
        %1767 = vmatpush1.msra.mxu0 0.0
        %1768 = vmatprep.subr.mxu0 0.0
        %1769 = vmatpush1.msra.mxu0 0.0
        %1770 = vmatprep.subr.mxu0 0.0
        %1771 = vmatpush1.msra.mxu0 0.0
        %1772 = vmatprep.subr.mxu0 0.0
        %1773 = vmatpush1.msra.mxu0 0.0
        %1774 = vmatprep.subr.mxu0 0.0
        %1775 = vmatpush1.msra.mxu0 0.0
        %1776 = vmatprep.subr.mxu0 0.0
        %1777 = vmatpush1.msra.mxu0 0.0
        %1778 = vmatprep.subr.mxu0 0.0
        %1779 = vmatpush1.msra.mxu0 0.0
        %1780 = vmatprep.subr.mxu0 0.0
        %1781 = vmatpush1.msra.mxu0 0.0
        %1782 = vmatprep.subr.mxu0 0.0
        %1783 = vmatpush1.msra.mxu0 0.0
        %1784 = vmatprep.subr.mxu0 0.0
        %1785 = vmatpush1.msra.mxu0 0.0
        %1786 = vmatprep.subr.mxu0 0.0
        %1787 = vmatpush1.msra.mxu0 0.0
        %1788 = vmatprep.subr.mxu0 0.0
        %1789 = vmatpush1.msra.mxu0 0.0
        %1790 = vmatprep.subr.mxu0 0.0
        %1791 = vmatpush1.msra.mxu0 0.0
        %1792 = vmatprep.subr.mxu0 0.0
        %1793 = vmatpush1.msra.mxu0 0.0
        %1794 = vmatprep.mubr.f32.mxu0 0.0
        %v1795 = vand.u32 %v192, 4294901760
        %v1796 = vsub.f32 %v192, %v1795
        %v1797 = vand.u32 %v1796, 4294901760
        %1798 = vmatmul.mubr.f32.gmra.mrb[0].mxu0 %v1797
        %v1799 = vpop.f32.mrb[0].mxu0
        %v1800 = vadd.f32 %v1711, %v1799
        %v1801 = vpop.f32.mrb[0].mxu0
        %1802 = vmatprep.mubr.f32.mxu0 0.0
        %v1803 = vand.u32 %v195, 4294901760
        %v1804 = vsub.f32 %v195, %v1803
        %v1805 = vand.u32 %v1804, 4294901760
        %1806 = vmatmul.mubr.f32.gmra.mrb[0].mxu0 %v1805
        %v1807 = vpop.f32.mrb[0].mxu0
        %v1808 = vadd.f32 %v1718, %v1807
        %v1809 = vpop.f32.mrb[0].mxu0
        %1810 = vdwg.mxu0
        %1811 = vmatprep.subr.mxu0 0.0
        %v1812 = vand.u32 %v1399, 4294901760
        %v1813 = vsub.f32 %v1399, %v1812
        %v1814 = vand.u32 %v1813, 4294901760
        %1815 = vmatpush1.msra.mxu0 %v1814
        %1816 = vmatprep.subr.mxu0 0.0
        %v1817 = vand.u32 %v1400, 4294901760
        %v1818 = vsub.f32 %v1400, %v1817
        %v1819 = vand.u32 %v1818, 4294901760
        %1820 = vmatpush1.msra.mxu0 %v1819
        %1821 = vmatprep.subr.mxu0 0.0
        %v1822 = vand.u32 %v1401, 4294901760
        %v1823 = vsub.f32 %v1401, %v1822
        %v1824 = vand.u32 %v1823, 4294901760
        %1825 = vmatpush1.msra.mxu0 %v1824
        %1826 = vmatprep.subr.mxu0 0.0
        %v1827 = vand.u32 %v1402, 4294901760
        %v1828 = vsub.f32 %v1402, %v1827
        %v1829 = vand.u32 %v1828, 4294901760
        %1830 = vmatpush1.msra.mxu0 %v1829
        %1831 = vmatprep.subr.mxu0 0.0
        %v1832 = vand.u32 %v1403, 4294901760
        %v1833 = vsub.f32 %v1403, %v1832
        %v1834 = vand.u32 %v1833, 4294901760
        %1835 = vmatpush1.msra.mxu0 %v1834
        %1836 = vmatprep.subr.mxu0 0.0
        %v1837 = vand.u32 %v1404, 4294901760
        %v1838 = vsub.f32 %v1404, %v1837
        %v1839 = vand.u32 %v1838, 4294901760
        %1840 = vmatpush1.msra.mxu0 %v1839
        %1841 = vmatprep.subr.mxu0 0.0
        %v1842 = vand.u32 %v1405, 4294901760
        %v1843 = vsub.f32 %v1405, %v1842
        %v1844 = vand.u32 %v1843, 4294901760
        %1845 = vmatpush1.msra.mxu0 %v1844
        %1846 = vmatprep.subr.mxu0 0.0
        %v1847 = vand.u32 %v1406, 4294901760
        %v1848 = vsub.f32 %v1406, %v1847
        %v1849 = vand.u32 %v1848, 4294901760
        %1850 = vmatpush1.msra.mxu0 %v1849
        %1851 = vmatprep.subr.mxu0 0.0
        %v1852 = vand.u32 %v1407, 4294901760
        %v1853 = vsub.f32 %v1407, %v1852
        %v1854 = vand.u32 %v1853, 4294901760
        %1855 = vmatpush1.msra.mxu0 %v1854
        %1856 = vmatprep.subr.mxu0 0.0
        %1857 = vmatpush1.msra.mxu0 0.0
        %1858 = vmatprep.subr.mxu0 0.0
        %1859 = vmatpush1.msra.mxu0 0.0
        %1860 = vmatprep.subr.mxu0 0.0
        %1861 = vmatpush1.msra.mxu0 0.0
        %1862 = vmatprep.subr.mxu0 0.0
        %1863 = vmatpush1.msra.mxu0 0.0
        %1864 = vmatprep.subr.mxu0 0.0
        %1865 = vmatpush1.msra.mxu0 0.0
        %1866 = vmatprep.subr.mxu0 0.0
        %1867 = vmatpush1.msra.mxu0 0.0
        %1868 = vmatprep.subr.mxu0 0.0
        %1869 = vmatpush1.msra.mxu0 0.0
        %1870 = vmatprep.subr.mxu0 0.0
        %1871 = vmatpush1.msra.mxu0 0.0
        %1872 = vmatprep.subr.mxu0 0.0
        %1873 = vmatpush1.msra.mxu0 0.0
        %1874 = vmatprep.subr.mxu0 0.0
        %1875 = vmatpush1.msra.mxu0 0.0
        %1876 = vmatprep.subr.mxu0 0.0
        %1877 = vmatpush1.msra.mxu0 0.0
        %1878 = vmatprep.subr.mxu0 0.0
        %1879 = vmatpush1.msra.mxu0 0.0
        %1880 = vmatprep.subr.mxu0 0.0
        %1881 = vmatpush1.msra.mxu0 0.0
        %1882 = vmatprep.subr.mxu0 0.0
        %1883 = vmatpush1.msra.mxu0 0.0
        %1884 = vmatprep.subr.mxu0 0.0
        %1885 = vmatpush1.msra.mxu0 0.0
        %1886 = vmatprep.subr.mxu0 0.0
        %1887 = vmatpush1.msra.mxu0 0.0
        %1888 = vmatprep.subr.mxu0 0.0
        %1889 = vmatpush1.msra.mxu0 0.0
        %1890 = vmatprep.subr.mxu0 0.0
        %1891 = vmatpush1.msra.mxu0 0.0
        %1892 = vmatprep.subr.mxu0 0.0
        %1893 = vmatpush1.msra.mxu0 0.0
        %1894 = vmatprep.subr.mxu0 0.0
        %1895 = vmatpush1.msra.mxu0 0.0
        %1896 = vmatprep.subr.mxu0 0.0
        %1897 = vmatpush1.msra.mxu0 0.0
        %1898 = vmatprep.subr.mxu0 0.0
        %1899 = vmatpush1.msra.mxu0 0.0
        %1900 = vmatprep.subr.mxu0 0.0
        %1901 = vmatpush1.msra.mxu0 0.0
        %1902 = vmatprep.mubr.f32.mxu0 0.0
        %v1903 = vand.u32 %v192, 4294901760
        %1904 = vmatmul.mubr.f32.gmra.mrb[0].mxu0 %v1903
        %v1905 = vpop.f32.mrb[0].mxu0
        %v1906 = vadd.f32 %v1800, %v1905
        %v1907 = vpop.f32.mrb[0].mxu0
        %1908 = vmatprep.mubr.f32.mxu0 0.0
        %v1909 = vand.u32 %v195, 4294901760
        %1910 = vmatmul.mubr.f32.gmra.mrb[0].mxu0 %v1909
        %v1911 = vpop.f32.mrb[0].mxu0
        %v1912 = vadd.f32 %v1808, %v1911
        %v1913 = vpop.f32.mrb[0].mxu0
        %1914 = vdwg.mxu0
        %1915 = vmatprep.subr.mxu0 0.0
        %v1916 = vand.u32 %v1399, 4294901760
        %1917 = vmatpush1.msra.mxu0 %v1916
        %1918 = vmatprep.subr.mxu0 0.0
        %v1919 = vand.u32 %v1400, 4294901760
        %1920 = vmatpush1.msra.mxu0 %v1919
        %1921 = vmatprep.subr.mxu0 0.0
        %v1922 = vand.u32 %v1401, 4294901760
        %1923 = vmatpush1.msra.mxu0 %v1922
        %1924 = vmatprep.subr.mxu0 0.0
        %v1925 = vand.u32 %v1402, 4294901760
        %1926 = vmatpush1.msra.mxu0 %v1925
        %1927 = vmatprep.subr.mxu0 0.0
        %v1928 = vand.u32 %v1403, 4294901760
        %1929 = vmatpush1.msra.mxu0 %v1928
        %1930 = vmatprep.subr.mxu0 0.0
        %v1931 = vand.u32 %v1404, 4294901760
        %1932 = vmatpush1.msra.mxu0 %v1931
        %1933 = vmatprep.subr.mxu0 0.0
        %v1934 = vand.u32 %v1405, 4294901760
        %1935 = vmatpush1.msra.mxu0 %v1934
        %1936 = vmatprep.subr.mxu0 0.0
        %v1937 = vand.u32 %v1406, 4294901760
        %1938 = vmatpush1.msra.mxu0 %v1937
        %1939 = vmatprep.subr.mxu0 0.0
        %v1940 = vand.u32 %v1407, 4294901760
        %1941 = vmatpush1.msra.mxu0 %v1940
        %1942 = vmatprep.subr.mxu0 0.0
        %1943 = vmatpush1.msra.mxu0 0.0
        %1944 = vmatprep.subr.mxu0 0.0
        %1945 = vmatpush1.msra.mxu0 0.0
        %1946 = vmatprep.subr.mxu0 0.0
        %1947 = vmatpush1.msra.mxu0 0.0
        %1948 = vmatprep.subr.mxu0 0.0
        %1949 = vmatpush1.msra.mxu0 0.0
        %1950 = vmatprep.subr.mxu0 0.0
        %1951 = vmatpush1.msra.mxu0 0.0
        %1952 = vmatprep.subr.mxu0 0.0
        %1953 = vmatpush1.msra.mxu0 0.0
        %1954 = vmatprep.subr.mxu0 0.0
        %1955 = vmatpush1.msra.mxu0 0.0
        %1956 = vmatprep.subr.mxu0 0.0
        %1957 = vmatpush1.msra.mxu0 0.0
        %1958 = vmatprep.subr.mxu0 0.0
        %1959 = vmatpush1.msra.mxu0 0.0
        %1960 = vmatprep.subr.mxu0 0.0
        %1961 = vmatpush1.msra.mxu0 0.0
        %1962 = vmatprep.subr.mxu0 0.0
        %1963 = vmatpush1.msra.mxu0 0.0
        %1964 = vmatprep.subr.mxu0 0.0
        %1965 = vmatpush1.msra.mxu0 0.0
        %1966 = vmatprep.subr.mxu0 0.0
        %1967 = vmatpush1.msra.mxu0 0.0
        %1968 = vmatprep.subr.mxu0 0.0
        %1969 = vmatpush1.msra.mxu0 0.0
        %1970 = vmatprep.subr.mxu0 0.0
        %1971 = vmatpush1.msra.mxu0 0.0
        %1972 = vmatprep.subr.mxu0 0.0
        %1973 = vmatpush1.msra.mxu0 0.0
        %1974 = vmatprep.subr.mxu0 0.0
        %1975 = vmatpush1.msra.mxu0 0.0
        %1976 = vmatprep.subr.mxu0 0.0
        %1977 = vmatpush1.msra.mxu0 0.0
        %1978 = vmatprep.subr.mxu0 0.0
        %1979 = vmatpush1.msra.mxu0 0.0
        %1980 = vmatprep.subr.mxu0 0.0
        %1981 = vmatpush1.msra.mxu0 0.0
        %1982 = vmatprep.subr.mxu0 0.0
        %1983 = vmatpush1.msra.mxu0 0.0
        %1984 = vmatprep.subr.mxu0 0.0
        %1985 = vmatpush1.msra.mxu0 0.0
        %1986 = vmatprep.subr.mxu0 0.0
        %1987 = vmatpush1.msra.mxu0 0.0
        %1988 = vmatprep.mubr.f32.mxu0 0.0
        %v1989 = vand.u32 %v192, 4294901760
        %1990 = vmatmul.mubr.f32.gmra.mrb[0].mxu0 %v1989
        %v1991 = vpop.f32.mrb[0].mxu0
        %v1992 = vadd.f32 %v1906, %v1991
        %v1993 = vpop.f32.mrb[0].mxu0
        %1994 = vmatprep.mubr.f32.mxu0 0.0
        %v1995 = vand.u32 %v195, 4294901760
        %1996 = vmatmul.mubr.f32.gmra.mrb[0].mxu0 %v1995
        %v1997 = vpop.f32.mrb[0].mxu0
        %v1998 = vadd.f32 %v1912, %v1997
        %v1999 = vpop.f32.mrb[0].mxu0
        %2000 = vdwg.mxu0
        %s2001 = scalar_lea.vmem %s176, 16 [#allocation7]
        %2002 = vst.msk [vmem:[%s2001] sm:$0xff] %vm190, %v1992
        %2003 = vst.msk [vmem:[%s2001 + $0x40] sm:$0xff] %vm190, %v1998
        %s2004 = scalar_lea.vmem [#allocation5], 216
        %v2005 = vld [vmem:[%s2004] sm:$0xff]
        %v2006 = vld [vmem:[%s2004 + $0x8] sm:$0xff]
        %v2007 = vld [vmem:[%s2004 + $0x10] sm:$0xff]
        %v2008 = vld [vmem:[%s2004 + $0x18] sm:$0xff]
        %v2009 = vld [vmem:[%s2004 + $0x20] sm:$0xff]
        %v2010 = vld [vmem:[%s2004 + $0x28] sm:$0xff]
        %v2011 = vld [vmem:[%s2004 + $0x30] sm:$0xff]
        %v2012 = vld [vmem:[%s2004 + $0x38] sm:$0xff]
        %v2013 = vld [vmem:[%s2004 + $0x40] sm:$0xff]
        %2014 = vmatprep.subr.mxu0 0.0
        %v2015 = vand.u32 %v2005, 4294901760
        %2016 = vmatpush1.msra.mxu0 %v2015
        %2017 = vmatprep.subr.mxu0 0.0
        %v2018 = vand.u32 %v2006, 4294901760
        %2019 = vmatpush1.msra.mxu0 %v2018
        %2020 = vmatprep.subr.mxu0 0.0
        %v2021 = vand.u32 %v2007, 4294901760
        %2022 = vmatpush1.msra.mxu0 %v2021
        %2023 = vmatprep.subr.mxu0 0.0
        %v2024 = vand.u32 %v2008, 4294901760
        %2025 = vmatpush1.msra.mxu0 %v2024
        %2026 = vmatprep.subr.mxu0 0.0
        %v2027 = vand.u32 %v2009, 4294901760
        %2028 = vmatpush1.msra.mxu0 %v2027
        %2029 = vmatprep.subr.mxu0 0.0
        %v2030 = vand.u32 %v2010, 4294901760
        %2031 = vmatpush1.msra.mxu0 %v2030
        %2032 = vmatprep.subr.mxu0 0.0
        %v2033 = vand.u32 %v2011, 4294901760
        %2034 = vmatpush1.msra.mxu0 %v2033
        %2035 = vmatprep.subr.mxu0 0.0
        %v2036 = vand.u32 %v2012, 4294901760
        %2037 = vmatpush1.msra.mxu0 %v2036
        %2038 = vmatprep.subr.mxu0 0.0
        %v2039 = vand.u32 %v2013, 4294901760
        %2040 = vmatpush1.msra.mxu0 %v2039
        %2041 = vmatprep.subr.mxu0 0.0
        %2042 = vmatpush1.msra.mxu0 0.0
        %2043 = vmatprep.subr.mxu0 0.0
        %2044 = vmatpush1.msra.mxu0 0.0
        %2045 = vmatprep.subr.mxu0 0.0
        %2046 = vmatpush1.msra.mxu0 0.0
        %2047 = vmatprep.subr.mxu0 0.0
        %2048 = vmatpush1.msra.mxu0 0.0
        %2049 = vmatprep.subr.mxu0 0.0
        %2050 = vmatpush1.msra.mxu0 0.0
        %2051 = vmatprep.subr.mxu0 0.0
        %2052 = vmatpush1.msra.mxu0 0.0
        %2053 = vmatprep.subr.mxu0 0.0
        %2054 = vmatpush1.msra.mxu0 0.0
        %2055 = vmatprep.subr.mxu0 0.0
        %2056 = vmatpush1.msra.mxu0 0.0
        %2057 = vmatprep.subr.mxu0 0.0
        %2058 = vmatpush1.msra.mxu0 0.0
        %2059 = vmatprep.subr.mxu0 0.0
        %2060 = vmatpush1.msra.mxu0 0.0
        %2061 = vmatprep.subr.mxu0 0.0
        %2062 = vmatpush1.msra.mxu0 0.0
        %2063 = vmatprep.subr.mxu0 0.0
        %2064 = vmatpush1.msra.mxu0 0.0
        %2065 = vmatprep.subr.mxu0 0.0
        %2066 = vmatpush1.msra.mxu0 0.0
        %2067 = vmatprep.subr.mxu0 0.0
        %2068 = vmatpush1.msra.mxu0 0.0
        %2069 = vmatprep.subr.mxu0 0.0
        %2070 = vmatpush1.msra.mxu0 0.0
        %2071 = vmatprep.subr.mxu0 0.0
        %2072 = vmatpush1.msra.mxu0 0.0
        %2073 = vmatprep.subr.mxu0 0.0
        %2074 = vmatpush1.msra.mxu0 0.0
        %2075 = vmatprep.subr.mxu0 0.0
        %2076 = vmatpush1.msra.mxu0 0.0
        %2077 = vmatprep.subr.mxu0 0.0
        %2078 = vmatpush1.msra.mxu0 0.0
        %2079 = vmatprep.subr.mxu0 0.0
        %2080 = vmatpush1.msra.mxu0 0.0
        %2081 = vmatprep.subr.mxu0 0.0
        %2082 = vmatpush1.msra.mxu0 0.0
        %2083 = vmatprep.subr.mxu0 0.0
        %2084 = vmatpush1.msra.mxu0 0.0
        %2085 = vmatprep.subr.mxu0 0.0
        %2086 = vmatpush1.msra.mxu0 0.0
        %2087 = vmatprep.mubr.f32.mxu0 0.0
        %v2088 = vand.u32 %v192, 4294901760
        %v2089 = vsub.f32 %v192, %v2088
        %v2090 = vand.u32 %v2089, 4294901760
        %v2091 = vsub.f32 %v2089, %v2090
        %v2092 = vand.u32 %v2091, 4294901760
        %2093 = vmatmul.mubr.f32.gmra.mrb[0].mxu0 %v2092
        %v2094 = vpop.f32.mrb[0].mxu0
        %v2095 = vadd.f32 0.0, %v2094
        %v2096 = vpop.f32.mrb[0].mxu0
        %2097 = vmatprep.mubr.f32.mxu0 0.0
        %v2098 = vand.u32 %v195, 4294901760
        %v2099 = vsub.f32 %v195, %v2098
        %v2100 = vand.u32 %v2099, 4294901760
        %v2101 = vsub.f32 %v2099, %v2100
        %v2102 = vand.u32 %v2101, 4294901760
        %2103 = vmatmul.mubr.f32.gmra.mrb[0].mxu0 %v2102
        %v2104 = vpop.f32.mrb[0].mxu0
        %v2105 = vadd.f32 0.0, %v2104
        %v2106 = vpop.f32.mrb[0].mxu0
        %2107 = vdwg.mxu0
        %2108 = vmatprep.subr.mxu0 0.0
        %v2109 = vand.u32 %v2005, 4294901760
        %v2110 = vsub.f32 %v2005, %v2109
        %v2111 = vand.u32 %v2110, 4294901760
        %v2112 = vsub.f32 %v2110, %v2111
        %v2113 = vand.u32 %v2112, 4294901760
        %2114 = vmatpush1.msra.mxu0 %v2113
        %2115 = vmatprep.subr.mxu0 0.0
        %v2116 = vand.u32 %v2006, 4294901760
        %v2117 = vsub.f32 %v2006, %v2116
        %v2118 = vand.u32 %v2117, 4294901760
        %v2119 = vsub.f32 %v2117, %v2118
        %v2120 = vand.u32 %v2119, 4294901760
        %2121 = vmatpush1.msra.mxu0 %v2120
        %2122 = vmatprep.subr.mxu0 0.0
        %v2123 = vand.u32 %v2007, 4294901760
        %v2124 = vsub.f32 %v2007, %v2123
        %v2125 = vand.u32 %v2124, 4294901760
        %v2126 = vsub.f32 %v2124, %v2125
        %v2127 = vand.u32 %v2126, 4294901760
        %2128 = vmatpush1.msra.mxu0 %v2127
        %2129 = vmatprep.subr.mxu0 0.0
        %v2130 = vand.u32 %v2008, 4294901760
        %v2131 = vsub.f32 %v2008, %v2130
        %v2132 = vand.u32 %v2131, 4294901760
        %v2133 = vsub.f32 %v2131, %v2132
        %v2134 = vand.u32 %v2133, 4294901760
        %2135 = vmatpush1.msra.mxu0 %v2134
        %2136 = vmatprep.subr.mxu0 0.0
        %v2137 = vand.u32 %v2009, 4294901760
        %v2138 = vsub.f32 %v2009, %v2137
        %v2139 = vand.u32 %v2138, 4294901760
        %v2140 = vsub.f32 %v2138, %v2139
        %v2141 = vand.u32 %v2140, 4294901760
        %2142 = vmatpush1.msra.mxu0 %v2141
        %2143 = vmatprep.subr.mxu0 0.0
        %v2144 = vand.u32 %v2010, 4294901760
        %v2145 = vsub.f32 %v2010, %v2144
        %v2146 = vand.u32 %v2145, 4294901760
        %v2147 = vsub.f32 %v2145, %v2146
        %v2148 = vand.u32 %v2147, 4294901760
        %2149 = vmatpush1.msra.mxu0 %v2148
        %2150 = vmatprep.subr.mxu0 0.0
        %v2151 = vand.u32 %v2011, 4294901760
        %v2152 = vsub.f32 %v2011, %v2151
        %v2153 = vand.u32 %v2152, 4294901760
        %v2154 = vsub.f32 %v2152, %v2153
        %v2155 = vand.u32 %v2154, 4294901760
        %2156 = vmatpush1.msra.mxu0 %v2155
        %2157 = vmatprep.subr.mxu0 0.0
        %v2158 = vand.u32 %v2012, 4294901760
        %v2159 = vsub.f32 %v2012, %v2158
        %v2160 = vand.u32 %v2159, 4294901760
        %v2161 = vsub.f32 %v2159, %v2160
        %v2162 = vand.u32 %v2161, 4294901760
        %2163 = vmatpush1.msra.mxu0 %v2162
        %2164 = vmatprep.subr.mxu0 0.0
        %v2165 = vand.u32 %v2013, 4294901760
        %v2166 = vsub.f32 %v2013, %v2165
        %v2167 = vand.u32 %v2166, 4294901760
        %v2168 = vsub.f32 %v2166, %v2167
        %v2169 = vand.u32 %v2168, 4294901760
        %2170 = vmatpush1.msra.mxu0 %v2169
        %2171 = vmatprep.subr.mxu0 0.0
        %2172 = vmatpush1.msra.mxu0 0.0
        %2173 = vmatprep.subr.mxu0 0.0
        %2174 = vmatpush1.msra.mxu0 0.0
        %2175 = vmatprep.subr.mxu0 0.0
        %2176 = vmatpush1.msra.mxu0 0.0
        %2177 = vmatprep.subr.mxu0 0.0
        %2178 = vmatpush1.msra.mxu0 0.0
        %2179 = vmatprep.subr.mxu0 0.0
        %2180 = vmatpush1.msra.mxu0 0.0
        %2181 = vmatprep.subr.mxu0 0.0
        %2182 = vmatpush1.msra.mxu0 0.0
        %2183 = vmatprep.subr.mxu0 0.0
        %2184 = vmatpush1.msra.mxu0 0.0
        %2185 = vmatprep.subr.mxu0 0.0
        %2186 = vmatpush1.msra.mxu0 0.0
        %2187 = vmatprep.subr.mxu0 0.0
        %2188 = vmatpush1.msra.mxu0 0.0
        %2189 = vmatprep.subr.mxu0 0.0
        %2190 = vmatpush1.msra.mxu0 0.0
        %2191 = vmatprep.subr.mxu0 0.0
        %2192 = vmatpush1.msra.mxu0 0.0
        %2193 = vmatprep.subr.mxu0 0.0
        %2194 = vmatpush1.msra.mxu0 0.0
        %2195 = vmatprep.subr.mxu0 0.0
        %2196 = vmatpush1.msra.mxu0 0.0
        %2197 = vmatprep.subr.mxu0 0.0
        %2198 = vmatpush1.msra.mxu0 0.0
        %2199 = vmatprep.subr.mxu0 0.0
        %2200 = vmatpush1.msra.mxu0 0.0
        %2201 = vmatprep.subr.mxu0 0.0
        %2202 = vmatpush1.msra.mxu0 0.0
        %2203 = vmatprep.subr.mxu0 0.0
        %2204 = vmatpush1.msra.mxu0 0.0
        %2205 = vmatprep.subr.mxu0 0.0
        %2206 = vmatpush1.msra.mxu0 0.0
        %2207 = vmatprep.subr.mxu0 0.0
        %2208 = vmatpush1.msra.mxu0 0.0
        %2209 = vmatprep.subr.mxu0 0.0
        %2210 = vmatpush1.msra.mxu0 0.0
        %2211 = vmatprep.subr.mxu0 0.0
        %2212 = vmatpush1.msra.mxu0 0.0
        %2213 = vmatprep.subr.mxu0 0.0
        %2214 = vmatpush1.msra.mxu0 0.0
        %2215 = vmatprep.subr.mxu0 0.0
        %2216 = vmatpush1.msra.mxu0 0.0
        %2217 = vmatprep.mubr.f32.mxu0 0.0
        %v2218 = vand.u32 %v192, 4294901760
        %2219 = vmatmul.mubr.f32.gmra.mrb[0].mxu0 %v2218
        %v2220 = vpop.f32.mrb[0].mxu0
        %v2221 = vadd.f32 %v2095, %v2220
        %v2222 = vpop.f32.mrb[0].mxu0
        %2223 = vmatprep.mubr.f32.mxu0 0.0
        %v2224 = vand.u32 %v195, 4294901760
        %2225 = vmatmul.mubr.f32.gmra.mrb[0].mxu0 %v2224
        %v2226 = vpop.f32.mrb[0].mxu0
        %v2227 = vadd.f32 %v2105, %v2226
        %v2228 = vpop.f32.mrb[0].mxu0
        %2229 = vdwg.mxu0
        %2230 = vmatprep.subr.mxu0 0.0
        %v2231 = vand.u32 %v2005, 4294901760
        %v2232 = vsub.f32 %v2005, %v2231
        %2233 = vmatpush1.msra.mxu0 %v2232
        %2234 = vmatprep.subr.mxu0 0.0
        %v2235 = vand.u32 %v2006, 4294901760
        %v2236 = vsub.f32 %v2006, %v2235
        %2237 = vmatpush1.msra.mxu0 %v2236
        %2238 = vmatprep.subr.mxu0 0.0
        %v2239 = vand.u32 %v2007, 4294901760
        %v2240 = vsub.f32 %v2007, %v2239
        %2241 = vmatpush1.msra.mxu0 %v2240
        %2242 = vmatprep.subr.mxu0 0.0
        %v2243 = vand.u32 %v2008, 4294901760
        %v2244 = vsub.f32 %v2008, %v2243
        %2245 = vmatpush1.msra.mxu0 %v2244
        %2246 = vmatprep.subr.mxu0 0.0
        %v2247 = vand.u32 %v2009, 4294901760
        %v2248 = vsub.f32 %v2009, %v2247
        %2249 = vmatpush1.msra.mxu0 %v2248
        %2250 = vmatprep.subr.mxu0 0.0
        %v2251 = vand.u32 %v2010, 4294901760
        %v2252 = vsub.f32 %v2010, %v2251
        %2253 = vmatpush1.msra.mxu0 %v2252
        %2254 = vmatprep.subr.mxu0 0.0
        %v2255 = vand.u32 %v2011, 4294901760
        %v2256 = vsub.f32 %v2011, %v2255
        %2257 = vmatpush1.msra.mxu0 %v2256
        %2258 = vmatprep.subr.mxu0 0.0
        %v2259 = vand.u32 %v2012, 4294901760
        %v2260 = vsub.f32 %v2012, %v2259
        %2261 = vmatpush1.msra.mxu0 %v2260
        %2262 = vmatprep.subr.mxu0 0.0
        %v2263 = vand.u32 %v2013, 4294901760
        %v2264 = vsub.f32 %v2013, %v2263
        %2265 = vmatpush1.msra.mxu0 %v2264
        %2266 = vmatprep.subr.mxu0 0.0
        %2267 = vmatpush1.msra.mxu0 0.0
        %2268 = vmatprep.subr.mxu0 0.0
        %2269 = vmatpush1.msra.mxu0 0.0
        %2270 = vmatprep.subr.mxu0 0.0
        %2271 = vmatpush1.msra.mxu0 0.0
        %2272 = vmatprep.subr.mxu0 0.0
        %2273 = vmatpush1.msra.mxu0 0.0
        %2274 = vmatprep.subr.mxu0 0.0
        %2275 = vmatpush1.msra.mxu0 0.0
        %2276 = vmatprep.subr.mxu0 0.0
        %2277 = vmatpush1.msra.mxu0 0.0
        %2278 = vmatprep.subr.mxu0 0.0
        %2279 = vmatpush1.msra.mxu0 0.0
        %2280 = vmatprep.subr.mxu0 0.0
        %2281 = vmatpush1.msra.mxu0 0.0
        %2282 = vmatprep.subr.mxu0 0.0
        %2283 = vmatpush1.msra.mxu0 0.0
        %2284 = vmatprep.subr.mxu0 0.0
        %2285 = vmatpush1.msra.mxu0 0.0
        %2286 = vmatprep.subr.mxu0 0.0
        %2287 = vmatpush1.msra.mxu0 0.0
        %2288 = vmatprep.subr.mxu0 0.0
        %2289 = vmatpush1.msra.mxu0 0.0
        %2290 = vmatprep.subr.mxu0 0.0
        %2291 = vmatpush1.msra.mxu0 0.0
        %2292 = vmatprep.subr.mxu0 0.0
        %2293 = vmatpush1.msra.mxu0 0.0
        %2294 = vmatprep.subr.mxu0 0.0
        %2295 = vmatpush1.msra.mxu0 0.0
        %2296 = vmatprep.subr.mxu0 0.0
        %2297 = vmatpush1.msra.mxu0 0.0
        %2298 = vmatprep.subr.mxu0 0.0
        %2299 = vmatpush1.msra.mxu0 0.0
        %2300 = vmatprep.subr.mxu0 0.0
        %2301 = vmatpush1.msra.mxu0 0.0
        %2302 = vmatprep.subr.mxu0 0.0
        %2303 = vmatpush1.msra.mxu0 0.0
        %2304 = vmatprep.subr.mxu0 0.0
        %2305 = vmatpush1.msra.mxu0 0.0
        %2306 = vmatprep.subr.mxu0 0.0
        %2307 = vmatpush1.msra.mxu0 0.0
        %2308 = vmatprep.subr.mxu0 0.0
        %2309 = vmatpush1.msra.mxu0 0.0
        %2310 = vmatprep.subr.mxu0 0.0
        %2311 = vmatpush1.msra.mxu0 0.0
        %2312 = vmatprep.mubr.f32.mxu0 0.0
        %v2313 = vand.u32 %v192, 4294901760
        %v2314 = vsub.f32 %v192, %v2313
        %2315 = vmatmul.mubr.f32.gmra.mrb[0].mxu0 %v2314
        %v2316 = vpop.f32.mrb[0].mxu0
        %v2317 = vadd.f32 %v2221, %v2316
        %v2318 = vpop.f32.mrb[0].mxu0
        %2319 = vmatprep.mubr.f32.mxu0 0.0
        %v2320 = vand.u32 %v195, 4294901760
        %v2321 = vsub.f32 %v195, %v2320
        %2322 = vmatmul.mubr.f32.gmra.mrb[0].mxu0 %v2321
        %v2323 = vpop.f32.mrb[0].mxu0
        %v2324 = vadd.f32 %v2227, %v2323
        %v2325 = vpop.f32.mrb[0].mxu0
        %2326 = vdwg.mxu0
        %2327 = vmatprep.subr.mxu0 0.0
        %v2328 = vand.u32 %v2005, 4294901760
        %2329 = vmatpush1.msra.mxu0 %v2328
        %2330 = vmatprep.subr.mxu0 0.0
        %v2331 = vand.u32 %v2006, 4294901760
        %2332 = vmatpush1.msra.mxu0 %v2331
        %2333 = vmatprep.subr.mxu0 0.0
        %v2334 = vand.u32 %v2007, 4294901760
        %2335 = vmatpush1.msra.mxu0 %v2334
        %2336 = vmatprep.subr.mxu0 0.0
        %v2337 = vand.u32 %v2008, 4294901760
        %2338 = vmatpush1.msra.mxu0 %v2337
        %2339 = vmatprep.subr.mxu0 0.0
        %v2340 = vand.u32 %v2009, 4294901760
        %2341 = vmatpush1.msra.mxu0 %v2340
        %2342 = vmatprep.subr.mxu0 0.0
        %v2343 = vand.u32 %v2010, 4294901760
        %2344 = vmatpush1.msra.mxu0 %v2343
        %2345 = vmatprep.subr.mxu0 0.0
        %v2346 = vand.u32 %v2011, 4294901760
        %2347 = vmatpush1.msra.mxu0 %v2346
        %2348 = vmatprep.subr.mxu0 0.0
        %v2349 = vand.u32 %v2012, 4294901760
        %2350 = vmatpush1.msra.mxu0 %v2349
        %2351 = vmatprep.subr.mxu0 0.0
        %v2352 = vand.u32 %v2013, 4294901760
        %2353 = vmatpush1.msra.mxu0 %v2352
        %2354 = vmatprep.subr.mxu0 0.0
        %2355 = vmatpush1.msra.mxu0 0.0
        %2356 = vmatprep.subr.mxu0 0.0
        %2357 = vmatpush1.msra.mxu0 0.0
        %2358 = vmatprep.subr.mxu0 0.0
        %2359 = vmatpush1.msra.mxu0 0.0
        %2360 = vmatprep.subr.mxu0 0.0
        %2361 = vmatpush1.msra.mxu0 0.0
        %2362 = vmatprep.subr.mxu0 0.0
        %2363 = vmatpush1.msra.mxu0 0.0
        %2364 = vmatprep.subr.mxu0 0.0
        %2365 = vmatpush1.msra.mxu0 0.0
        %2366 = vmatprep.subr.mxu0 0.0
        %2367 = vmatpush1.msra.mxu0 0.0
        %2368 = vmatprep.subr.mxu0 0.0
        %2369 = vmatpush1.msra.mxu0 0.0
        %2370 = vmatprep.subr.mxu0 0.0
        %2371 = vmatpush1.msra.mxu0 0.0
        %2372 = vmatprep.subr.mxu0 0.0
        %2373 = vmatpush1.msra.mxu0 0.0
        %2374 = vmatprep.subr.mxu0 0.0
        %2375 = vmatpush1.msra.mxu0 0.0
        %2376 = vmatprep.subr.mxu0 0.0
        %2377 = vmatpush1.msra.mxu0 0.0
        %2378 = vmatprep.subr.mxu0 0.0
        %2379 = vmatpush1.msra.mxu0 0.0
        %2380 = vmatprep.subr.mxu0 0.0
        %2381 = vmatpush1.msra.mxu0 0.0
        %2382 = vmatprep.subr.mxu0 0.0
        %2383 = vmatpush1.msra.mxu0 0.0
        %2384 = vmatprep.subr.mxu0 0.0
        %2385 = vmatpush1.msra.mxu0 0.0
        %2386 = vmatprep.subr.mxu0 0.0
        %2387 = vmatpush1.msra.mxu0 0.0
        %2388 = vmatprep.subr.mxu0 0.0
        %2389 = vmatpush1.msra.mxu0 0.0
        %2390 = vmatprep.subr.mxu0 0.0
        %2391 = vmatpush1.msra.mxu0 0.0
        %2392 = vmatprep.subr.mxu0 0.0
        %2393 = vmatpush1.msra.mxu0 0.0
        %2394 = vmatprep.subr.mxu0 0.0
        %2395 = vmatpush1.msra.mxu0 0.0
        %2396 = vmatprep.subr.mxu0 0.0
        %2397 = vmatpush1.msra.mxu0 0.0
        %2398 = vmatprep.subr.mxu0 0.0
        %2399 = vmatpush1.msra.mxu0 0.0
        %2400 = vmatprep.mubr.f32.mxu0 0.0
        %v2401 = vand.u32 %v192, 4294901760
        %v2402 = vsub.f32 %v192, %v2401
        %v2403 = vand.u32 %v2402, 4294901760
        %2404 = vmatmul.mubr.f32.gmra.mrb[0].mxu0 %v2403
        %v2405 = vpop.f32.mrb[0].mxu0
        %v2406 = vadd.f32 %v2317, %v2405
        %v2407 = vpop.f32.mrb[0].mxu0
        %2408 = vmatprep.mubr.f32.mxu0 0.0
        %v2409 = vand.u32 %v195, 4294901760
        %v2410 = vsub.f32 %v195, %v2409
        %v2411 = vand.u32 %v2410, 4294901760
        %2412 = vmatmul.mubr.f32.gmra.mrb[0].mxu0 %v2411
        %v2413 = vpop.f32.mrb[0].mxu0
        %v2414 = vadd.f32 %v2324, %v2413
        %v2415 = vpop.f32.mrb[0].mxu0
        %2416 = vdwg.mxu0
        %2417 = vmatprep.subr.mxu0 0.0
        %v2418 = vand.u32 %v2005, 4294901760
        %v2419 = vsub.f32 %v2005, %v2418
        %v2420 = vand.u32 %v2419, 4294901760
        %2421 = vmatpush1.msra.mxu0 %v2420
        %2422 = vmatprep.subr.mxu0 0.0
        %v2423 = vand.u32 %v2006, 4294901760
        %v2424 = vsub.f32 %v2006, %v2423
        %v2425 = vand.u32 %v2424, 4294901760
        %2426 = vmatpush1.msra.mxu0 %v2425
        %2427 = vmatprep.subr.mxu0 0.0
        %v2428 = vand.u32 %v2007, 4294901760
        %v2429 = vsub.f32 %v2007, %v2428
        %v2430 = vand.u32 %v2429, 4294901760
        %2431 = vmatpush1.msra.mxu0 %v2430
        %2432 = vmatprep.subr.mxu0 0.0
        %v2433 = vand.u32 %v2008, 4294901760
        %v2434 = vsub.f32 %v2008, %v2433
        %v2435 = vand.u32 %v2434, 4294901760
        %2436 = vmatpush1.msra.mxu0 %v2435
        %2437 = vmatprep.subr.mxu0 0.0
        %v2438 = vand.u32 %v2009, 4294901760
        %v2439 = vsub.f32 %v2009, %v2438
        %v2440 = vand.u32 %v2439, 4294901760
        %2441 = vmatpush1.msra.mxu0 %v2440
        %2442 = vmatprep.subr.mxu0 0.0
        %v2443 = vand.u32 %v2010, 4294901760
        %v2444 = vsub.f32 %v2010, %v2443
        %v2445 = vand.u32 %v2444, 4294901760
        %2446 = vmatpush1.msra.mxu0 %v2445
        %2447 = vmatprep.subr.mxu0 0.0
        %v2448 = vand.u32 %v2011, 4294901760
        %v2449 = vsub.f32 %v2011, %v2448
        %v2450 = vand.u32 %v2449, 4294901760
        %2451 = vmatpush1.msra.mxu0 %v2450
        %2452 = vmatprep.subr.mxu0 0.0
        %v2453 = vand.u32 %v2012, 4294901760
        %v2454 = vsub.f32 %v2012, %v2453
        %v2455 = vand.u32 %v2454, 4294901760
        %2456 = vmatpush1.msra.mxu0 %v2455
        %2457 = vmatprep.subr.mxu0 0.0
        %v2458 = vand.u32 %v2013, 4294901760
        %v2459 = vsub.f32 %v2013, %v2458
        %v2460 = vand.u32 %v2459, 4294901760
        %2461 = vmatpush1.msra.mxu0 %v2460
        %2462 = vmatprep.subr.mxu0 0.0
        %2463 = vmatpush1.msra.mxu0 0.0
        %2464 = vmatprep.subr.mxu0 0.0
        %2465 = vmatpush1.msra.mxu0 0.0
        %2466 = vmatprep.subr.mxu0 0.0
        %2467 = vmatpush1.msra.mxu0 0.0
        %2468 = vmatprep.subr.mxu0 0.0
        %2469 = vmatpush1.msra.mxu0 0.0
        %2470 = vmatprep.subr.mxu0 0.0
        %2471 = vmatpush1.msra.mxu0 0.0
        %2472 = vmatprep.subr.mxu0 0.0
        %2473 = vmatpush1.msra.mxu0 0.0
        %2474 = vmatprep.subr.mxu0 0.0
        %2475 = vmatpush1.msra.mxu0 0.0
        %2476 = vmatprep.subr.mxu0 0.0
        %2477 = vmatpush1.msra.mxu0 0.0
        %2478 = vmatprep.subr.mxu0 0.0
        %2479 = vmatpush1.msra.mxu0 0.0
        %2480 = vmatprep.subr.mxu0 0.0
        %2481 = vmatpush1.msra.mxu0 0.0
        %2482 = vmatprep.subr.mxu0 0.0
        %2483 = vmatpush1.msra.mxu0 0.0
        %2484 = vmatprep.subr.mxu0 0.0
        %2485 = vmatpush1.msra.mxu0 0.0
        %2486 = vmatprep.subr.mxu0 0.0
        %2487 = vmatpush1.msra.mxu0 0.0
        %2488 = vmatprep.subr.mxu0 0.0
        %2489 = vmatpush1.msra.mxu0 0.0
        %2490 = vmatprep.subr.mxu0 0.0
        %2491 = vmatpush1.msra.mxu0 0.0
        %2492 = vmatprep.subr.mxu0 0.0
        %2493 = vmatpush1.msra.mxu0 0.0
        %2494 = vmatprep.subr.mxu0 0.0
        %2495 = vmatpush1.msra.mxu0 0.0
        %2496 = vmatprep.subr.mxu0 0.0
        %2497 = vmatpush1.msra.mxu0 0.0
        %2498 = vmatprep.subr.mxu0 0.0
        %2499 = vmatpush1.msra.mxu0 0.0
        %2500 = vmatprep.subr.mxu0 0.0
        %2501 = vmatpush1.msra.mxu0 0.0
        %2502 = vmatprep.subr.mxu0 0.0
        %2503 = vmatpush1.msra.mxu0 0.0
        %2504 = vmatprep.subr.mxu0 0.0
        %2505 = vmatpush1.msra.mxu0 0.0
        %2506 = vmatprep.subr.mxu0 0.0
        %2507 = vmatpush1.msra.mxu0 0.0
        %2508 = vmatprep.mubr.f32.mxu0 0.0
        %v2509 = vand.u32 %v192, 4294901760
        %2510 = vmatmul.mubr.f32.gmra.mrb[0].mxu0 %v2509
        %v2511 = vpop.f32.mrb[0].mxu0
        %v2512 = vadd.f32 %v2406, %v2511
        %v2513 = vpop.f32.mrb[0].mxu0
        %2514 = vmatprep.mubr.f32.mxu0 0.0
        %v2515 = vand.u32 %v195, 4294901760
        %2516 = vmatmul.mubr.f32.gmra.mrb[0].mxu0 %v2515
        %v2517 = vpop.f32.mrb[0].mxu0
        %v2518 = vadd.f32 %v2414, %v2517
        %v2519 = vpop.f32.mrb[0].mxu0
        %2520 = vdwg.mxu0
        %2521 = vmatprep.subr.mxu0 0.0
        %v2522 = vand.u32 %v2005, 4294901760
        %2523 = vmatpush1.msra.mxu0 %v2522
        %2524 = vmatprep.subr.mxu0 0.0
        %v2525 = vand.u32 %v2006, 4294901760
        %2526 = vmatpush1.msra.mxu0 %v2525
        %2527 = vmatprep.subr.mxu0 0.0
        %v2528 = vand.u32 %v2007, 4294901760
        %2529 = vmatpush1.msra.mxu0 %v2528
        %2530 = vmatprep.subr.mxu0 0.0
        %v2531 = vand.u32 %v2008, 4294901760
        %2532 = vmatpush1.msra.mxu0 %v2531
        %2533 = vmatprep.subr.mxu0 0.0
        %v2534 = vand.u32 %v2009, 4294901760
        %2535 = vmatpush1.msra.mxu0 %v2534
        %2536 = vmatprep.subr.mxu0 0.0
        %v2537 = vand.u32 %v2010, 4294901760
        %2538 = vmatpush1.msra.mxu0 %v2537
        %2539 = vmatprep.subr.mxu0 0.0
        %v2540 = vand.u32 %v2011, 4294901760
        %2541 = vmatpush1.msra.mxu0 %v2540
        %2542 = vmatprep.subr.mxu0 0.0
        %v2543 = vand.u32 %v2012, 4294901760
        %2544 = vmatpush1.msra.mxu0 %v2543
        %2545 = vmatprep.subr.mxu0 0.0
        %v2546 = vand.u32 %v2013, 4294901760
        %2547 = vmatpush1.msra.mxu0 %v2546
        %2548 = vmatprep.subr.mxu0 0.0
        %2549 = vmatpush1.msra.mxu0 0.0
        %2550 = vmatprep.subr.mxu0 0.0
        %2551 = vmatpush1.msra.mxu0 0.0
        %2552 = vmatprep.subr.mxu0 0.0
        %2553 = vmatpush1.msra.mxu0 0.0
        %2554 = vmatprep.subr.mxu0 0.0
        %2555 = vmatpush1.msra.mxu0 0.0
        %2556 = vmatprep.subr.mxu0 0.0
        %2557 = vmatpush1.msra.mxu0 0.0
        %2558 = vmatprep.subr.mxu0 0.0
        %2559 = vmatpush1.msra.mxu0 0.0
        %2560 = vmatprep.subr.mxu0 0.0
        %2561 = vmatpush1.msra.mxu0 0.0
        %2562 = vmatprep.subr.mxu0 0.0
        %2563 = vmatpush1.msra.mxu0 0.0
        %2564 = vmatprep.subr.mxu0 0.0
        %2565 = vmatpush1.msra.mxu0 0.0
        %2566 = vmatprep.subr.mxu0 0.0
        %2567 = vmatpush1.msra.mxu0 0.0
        %2568 = vmatprep.subr.mxu0 0.0
        %2569 = vmatpush1.msra.mxu0 0.0
        %2570 = vmatprep.subr.mxu0 0.0
        %2571 = vmatpush1.msra.mxu0 0.0
        %2572 = vmatprep.subr.mxu0 0.0
        %2573 = vmatpush1.msra.mxu0 0.0
        %2574 = vmatprep.subr.mxu0 0.0
        %2575 = vmatpush1.msra.mxu0 0.0
        %2576 = vmatprep.subr.mxu0 0.0
        %2577 = vmatpush1.msra.mxu0 0.0
        %2578 = vmatprep.subr.mxu0 0.0
        %2579 = vmatpush1.msra.mxu0 0.0
        %2580 = vmatprep.subr.mxu0 0.0
        %2581 = vmatpush1.msra.mxu0 0.0
        %2582 = vmatprep.subr.mxu0 0.0
        %2583 = vmatpush1.msra.mxu0 0.0
        %2584 = vmatprep.subr.mxu0 0.0
        %2585 = vmatpush1.msra.mxu0 0.0
        %2586 = vmatprep.subr.mxu0 0.0
        %2587 = vmatpush1.msra.mxu0 0.0
        %2588 = vmatprep.subr.mxu0 0.0
        %2589 = vmatpush1.msra.mxu0 0.0
        %2590 = vmatprep.subr.mxu0 0.0
        %2591 = vmatpush1.msra.mxu0 0.0
        %2592 = vmatprep.subr.mxu0 0.0
        %2593 = vmatpush1.msra.mxu0 0.0
        %2594 = vmatprep.mubr.f32.mxu0 0.0
        %v2595 = vand.u32 %v192, 4294901760
        %2596 = vmatmul.mubr.f32.gmra.mrb[0].mxu0 %v2595
        %v2597 = vpop.f32.mrb[0].mxu0
        %v2598 = vadd.f32 %v2512, %v2597
        %v2599 = vpop.f32.mrb[0].mxu0
        %2600 = vmatprep.mubr.f32.mxu0 0.0
        %v2601 = vand.u32 %v195, 4294901760
        %2602 = vmatmul.mubr.f32.gmra.mrb[0].mxu0 %v2601
        %v2603 = vpop.f32.mrb[0].mxu0
        %v2604 = vadd.f32 %v2518, %v2603
        %v2605 = vpop.f32.mrb[0].mxu0
        %2606 = vdwg.mxu0
        %s2607 = scalar_lea.vmem %s176, 24 [#allocation7]
        %2608 = vst.msk [vmem:[%s2607] sm:$0xff] %vm190, %v2598
        %2609 = vst.msk [vmem:[%s2607 + $0x40] sm:$0xff] %vm190, %v2604
        %s2610 = scalar_lea.vmem [#allocation5], 288
        %v2611 = vld [vmem:[%s2610] sm:$0xff]
        %v2612 = vld [vmem:[%s2610 + $0x8] sm:$0xff]
        %v2613 = vld [vmem:[%s2610 + $0x10] sm:$0xff]
        %v2614 = vld [vmem:[%s2610 + $0x18] sm:$0xff]
        %v2615 = vld [vmem:[%s2610 + $0x20] sm:$0xff]
        %v2616 = vld [vmem:[%s2610 + $0x28] sm:$0xff]
        %v2617 = vld [vmem:[%s2610 + $0x30] sm:$0xff]
        %v2618 = vld [vmem:[%s2610 + $0x38] sm:$0xff]
        %v2619 = vld [vmem:[%s2610 + $0x40] sm:$0xff]
        %2620 = vmatprep.subr.mxu0 0.0
        %v2621 = vand.u32 %v2611, 4294901760
        %2622 = vmatpush1.msra.mxu0 %v2621
        %2623 = vmatprep.subr.mxu0 0.0
        %v2624 = vand.u32 %v2612, 4294901760
        %2625 = vmatpush1.msra.mxu0 %v2624
        %2626 = vmatprep.subr.mxu0 0.0
        %v2627 = vand.u32 %v2613, 4294901760
        %2628 = vmatpush1.msra.mxu0 %v2627
        %2629 = vmatprep.subr.mxu0 0.0
        %v2630 = vand.u32 %v2614, 4294901760
        %2631 = vmatpush1.msra.mxu0 %v2630
        %2632 = vmatprep.subr.mxu0 0.0
        %v2633 = vand.u32 %v2615, 4294901760
        %2634 = vmatpush1.msra.mxu0 %v2633
        %2635 = vmatprep.subr.mxu0 0.0
        %v2636 = vand.u32 %v2616, 4294901760
        %2637 = vmatpush1.msra.mxu0 %v2636
        %2638 = vmatprep.subr.mxu0 0.0
        %v2639 = vand.u32 %v2617, 4294901760
        %2640 = vmatpush1.msra.mxu0 %v2639
        %2641 = vmatprep.subr.mxu0 0.0
        %v2642 = vand.u32 %v2618, 4294901760
        %2643 = vmatpush1.msra.mxu0 %v2642
        %2644 = vmatprep.subr.mxu0 0.0
        %v2645 = vand.u32 %v2619, 4294901760
        %2646 = vmatpush1.msra.mxu0 %v2645
        %2647 = vmatprep.subr.mxu0 0.0
        %2648 = vmatpush1.msra.mxu0 0.0
        %2649 = vmatprep.subr.mxu0 0.0
        %2650 = vmatpush1.msra.mxu0 0.0
        %2651 = vmatprep.subr.mxu0 0.0
        %2652 = vmatpush1.msra.mxu0 0.0
        %2653 = vmatprep.subr.mxu0 0.0
        %2654 = vmatpush1.msra.mxu0 0.0
        %2655 = vmatprep.subr.mxu0 0.0
        %2656 = vmatpush1.msra.mxu0 0.0
        %2657 = vmatprep.subr.mxu0 0.0
        %2658 = vmatpush1.msra.mxu0 0.0
        %2659 = vmatprep.subr.mxu0 0.0
        %2660 = vmatpush1.msra.mxu0 0.0
        %2661 = vmatprep.subr.mxu0 0.0
        %2662 = vmatpush1.msra.mxu0 0.0
        %2663 = vmatprep.subr.mxu0 0.0
        %2664 = vmatpush1.msra.mxu0 0.0
        %2665 = vmatprep.subr.mxu0 0.0
        %2666 = vmatpush1.msra.mxu0 0.0
        %2667 = vmatprep.subr.mxu0 0.0
        %2668 = vmatpush1.msra.mxu0 0.0
        %2669 = vmatprep.subr.mxu0 0.0
        %2670 = vmatpush1.msra.mxu0 0.0
        %2671 = vmatprep.subr.mxu0 0.0
        %2672 = vmatpush1.msra.mxu0 0.0
        %2673 = vmatprep.subr.mxu0 0.0
        %2674 = vmatpush1.msra.mxu0 0.0
        %2675 = vmatprep.subr.mxu0 0.0
        %2676 = vmatpush1.msra.mxu0 0.0
        %2677 = vmatprep.subr.mxu0 0.0
        %2678 = vmatpush1.msra.mxu0 0.0
        %2679 = vmatprep.subr.mxu0 0.0
        %2680 = vmatpush1.msra.mxu0 0.0
        %2681 = vmatprep.subr.mxu0 0.0
        %2682 = vmatpush1.msra.mxu0 0.0
        %2683 = vmatprep.subr.mxu0 0.0
        %2684 = vmatpush1.msra.mxu0 0.0
        %2685 = vmatprep.subr.mxu0 0.0
        %2686 = vmatpush1.msra.mxu0 0.0
        %2687 = vmatprep.subr.mxu0 0.0
        %2688 = vmatpush1.msra.mxu0 0.0
        %2689 = vmatprep.subr.mxu0 0.0
        %2690 = vmatpush1.msra.mxu0 0.0
        %2691 = vmatprep.subr.mxu0 0.0
        %2692 = vmatpush1.msra.mxu0 0.0
        %2693 = vmatprep.mubr.f32.mxu0 0.0
        %v2694 = vand.u32 %v192, 4294901760
        %v2695 = vsub.f32 %v192, %v2694
        %v2696 = vand.u32 %v2695, 4294901760
        %v2697 = vsub.f32 %v2695, %v2696
        %v2698 = vand.u32 %v2697, 4294901760
        %2699 = vmatmul.mubr.f32.gmra.mrb[0].mxu0 %v2698
        %v2700 = vpop.f32.mrb[0].mxu0
        %v2701 = vadd.f32 0.0, %v2700
        %v2702 = vpop.f32.mrb[0].mxu0
        %2703 = vmatprep.mubr.f32.mxu0 0.0
        %v2704 = vand.u32 %v195, 4294901760
        %v2705 = vsub.f32 %v195, %v2704
        %v2706 = vand.u32 %v2705, 4294901760
        %v2707 = vsub.f32 %v2705, %v2706
        %v2708 = vand.u32 %v2707, 4294901760
        %2709 = vmatmul.mubr.f32.gmra.mrb[0].mxu0 %v2708
        %v2710 = vpop.f32.mrb[0].mxu0
        %v2711 = vadd.f32 0.0, %v2710
        %v2712 = vpop.f32.mrb[0].mxu0
        %2713 = vdwg.mxu0
        %2714 = vmatprep.subr.mxu0 0.0
        %v2715 = vand.u32 %v2611, 4294901760
        %v2716 = vsub.f32 %v2611, %v2715
        %v2717 = vand.u32 %v2716, 4294901760
        %v2718 = vsub.f32 %v2716, %v2717
        %v2719 = vand.u32 %v2718, 4294901760
        %2720 = vmatpush1.msra.mxu0 %v2719
        %2721 = vmatprep.subr.mxu0 0.0
        %v2722 = vand.u32 %v2612, 4294901760
        %v2723 = vsub.f32 %v2612, %v2722
        %v2724 = vand.u32 %v2723, 4294901760
        %v2725 = vsub.f32 %v2723, %v2724
        %v2726 = vand.u32 %v2725, 4294901760
        %2727 = vmatpush1.msra.mxu0 %v2726
        %2728 = vmatprep.subr.mxu0 0.0
        %v2729 = vand.u32 %v2613, 4294901760
        %v2730 = vsub.f32 %v2613, %v2729
        %v2731 = vand.u32 %v2730, 4294901760
        %v2732 = vsub.f32 %v2730, %v2731
        %v2733 = vand.u32 %v2732, 4294901760
        %2734 = vmatpush1.msra.mxu0 %v2733
        %2735 = vmatprep.subr.mxu0 0.0
        %v2736 = vand.u32 %v2614, 4294901760
        %v2737 = vsub.f32 %v2614, %v2736
        %v2738 = vand.u32 %v2737, 4294901760
        %v2739 = vsub.f32 %v2737, %v2738
        %v2740 = vand.u32 %v2739, 4294901760
        %2741 = vmatpush1.msra.mxu0 %v2740
        %2742 = vmatprep.subr.mxu0 0.0
        %v2743 = vand.u32 %v2615, 4294901760
        %v2744 = vsub.f32 %v2615, %v2743
        %v2745 = vand.u32 %v2744, 4294901760
        %v2746 = vsub.f32 %v2744, %v2745
        %v2747 = vand.u32 %v2746, 4294901760
        %2748 = vmatpush1.msra.mxu0 %v2747
        %2749 = vmatprep.subr.mxu0 0.0
        %v2750 = vand.u32 %v2616, 4294901760
        %v2751 = vsub.f32 %v2616, %v2750
        %v2752 = vand.u32 %v2751, 4294901760
        %v2753 = vsub.f32 %v2751, %v2752
        %v2754 = vand.u32 %v2753, 4294901760
        %2755 = vmatpush1.msra.mxu0 %v2754
        %2756 = vmatprep.subr.mxu0 0.0
        %v2757 = vand.u32 %v2617, 4294901760
        %v2758 = vsub.f32 %v2617, %v2757
        %v2759 = vand.u32 %v2758, 4294901760
        %v2760 = vsub.f32 %v2758, %v2759
        %v2761 = vand.u32 %v2760, 4294901760
        %2762 = vmatpush1.msra.mxu0 %v2761
        %2763 = vmatprep.subr.mxu0 0.0
        %v2764 = vand.u32 %v2618, 4294901760
        %v2765 = vsub.f32 %v2618, %v2764
        %v2766 = vand.u32 %v2765, 4294901760
        %v2767 = vsub.f32 %v2765, %v2766
        %v2768 = vand.u32 %v2767, 4294901760
        %2769 = vmatpush1.msra.mxu0 %v2768
        %2770 = vmatprep.subr.mxu0 0.0
        %v2771 = vand.u32 %v2619, 4294901760
        %v2772 = vsub.f32 %v2619, %v2771
        %v2773 = vand.u32 %v2772, 4294901760
        %v2774 = vsub.f32 %v2772, %v2773
        %v2775 = vand.u32 %v2774, 4294901760
        %2776 = vmatpush1.msra.mxu0 %v2775
        %2777 = vmatprep.subr.mxu0 0.0
        %2778 = vmatpush1.msra.mxu0 0.0
        %2779 = vmatprep.subr.mxu0 0.0
        %2780 = vmatpush1.msra.mxu0 0.0
        %2781 = vmatprep.subr.mxu0 0.0
        %2782 = vmatpush1.msra.mxu0 0.0
        %2783 = vmatprep.subr.mxu0 0.0
        %2784 = vmatpush1.msra.mxu0 0.0
        %2785 = vmatprep.subr.mxu0 0.0
        %2786 = vmatpush1.msra.mxu0 0.0
        %2787 = vmatprep.subr.mxu0 0.0
        %2788 = vmatpush1.msra.mxu0 0.0
        %2789 = vmatprep.subr.mxu0 0.0
        %2790 = vmatpush1.msra.mxu0 0.0
        %2791 = vmatprep.subr.mxu0 0.0
        %2792 = vmatpush1.msra.mxu0 0.0
        %2793 = vmatprep.subr.mxu0 0.0
        %2794 = vmatpush1.msra.mxu0 0.0
        %2795 = vmatprep.subr.mxu0 0.0
        %2796 = vmatpush1.msra.mxu0 0.0
        %2797 = vmatprep.subr.mxu0 0.0
        %2798 = vmatpush1.msra.mxu0 0.0
        %2799 = vmatprep.subr.mxu0 0.0
        %2800 = vmatpush1.msra.mxu0 0.0
        %2801 = vmatprep.subr.mxu0 0.0
        %2802 = vmatpush1.msra.mxu0 0.0
        %2803 = vmatprep.subr.mxu0 0.0
        %2804 = vmatpush1.msra.mxu0 0.0
        %2805 = vmatprep.subr.mxu0 0.0
        %2806 = vmatpush1.msra.mxu0 0.0
        %2807 = vmatprep.subr.mxu0 0.0
        %2808 = vmatpush1.msra.mxu0 0.0
        %2809 = vmatprep.subr.mxu0 0.0
        %2810 = vmatpush1.msra.mxu0 0.0
        %2811 = vmatprep.subr.mxu0 0.0
        %2812 = vmatpush1.msra.mxu0 0.0
        %2813 = vmatprep.subr.mxu0 0.0
        %2814 = vmatpush1.msra.mxu0 0.0
        %2815 = vmatprep.subr.mxu0 0.0
        %2816 = vmatpush1.msra.mxu0 0.0
        %2817 = vmatprep.subr.mxu0 0.0
        %2818 = vmatpush1.msra.mxu0 0.0
        %2819 = vmatprep.subr.mxu0 0.0
        %2820 = vmatpush1.msra.mxu0 0.0
        %2821 = vmatprep.subr.mxu0 0.0
        %2822 = vmatpush1.msra.mxu0 0.0
        %2823 = vmatprep.mubr.f32.mxu0 0.0
        %v2824 = vand.u32 %v192, 4294901760
        %2825 = vmatmul.mubr.f32.gmra.mrb[0].mxu0 %v2824
        %v2826 = vpop.f32.mrb[0].mxu0
        %v2827 = vadd.f32 %v2701, %v2826
        %v2828 = vpop.f32.mrb[0].mxu0
        %2829 = vmatprep.mubr.f32.mxu0 0.0
        %v2830 = vand.u32 %v195, 4294901760
        %2831 = vmatmul.mubr.f32.gmra.mrb[0].mxu0 %v2830
        %v2832 = vpop.f32.mrb[0].mxu0
        %v2833 = vadd.f32 %v2711, %v2832
        %v2834 = vpop.f32.mrb[0].mxu0
        %2835 = vdwg.mxu0
        %2836 = vmatprep.subr.mxu0 0.0
        %v2837 = vand.u32 %v2611, 4294901760
        %v2838 = vsub.f32 %v2611, %v2837
        %2839 = vmatpush1.msra.mxu0 %v2838
        %2840 = vmatprep.subr.mxu0 0.0
        %v2841 = vand.u32 %v2612, 4294901760
        %v2842 = vsub.f32 %v2612, %v2841
        %2843 = vmatpush1.msra.mxu0 %v2842
        %2844 = vmatprep.subr.mxu0 0.0
        %v2845 = vand.u32 %v2613, 4294901760
        %v2846 = vsub.f32 %v2613, %v2845
        %2847 = vmatpush1.msra.mxu0 %v2846
        %2848 = vmatprep.subr.mxu0 0.0
        %v2849 = vand.u32 %v2614, 4294901760
        %v2850 = vsub.f32 %v2614, %v2849
        %2851 = vmatpush1.msra.mxu0 %v2850
        %2852 = vmatprep.subr.mxu0 0.0
        %v2853 = vand.u32 %v2615, 4294901760
        %v2854 = vsub.f32 %v2615, %v2853
        %2855 = vmatpush1.msra.mxu0 %v2854
        %2856 = vmatprep.subr.mxu0 0.0
        %v2857 = vand.u32 %v2616, 4294901760
        %v2858 = vsub.f32 %v2616, %v2857
        %2859 = vmatpush1.msra.mxu0 %v2858
        %2860 = vmatprep.subr.mxu0 0.0
        %v2861 = vand.u32 %v2617, 4294901760
        %v2862 = vsub.f32 %v2617, %v2861
        %2863 = vmatpush1.msra.mxu0 %v2862
        %2864 = vmatprep.subr.mxu0 0.0
        %v2865 = vand.u32 %v2618, 4294901760
        %v2866 = vsub.f32 %v2618, %v2865
        %2867 = vmatpush1.msra.mxu0 %v2866
        %2868 = vmatprep.subr.mxu0 0.0
        %v2869 = vand.u32 %v2619, 4294901760
        %v2870 = vsub.f32 %v2619, %v2869
        %2871 = vmatpush1.msra.mxu0 %v2870
        %2872 = vmatprep.subr.mxu0 0.0
        %2873 = vmatpush1.msra.mxu0 0.0
        %2874 = vmatprep.subr.mxu0 0.0
        %2875 = vmatpush1.msra.mxu0 0.0
        %2876 = vmatprep.subr.mxu0 0.0
        %2877 = vmatpush1.msra.mxu0 0.0
        %2878 = vmatprep.subr.mxu0 0.0
        %2879 = vmatpush1.msra.mxu0 0.0
        %2880 = vmatprep.subr.mxu0 0.0
        %2881 = vmatpush1.msra.mxu0 0.0
        %2882 = vmatprep.subr.mxu0 0.0
        %2883 = vmatpush1.msra.mxu0 0.0
        %2884 = vmatprep.subr.mxu0 0.0
        %2885 = vmatpush1.msra.mxu0 0.0
        %2886 = vmatprep.subr.mxu0 0.0
        %2887 = vmatpush1.msra.mxu0 0.0
        %2888 = vmatprep.subr.mxu0 0.0
        %2889 = vmatpush1.msra.mxu0 0.0
        %2890 = vmatprep.subr.mxu0 0.0
        %2891 = vmatpush1.msra.mxu0 0.0
        %2892 = vmatprep.subr.mxu0 0.0
        %2893 = vmatpush1.msra.mxu0 0.0
        %2894 = vmatprep.subr.mxu0 0.0
        %2895 = vmatpush1.msra.mxu0 0.0
        %2896 = vmatprep.subr.mxu0 0.0
        %2897 = vmatpush1.msra.mxu0 0.0
        %2898 = vmatprep.subr.mxu0 0.0
        %2899 = vmatpush1.msra.mxu0 0.0
        %2900 = vmatprep.subr.mxu0 0.0
        %2901 = vmatpush1.msra.mxu0 0.0
        %2902 = vmatprep.subr.mxu0 0.0
        %2903 = vmatpush1.msra.mxu0 0.0
        %2904 = vmatprep.subr.mxu0 0.0
        %2905 = vmatpush1.msra.mxu0 0.0
        %2906 = vmatprep.subr.mxu0 0.0
        %2907 = vmatpush1.msra.mxu0 0.0
        %2908 = vmatprep.subr.mxu0 0.0
        %2909 = vmatpush1.msra.mxu0 0.0
        %2910 = vmatprep.subr.mxu0 0.0
        %2911 = vmatpush1.msra.mxu0 0.0
        %2912 = vmatprep.subr.mxu0 0.0
        %2913 = vmatpush1.msra.mxu0 0.0
        %2914 = vmatprep.subr.mxu0 0.0
        %2915 = vmatpush1.msra.mxu0 0.0
        %2916 = vmatprep.subr.mxu0 0.0
        %2917 = vmatpush1.msra.mxu0 0.0
        %2918 = vmatprep.mubr.f32.mxu0 0.0
        %v2919 = vand.u32 %v192, 4294901760
        %v2920 = vsub.f32 %v192, %v2919
        %2921 = vmatmul.mubr.f32.gmra.mrb[0].mxu0 %v2920
        %v2922 = vpop.f32.mrb[0].mxu0
        %v2923 = vadd.f32 %v2827, %v2922
        %v2924 = vpop.f32.mrb[0].mxu0
        %2925 = vmatprep.mubr.f32.mxu0 0.0
        %v2926 = vand.u32 %v195, 4294901760
        %v2927 = vsub.f32 %v195, %v2926
        %2928 = vmatmul.mubr.f32.gmra.mrb[0].mxu0 %v2927
        %v2929 = vpop.f32.mrb[0].mxu0
        %v2930 = vadd.f32 %v2833, %v2929
        %v2931 = vpop.f32.mrb[0].mxu0
        %2932 = vdwg.mxu0
        %2933 = vmatprep.subr.mxu0 0.0
        %v2934 = vand.u32 %v2611, 4294901760
        %2935 = vmatpush1.msra.mxu0 %v2934
        %2936 = vmatprep.subr.mxu0 0.0
        %v2937 = vand.u32 %v2612, 4294901760
        %2938 = vmatpush1.msra.mxu0 %v2937
        %2939 = vmatprep.subr.mxu0 0.0
        %v2940 = vand.u32 %v2613, 4294901760
        %2941 = vmatpush1.msra.mxu0 %v2940
        %2942 = vmatprep.subr.mxu0 0.0
        %v2943 = vand.u32 %v2614, 4294901760
        %2944 = vmatpush1.msra.mxu0 %v2943
        %2945 = vmatprep.subr.mxu0 0.0
        %v2946 = vand.u32 %v2615, 4294901760
        %2947 = vmatpush1.msra.mxu0 %v2946
        %2948 = vmatprep.subr.mxu0 0.0
        %v2949 = vand.u32 %v2616, 4294901760
        %2950 = vmatpush1.msra.mxu0 %v2949
        %2951 = vmatprep.subr.mxu0 0.0
        %v2952 = vand.u32 %v2617, 4294901760
        %2953 = vmatpush1.msra.mxu0 %v2952
        %2954 = vmatprep.subr.mxu0 0.0
        %v2955 = vand.u32 %v2618, 4294901760
        %2956 = vmatpush1.msra.mxu0 %v2955
        %2957 = vmatprep.subr.mxu0 0.0
        %v2958 = vand.u32 %v2619, 4294901760
        %2959 = vmatpush1.msra.mxu0 %v2958
        %2960 = vmatprep.subr.mxu0 0.0
        %2961 = vmatpush1.msra.mxu0 0.0
        %2962 = vmatprep.subr.mxu0 0.0
        %2963 = vmatpush1.msra.mxu0 0.0
        %2964 = vmatprep.subr.mxu0 0.0
        %2965 = vmatpush1.msra.mxu0 0.0
        %2966 = vmatprep.subr.mxu0 0.0
        %2967 = vmatpush1.msra.mxu0 0.0
        %2968 = vmatprep.subr.mxu0 0.0
        %2969 = vmatpush1.msra.mxu0 0.0
        %2970 = vmatprep.subr.mxu0 0.0
        %2971 = vmatpush1.msra.mxu0 0.0
        %2972 = vmatprep.subr.mxu0 0.0
        %2973 = vmatpush1.msra.mxu0 0.0
        %2974 = vmatprep.subr.mxu0 0.0
        %2975 = vmatpush1.msra.mxu0 0.0
        %2976 = vmatprep.subr.mxu0 0.0
        %2977 = vmatpush1.msra.mxu0 0.0
        %2978 = vmatprep.subr.mxu0 0.0
        %2979 = vmatpush1.msra.mxu0 0.0
        %2980 = vmatprep.subr.mxu0 0.0
        %2981 = vmatpush1.msra.mxu0 0.0
        %2982 = vmatprep.subr.mxu0 0.0
        %2983 = vmatpush1.msra.mxu0 0.0
        %2984 = vmatprep.subr.mxu0 0.0
        %2985 = vmatpush1.msra.mxu0 0.0
        %2986 = vmatprep.subr.mxu0 0.0
        %2987 = vmatpush1.msra.mxu0 0.0
        %2988 = vmatprep.subr.mxu0 0.0
        %2989 = vmatpush1.msra.mxu0 0.0
        %2990 = vmatprep.subr.mxu0 0.0
        %2991 = vmatpush1.msra.mxu0 0.0
        %2992 = vmatprep.subr.mxu0 0.0
        %2993 = vmatpush1.msra.mxu0 0.0
        %2994 = vmatprep.subr.mxu0 0.0
        %2995 = vmatpush1.msra.mxu0 0.0
        %2996 = vmatprep.subr.mxu0 0.0
        %2997 = vmatpush1.msra.mxu0 0.0
        %2998 = vmatprep.subr.mxu0 0.0
        %2999 = vmatpush1.msra.mxu0 0.0
        %3000 = vmatprep.subr.mxu0 0.0
        %3001 = vmatpush1.msra.mxu0 0.0
        %3002 = vmatprep.subr.mxu0 0.0
        %3003 = vmatpush1.msra.mxu0 0.0
        %3004 = vmatprep.subr.mxu0 0.0
        %3005 = vmatpush1.msra.mxu0 0.0
        %3006 = vmatprep.mubr.f32.mxu0 0.0
        %v3007 = vand.u32 %v192, 4294901760
        %v3008 = vsub.f32 %v192, %v3007
        %v3009 = vand.u32 %v3008, 4294901760
        %3010 = vmatmul.mubr.f32.gmra.mrb[0].mxu0 %v3009
        %v3011 = vpop.f32.mrb[0].mxu0
        %v3012 = vadd.f32 %v2923, %v3011
        %v3013 = vpop.f32.mrb[0].mxu0
        %3014 = vmatprep.mubr.f32.mxu0 0.0
        %v3015 = vand.u32 %v195, 4294901760
        %v3016 = vsub.f32 %v195, %v3015
        %v3017 = vand.u32 %v3016, 4294901760
        %3018 = vmatmul.mubr.f32.gmra.mrb[0].mxu0 %v3017
        %v3019 = vpop.f32.mrb[0].mxu0
        %v3020 = vadd.f32 %v2930, %v3019
        %v3021 = vpop.f32.mrb[0].mxu0
        %3022 = vdwg.mxu0
        %3023 = vmatprep.subr.mxu0 0.0
        %v3024 = vand.u32 %v2611, 4294901760
        %v3025 = vsub.f32 %v2611, %v3024
        %v3026 = vand.u32 %v3025, 4294901760
        %3027 = vmatpush1.msra.mxu0 %v3026
        %3028 = vmatprep.subr.mxu0 0.0
        %v3029 = vand.u32 %v2612, 4294901760
        %v3030 = vsub.f32 %v2612, %v3029
        %v3031 = vand.u32 %v3030, 4294901760
        %3032 = vmatpush1.msra.mxu0 %v3031
        %3033 = vmatprep.subr.mxu0 0.0
        %v3034 = vand.u32 %v2613, 4294901760
        %v3035 = vsub.f32 %v2613, %v3034
        %v3036 = vand.u32 %v3035, 4294901760
        %3037 = vmatpush1.msra.mxu0 %v3036
        %3038 = vmatprep.subr.mxu0 0.0
        %v3039 = vand.u32 %v2614, 4294901760
        %v3040 = vsub.f32 %v2614, %v3039
        %v3041 = vand.u32 %v3040, 4294901760
        %3042 = vmatpush1.msra.mxu0 %v3041
        %3043 = vmatprep.subr.mxu0 0.0
        %v3044 = vand.u32 %v2615, 4294901760
        %v3045 = vsub.f32 %v2615, %v3044
        %v3046 = vand.u32 %v3045, 4294901760
        %3047 = vmatpush1.msra.mxu0 %v3046
        %3048 = vmatprep.subr.mxu0 0.0
        %v3049 = vand.u32 %v2616, 4294901760
        %v3050 = vsub.f32 %v2616, %v3049
        %v3051 = vand.u32 %v3050, 4294901760
        %3052 = vmatpush1.msra.mxu0 %v3051
        %3053 = vmatprep.subr.mxu0 0.0
        %v3054 = vand.u32 %v2617, 4294901760
        %v3055 = vsub.f32 %v2617, %v3054
        %v3056 = vand.u32 %v3055, 4294901760
        %3057 = vmatpush1.msra.mxu0 %v3056
        %3058 = vmatprep.subr.mxu0 0.0
        %v3059 = vand.u32 %v2618, 4294901760
        %v3060 = vsub.f32 %v2618, %v3059
        %v3061 = vand.u32 %v3060, 4294901760
        %3062 = vmatpush1.msra.mxu0 %v3061
        %3063 = vmatprep.subr.mxu0 0.0
        %v3064 = vand.u32 %v2619, 4294901760
        %v3065 = vsub.f32 %v2619, %v3064
        %v3066 = vand.u32 %v3065, 4294901760
        %3067 = vmatpush1.msra.mxu0 %v3066
        %3068 = vmatprep.subr.mxu0 0.0
        %3069 = vmatpush1.msra.mxu0 0.0
        %3070 = vmatprep.subr.mxu0 0.0
        %3071 = vmatpush1.msra.mxu0 0.0
        %3072 = vmatprep.subr.mxu0 0.0
        %3073 = vmatpush1.msra.mxu0 0.0
        %3074 = vmatprep.subr.mxu0 0.0
        %3075 = vmatpush1.msra.mxu0 0.0
        %3076 = vmatprep.subr.mxu0 0.0
        %3077 = vmatpush1.msra.mxu0 0.0
        %3078 = vmatprep.subr.mxu0 0.0
        %3079 = vmatpush1.msra.mxu0 0.0
        %3080 = vmatprep.subr.mxu0 0.0
        %3081 = vmatpush1.msra.mxu0 0.0
        %3082 = vmatprep.subr.mxu0 0.0
        %3083 = vmatpush1.msra.mxu0 0.0
        %3084 = vmatprep.subr.mxu0 0.0
        %3085 = vmatpush1.msra.mxu0 0.0
        %3086 = vmatprep.subr.mxu0 0.0
        %3087 = vmatpush1.msra.mxu0 0.0
        %3088 = vmatprep.subr.mxu0 0.0
        %3089 = vmatpush1.msra.mxu0 0.0
        %3090 = vmatprep.subr.mxu0 0.0
        %3091 = vmatpush1.msra.mxu0 0.0
        %3092 = vmatprep.subr.mxu0 0.0
        %3093 = vmatpush1.msra.mxu0 0.0
        %3094 = vmatprep.subr.mxu0 0.0
        %3095 = vmatpush1.msra.mxu0 0.0
        %3096 = vmatprep.subr.mxu0 0.0
        %3097 = vmatpush1.msra.mxu0 0.0
        %3098 = vmatprep.subr.mxu0 0.0
        %3099 = vmatpush1.msra.mxu0 0.0
        %3100 = vmatprep.subr.mxu0 0.0
        %3101 = vmatpush1.msra.mxu0 0.0
        %3102 = vmatprep.subr.mxu0 0.0
        %3103 = vmatpush1.msra.mxu0 0.0
        %3104 = vmatprep.subr.mxu0 0.0
        %3105 = vmatpush1.msra.mxu0 0.0
        %3106 = vmatprep.subr.mxu0 0.0
        %3107 = vmatpush1.msra.mxu0 0.0
        %3108 = vmatprep.subr.mxu0 0.0
        %3109 = vmatpush1.msra.mxu0 0.0
        %3110 = vmatprep.subr.mxu0 0.0
        %3111 = vmatpush1.msra.mxu0 0.0
        %3112 = vmatprep.subr.mxu0 0.0
        %3113 = vmatpush1.msra.mxu0 0.0
        %3114 = vmatprep.mubr.f32.mxu0 0.0
        %v3115 = vand.u32 %v192, 4294901760
        %3116 = vmatmul.mubr.f32.gmra.mrb[0].mxu0 %v3115
        %v3117 = vpop.f32.mrb[0].mxu0
        %v3118 = vadd.f32 %v3012, %v3117
        %v3119 = vpop.f32.mrb[0].mxu0
        %3120 = vmatprep.mubr.f32.mxu0 0.0
        %v3121 = vand.u32 %v195, 4294901760
        %3122 = vmatmul.mubr.f32.gmra.mrb[0].mxu0 %v3121
        %v3123 = vpop.f32.mrb[0].mxu0
        %v3124 = vadd.f32 %v3020, %v3123
        %v3125 = vpop.f32.mrb[0].mxu0
        %3126 = vdwg.mxu0
        %3127 = vmatprep.subr.mxu0 0.0
        %v3128 = vand.u32 %v2611, 4294901760
        %3129 = vmatpush1.msra.mxu0 %v3128
        %3130 = vmatprep.subr.mxu0 0.0
        %v3131 = vand.u32 %v2612, 4294901760
        %3132 = vmatpush1.msra.mxu0 %v3131
        %3133 = vmatprep.subr.mxu0 0.0
        %v3134 = vand.u32 %v2613, 4294901760
        %3135 = vmatpush1.msra.mxu0 %v3134
        %3136 = vmatprep.subr.mxu0 0.0
        %v3137 = vand.u32 %v2614, 4294901760
        %3138 = vmatpush1.msra.mxu0 %v3137
        %3139 = vmatprep.subr.mxu0 0.0
        %v3140 = vand.u32 %v2615, 4294901760
        %3141 = vmatpush1.msra.mxu0 %v3140
        %3142 = vmatprep.subr.mxu0 0.0
        %v3143 = vand.u32 %v2616, 4294901760
        %3144 = vmatpush1.msra.mxu0 %v3143
        %3145 = vmatprep.subr.mxu0 0.0
        %v3146 = vand.u32 %v2617, 4294901760
        %3147 = vmatpush1.msra.mxu0 %v3146
        %3148 = vmatprep.subr.mxu0 0.0
        %v3149 = vand.u32 %v2618, 4294901760
        %3150 = vmatpush1.msra.mxu0 %v3149
        %3151 = vmatprep.subr.mxu0 0.0
        %v3152 = vand.u32 %v2619, 4294901760
        %3153 = vmatpush1.msra.mxu0 %v3152
        %3154 = vmatprep.subr.mxu0 0.0
        %3155 = vmatpush1.msra.mxu0 0.0
        %3156 = vmatprep.subr.mxu0 0.0
        %3157 = vmatpush1.msra.mxu0 0.0
        %3158 = vmatprep.subr.mxu0 0.0
        %3159 = vmatpush1.msra.mxu0 0.0
        %3160 = vmatprep.subr.mxu0 0.0
        %3161 = vmatpush1.msra.mxu0 0.0
        %3162 = vmatprep.subr.mxu0 0.0
        %3163 = vmatpush1.msra.mxu0 0.0
        %3164 = vmatprep.subr.mxu0 0.0
        %3165 = vmatpush1.msra.mxu0 0.0
        %3166 = vmatprep.subr.mxu0 0.0
        %3167 = vmatpush1.msra.mxu0 0.0
        %3168 = vmatprep.subr.mxu0 0.0
        %3169 = vmatpush1.msra.mxu0 0.0
        %3170 = vmatprep.subr.mxu0 0.0
        %3171 = vmatpush1.msra.mxu0 0.0
        %3172 = vmatprep.subr.mxu0 0.0
        %3173 = vmatpush1.msra.mxu0 0.0
        %3174 = vmatprep.subr.mxu0 0.0
        %3175 = vmatpush1.msra.mxu0 0.0
        %3176 = vmatprep.subr.mxu0 0.0
        %3177 = vmatpush1.msra.mxu0 0.0
        %3178 = vmatprep.subr.mxu0 0.0
        %3179 = vmatpush1.msra.mxu0 0.0
        %3180 = vmatprep.subr.mxu0 0.0
        %3181 = vmatpush1.msra.mxu0 0.0
        %3182 = vmatprep.subr.mxu0 0.0
        %3183 = vmatpush1.msra.mxu0 0.0
        %3184 = vmatprep.subr.mxu0 0.0
        %3185 = vmatpush1.msra.mxu0 0.0
        %3186 = vmatprep.subr.mxu0 0.0
        %3187 = vmatpush1.msra.mxu0 0.0
        %3188 = vmatprep.subr.mxu0 0.0
        %3189 = vmatpush1.msra.mxu0 0.0
        %3190 = vmatprep.subr.mxu0 0.0
        %3191 = vmatpush1.msra.mxu0 0.0
        %3192 = vmatprep.subr.mxu0 0.0
        %3193 = vmatpush1.msra.mxu0 0.0
        %3194 = vmatprep.subr.mxu0 0.0
        %3195 = vmatpush1.msra.mxu0 0.0
        %3196 = vmatprep.subr.mxu0 0.0
        %3197 = vmatpush1.msra.mxu0 0.0
        %3198 = vmatprep.subr.mxu0 0.0
        %3199 = vmatpush1.msra.mxu0 0.0
        %3200 = vmatprep.mubr.f32.mxu0 0.0
        %v3201 = vand.u32 %v192, 4294901760
        %3202 = vmatmul.mubr.f32.gmra.mrb[0].mxu0 %v3201
        %v3203 = vpop.f32.mrb[0].mxu0
        %v3204 = vadd.f32 %v3118, %v3203
        %v3205 = vpop.f32.mrb[0].mxu0
        %3206 = vmatprep.mubr.f32.mxu0 0.0
        %v3207 = vand.u32 %v195, 4294901760
        %3208 = vmatmul.mubr.f32.gmra.mrb[0].mxu0 %v3207
        %v3209 = vpop.f32.mrb[0].mxu0
        %v3210 = vadd.f32 %v3124, %v3209
        %v3211 = vpop.f32.mrb[0].mxu0
        %3212 = vdwg.mxu0
        %s3213 = scalar_lea.vmem %s176, 32 [#allocation7]
        %3214 = vst.msk [vmem:[%s3213] sm:$0xff] %vm190, %v3204
        %3215 = vst.msk [vmem:[%s3213 + $0x40] sm:$0xff] %vm190, %v3210
        %s3216 = scalar_lea.vmem [#allocation5], 360
        %v3217 = vld [vmem:[%s3216] sm:$0xff]
        %v3218 = vld [vmem:[%s3216 + $0x8] sm:$0xff]
        %v3219 = vld [vmem:[%s3216 + $0x10] sm:$0xff]
        %v3220 = vld [vmem:[%s3216 + $0x18] sm:$0xff]
        %v3221 = vld [vmem:[%s3216 + $0x20] sm:$0xff]
        %v3222 = vld [vmem:[%s3216 + $0x28] sm:$0xff]
        %v3223 = vld [vmem:[%s3216 + $0x30] sm:$0xff]
        %v3224 = vld [vmem:[%s3216 + $0x38] sm:$0xff]
        %v3225 = vld [vmem:[%s3216 + $0x40] sm:$0xff]
        %3226 = vmatprep.subr.mxu0 0.0
        %v3227 = vand.u32 %v3217, 4294901760
        %3228 = vmatpush1.msra.mxu0 %v3227
        %3229 = vmatprep.subr.mxu0 0.0
        %v3230 = vand.u32 %v3218, 4294901760
        %3231 = vmatpush1.msra.mxu0 %v3230
        %3232 = vmatprep.subr.mxu0 0.0
        %v3233 = vand.u32 %v3219, 4294901760
        %3234 = vmatpush1.msra.mxu0 %v3233
        %3235 = vmatprep.subr.mxu0 0.0
        %v3236 = vand.u32 %v3220, 4294901760
        %3237 = vmatpush1.msra.mxu0 %v3236
        %3238 = vmatprep.subr.mxu0 0.0
        %v3239 = vand.u32 %v3221, 4294901760
        %3240 = vmatpush1.msra.mxu0 %v3239
        %3241 = vmatprep.subr.mxu0 0.0
        %v3242 = vand.u32 %v3222, 4294901760
        %3243 = vmatpush1.msra.mxu0 %v3242
        %3244 = vmatprep.subr.mxu0 0.0
        %v3245 = vand.u32 %v3223, 4294901760
        %3246 = vmatpush1.msra.mxu0 %v3245
        %3247 = vmatprep.subr.mxu0 0.0
        %v3248 = vand.u32 %v3224, 4294901760
        %3249 = vmatpush1.msra.mxu0 %v3248
        %3250 = vmatprep.subr.mxu0 0.0
        %v3251 = vand.u32 %v3225, 4294901760
        %3252 = vmatpush1.msra.mxu0 %v3251
        %3253 = vmatprep.subr.mxu0 0.0
        %3254 = vmatpush1.msra.mxu0 0.0
        %3255 = vmatprep.subr.mxu0 0.0
        %3256 = vmatpush1.msra.mxu0 0.0
        %3257 = vmatprep.subr.mxu0 0.0
        %3258 = vmatpush1.msra.mxu0 0.0
        %3259 = vmatprep.subr.mxu0 0.0
        %3260 = vmatpush1.msra.mxu0 0.0
        %3261 = vmatprep.subr.mxu0 0.0
        %3262 = vmatpush1.msra.mxu0 0.0
        %3263 = vmatprep.subr.mxu0 0.0
        %3264 = vmatpush1.msra.mxu0 0.0
        %3265 = vmatprep.subr.mxu0 0.0
        %3266 = vmatpush1.msra.mxu0 0.0
        %3267 = vmatprep.subr.mxu0 0.0
        %3268 = vmatpush1.msra.mxu0 0.0
        %3269 = vmatprep.subr.mxu0 0.0
        %3270 = vmatpush1.msra.mxu0 0.0
        %3271 = vmatprep.subr.mxu0 0.0
        %3272 = vmatpush1.msra.mxu0 0.0
        %3273 = vmatprep.subr.mxu0 0.0
        %3274 = vmatpush1.msra.mxu0 0.0
        %3275 = vmatprep.subr.mxu0 0.0
        %3276 = vmatpush1.msra.mxu0 0.0
        %3277 = vmatprep.subr.mxu0 0.0
        %3278 = vmatpush1.msra.mxu0 0.0
        %3279 = vmatprep.subr.mxu0 0.0
        %3280 = vmatpush1.msra.mxu0 0.0
        %3281 = vmatprep.subr.mxu0 0.0
        %3282 = vmatpush1.msra.mxu0 0.0
        %3283 = vmatprep.subr.mxu0 0.0
        %3284 = vmatpush1.msra.mxu0 0.0
        %3285 = vmatprep.subr.mxu0 0.0
        %3286 = vmatpush1.msra.mxu0 0.0
        %3287 = vmatprep.subr.mxu0 0.0
        %3288 = vmatpush1.msra.mxu0 0.0
        %3289 = vmatprep.subr.mxu0 0.0
        %3290 = vmatpush1.msra.mxu0 0.0
        %3291 = vmatprep.subr.mxu0 0.0
        %3292 = vmatpush1.msra.mxu0 0.0
        %3293 = vmatprep.subr.mxu0 0.0
        %3294 = vmatpush1.msra.mxu0 0.0
        %3295 = vmatprep.subr.mxu0 0.0
        %3296 = vmatpush1.msra.mxu0 0.0
        %3297 = vmatprep.subr.mxu0 0.0
        %3298 = vmatpush1.msra.mxu0 0.0
        %3299 = vmatprep.mubr.f32.mxu0 0.0
        %v3300 = vand.u32 %v192, 4294901760
        %v3301 = vsub.f32 %v192, %v3300
        %v3302 = vand.u32 %v3301, 4294901760
        %v3303 = vsub.f32 %v3301, %v3302
        %v3304 = vand.u32 %v3303, 4294901760
        %3305 = vmatmul.mubr.f32.gmra.mrb[0].mxu0 %v3304
        %v3306 = vpop.f32.mrb[0].mxu0
        %v3307 = vadd.f32 0.0, %v3306
        %v3308 = vpop.f32.mrb[0].mxu0
        %3309 = vmatprep.mubr.f32.mxu0 0.0
        %v3310 = vand.u32 %v195, 4294901760
        %v3311 = vsub.f32 %v195, %v3310
        %v3312 = vand.u32 %v3311, 4294901760
        %v3313 = vsub.f32 %v3311, %v3312
        %v3314 = vand.u32 %v3313, 4294901760
        %3315 = vmatmul.mubr.f32.gmra.mrb[0].mxu0 %v3314
        %v3316 = vpop.f32.mrb[0].mxu0
        %v3317 = vadd.f32 0.0, %v3316
        %v3318 = vpop.f32.mrb[0].mxu0
        %3319 = vdwg.mxu0
        %3320 = vmatprep.subr.mxu0 0.0
        %v3321 = vand.u32 %v3217, 4294901760
        %v3322 = vsub.f32 %v3217, %v3321
        %v3323 = vand.u32 %v3322, 4294901760
        %v3324 = vsub.f32 %v3322, %v3323
        %v3325 = vand.u32 %v3324, 4294901760
        %3326 = vmatpush1.msra.mxu0 %v3325
        %3327 = vmatprep.subr.mxu0 0.0
        %v3328 = vand.u32 %v3218, 4294901760
        %v3329 = vsub.f32 %v3218, %v3328
        %v3330 = vand.u32 %v3329, 4294901760
        %v3331 = vsub.f32 %v3329, %v3330
        %v3332 = vand.u32 %v3331, 4294901760
        %3333 = vmatpush1.msra.mxu0 %v3332
        %3334 = vmatprep.subr.mxu0 0.0
        %v3335 = vand.u32 %v3219, 4294901760
        %v3336 = vsub.f32 %v3219, %v3335
        %v3337 = vand.u32 %v3336, 4294901760
        %v3338 = vsub.f32 %v3336, %v3337
        %v3339 = vand.u32 %v3338, 4294901760
        %3340 = vmatpush1.msra.mxu0 %v3339
        %3341 = vmatprep.subr.mxu0 0.0
        %v3342 = vand.u32 %v3220, 4294901760
        %v3343 = vsub.f32 %v3220, %v3342
        %v3344 = vand.u32 %v3343, 4294901760
        %v3345 = vsub.f32 %v3343, %v3344
        %v3346 = vand.u32 %v3345, 4294901760
        %3347 = vmatpush1.msra.mxu0 %v3346
        %3348 = vmatprep.subr.mxu0 0.0
        %v3349 = vand.u32 %v3221, 4294901760
        %v3350 = vsub.f32 %v3221, %v3349
        %v3351 = vand.u32 %v3350, 4294901760
        %v3352 = vsub.f32 %v3350, %v3351
        %v3353 = vand.u32 %v3352, 4294901760
        %3354 = vmatpush1.msra.mxu0 %v3353
        %3355 = vmatprep.subr.mxu0 0.0
        %v3356 = vand.u32 %v3222, 4294901760
        %v3357 = vsub.f32 %v3222, %v3356
        %v3358 = vand.u32 %v3357, 4294901760
        %v3359 = vsub.f32 %v3357, %v3358
        %v3360 = vand.u32 %v3359, 4294901760
        %3361 = vmatpush1.msra.mxu0 %v3360
        %3362 = vmatprep.subr.mxu0 0.0
        %v3363 = vand.u32 %v3223, 4294901760
        %v3364 = vsub.f32 %v3223, %v3363
        %v3365 = vand.u32 %v3364, 4294901760
        %v3366 = vsub.f32 %v3364, %v3365
        %v3367 = vand.u32 %v3366, 4294901760
        %3368 = vmatpush1.msra.mxu0 %v3367
        %3369 = vmatprep.subr.mxu0 0.0
        %v3370 = vand.u32 %v3224, 4294901760
        %v3371 = vsub.f32 %v3224, %v3370
        %v3372 = vand.u32 %v3371, 4294901760
        %v3373 = vsub.f32 %v3371, %v3372
        %v3374 = vand.u32 %v3373, 4294901760
        %3375 = vmatpush1.msra.mxu0 %v3374
        %3376 = vmatprep.subr.mxu0 0.0
        %v3377 = vand.u32 %v3225, 4294901760
        %v3378 = vsub.f32 %v3225, %v3377
        %v3379 = vand.u32 %v3378, 4294901760
        %v3380 = vsub.f32 %v3378, %v3379
        %v3381 = vand.u32 %v3380, 4294901760
        %3382 = vmatpush1.msra.mxu0 %v3381
        %3383 = vmatprep.subr.mxu0 0.0
        %3384 = vmatpush1.msra.mxu0 0.0
        %3385 = vmatprep.subr.mxu0 0.0
        %3386 = vmatpush1.msra.mxu0 0.0
        %3387 = vmatprep.subr.mxu0 0.0
        %3388 = vmatpush1.msra.mxu0 0.0
        %3389 = vmatprep.subr.mxu0 0.0
        %3390 = vmatpush1.msra.mxu0 0.0
        %3391 = vmatprep.subr.mxu0 0.0
        %3392 = vmatpush1.msra.mxu0 0.0
        %3393 = vmatprep.subr.mxu0 0.0
        %3394 = vmatpush1.msra.mxu0 0.0
        %3395 = vmatprep.subr.mxu0 0.0
        %3396 = vmatpush1.msra.mxu0 0.0
        %3397 = vmatprep.subr.mxu0 0.0
        %3398 = vmatpush1.msra.mxu0 0.0
        %3399 = vmatprep.subr.mxu0 0.0
        %3400 = vmatpush1.msra.mxu0 0.0
        %3401 = vmatprep.subr.mxu0 0.0
        %3402 = vmatpush1.msra.mxu0 0.0
        %3403 = vmatprep.subr.mxu0 0.0
        %3404 = vmatpush1.msra.mxu0 0.0
        %3405 = vmatprep.subr.mxu0 0.0
        %3406 = vmatpush1.msra.mxu0 0.0
        %3407 = vmatprep.subr.mxu0 0.0
        %3408 = vmatpush1.msra.mxu0 0.0
        %3409 = vmatprep.subr.mxu0 0.0
        %3410 = vmatpush1.msra.mxu0 0.0
        %3411 = vmatprep.subr.mxu0 0.0
        %3412 = vmatpush1.msra.mxu0 0.0
        %3413 = vmatprep.subr.mxu0 0.0
        %3414 = vmatpush1.msra.mxu0 0.0
        %3415 = vmatprep.subr.mxu0 0.0
        %3416 = vmatpush1.msra.mxu0 0.0
        %3417 = vmatprep.subr.mxu0 0.0
        %3418 = vmatpush1.msra.mxu0 0.0
        %3419 = vmatprep.subr.mxu0 0.0
        %3420 = vmatpush1.msra.mxu0 0.0
        %3421 = vmatprep.subr.mxu0 0.0
        %3422 = vmatpush1.msra.mxu0 0.0
        %3423 = vmatprep.subr.mxu0 0.0
        %3424 = vmatpush1.msra.mxu0 0.0
        %3425 = vmatprep.subr.mxu0 0.0
        %3426 = vmatpush1.msra.mxu0 0.0
        %3427 = vmatprep.subr.mxu0 0.0
        %3428 = vmatpush1.msra.mxu0 0.0
        %3429 = vmatprep.mubr.f32.mxu0 0.0
        %v3430 = vand.u32 %v192, 4294901760
        %3431 = vmatmul.mubr.f32.gmra.mrb[0].mxu0 %v3430
        %v3432 = vpop.f32.mrb[0].mxu0
        %v3433 = vadd.f32 %v3307, %v3432
        %v3434 = vpop.f32.mrb[0].mxu0
        %3435 = vmatprep.mubr.f32.mxu0 0.0
        %v3436 = vand.u32 %v195, 4294901760
        %3437 = vmatmul.mubr.f32.gmra.mrb[0].mxu0 %v3436
        %v3438 = vpop.f32.mrb[0].mxu0
        %v3439 = vadd.f32 %v3317, %v3438
        %v3440 = vpop.f32.mrb[0].mxu0
        %3441 = vdwg.mxu0
        %3442 = vmatprep.subr.mxu0 0.0
        %v3443 = vand.u32 %v3217, 4294901760
        %v3444 = vsub.f32 %v3217, %v3443
        %3445 = vmatpush1.msra.mxu0 %v3444
        %3446 = vmatprep.subr.mxu0 0.0
        %v3447 = vand.u32 %v3218, 4294901760
        %v3448 = vsub.f32 %v3218, %v3447
        %3449 = vmatpush1.msra.mxu0 %v3448
        %3450 = vmatprep.subr.mxu0 0.0
        %v3451 = vand.u32 %v3219, 4294901760
        %v3452 = vsub.f32 %v3219, %v3451
        %3453 = vmatpush1.msra.mxu0 %v3452
        %3454 = vmatprep.subr.mxu0 0.0
        %v3455 = vand.u32 %v3220, 4294901760
        %v3456 = vsub.f32 %v3220, %v3455
        %3457 = vmatpush1.msra.mxu0 %v3456
        %3458 = vmatprep.subr.mxu0 0.0
        %v3459 = vand.u32 %v3221, 4294901760
        %v3460 = vsub.f32 %v3221, %v3459
        %3461 = vmatpush1.msra.mxu0 %v3460
        %3462 = vmatprep.subr.mxu0 0.0
        %v3463 = vand.u32 %v3222, 4294901760
        %v3464 = vsub.f32 %v3222, %v3463
        %3465 = vmatpush1.msra.mxu0 %v3464
        %3466 = vmatprep.subr.mxu0 0.0
        %v3467 = vand.u32 %v3223, 4294901760
        %v3468 = vsub.f32 %v3223, %v3467
        %3469 = vmatpush1.msra.mxu0 %v3468
        %3470 = vmatprep.subr.mxu0 0.0
        %v3471 = vand.u32 %v3224, 4294901760
        %v3472 = vsub.f32 %v3224, %v3471
        %3473 = vmatpush1.msra.mxu0 %v3472
        %3474 = vmatprep.subr.mxu0 0.0
        %v3475 = vand.u32 %v3225, 4294901760
        %v3476 = vsub.f32 %v3225, %v3475
        %3477 = vmatpush1.msra.mxu0 %v3476
        %3478 = vmatprep.subr.mxu0 0.0
        %3479 = vmatpush1.msra.mxu0 0.0
        %3480 = vmatprep.subr.mxu0 0.0
        %3481 = vmatpush1.msra.mxu0 0.0
        %3482 = vmatprep.subr.mxu0 0.0
        %3483 = vmatpush1.msra.mxu0 0.0
        %3484 = vmatprep.subr.mxu0 0.0
        %3485 = vmatpush1.msra.mxu0 0.0
        %3486 = vmatprep.subr.mxu0 0.0
        %3487 = vmatpush1.msra.mxu0 0.0
        %3488 = vmatprep.subr.mxu0 0.0
        %3489 = vmatpush1.msra.mxu0 0.0
        %3490 = vmatprep.subr.mxu0 0.0
        %3491 = vmatpush1.msra.mxu0 0.0
        %3492 = vmatprep.subr.mxu0 0.0
        %3493 = vmatpush1.msra.mxu0 0.0
        %3494 = vmatprep.subr.mxu0 0.0
        %3495 = vmatpush1.msra.mxu0 0.0
        %3496 = vmatprep.subr.mxu0 0.0
        %3497 = vmatpush1.msra.mxu0 0.0
        %3498 = vmatprep.subr.mxu0 0.0
        %3499 = vmatpush1.msra.mxu0 0.0
        %3500 = vmatprep.subr.mxu0 0.0
        %3501 = vmatpush1.msra.mxu0 0.0
        %3502 = vmatprep.subr.mxu0 0.0
        %3503 = vmatpush1.msra.mxu0 0.0
        %3504 = vmatprep.subr.mxu0 0.0
        %3505 = vmatpush1.msra.mxu0 0.0
        %3506 = vmatprep.subr.mxu0 0.0
        %3507 = vmatpush1.msra.mxu0 0.0
        %3508 = vmatprep.subr.mxu0 0.0
        %3509 = vmatpush1.msra.mxu0 0.0
        %3510 = vmatprep.subr.mxu0 0.0
        %3511 = vmatpush1.msra.mxu0 0.0
        %3512 = vmatprep.subr.mxu0 0.0
        %3513 = vmatpush1.msra.mxu0 0.0
        %3514 = vmatprep.subr.mxu0 0.0
        %3515 = vmatpush1.msra.mxu0 0.0
        %3516 = vmatprep.subr.mxu0 0.0
        %3517 = vmatpush1.msra.mxu0 0.0
        %3518 = vmatprep.subr.mxu0 0.0
        %3519 = vmatpush1.msra.mxu0 0.0
        %3520 = vmatprep.subr.mxu0 0.0
        %3521 = vmatpush1.msra.mxu0 0.0
        %3522 = vmatprep.subr.mxu0 0.0
        %3523 = vmatpush1.msra.mxu0 0.0
        %3524 = vmatprep.mubr.f32.mxu0 0.0
        %v3525 = vand.u32 %v192, 4294901760
        %v3526 = vsub.f32 %v192, %v3525
        %3527 = vmatmul.mubr.f32.gmra.mrb[0].mxu0 %v3526
        %v3528 = vpop.f32.mrb[0].mxu0
        %v3529 = vadd.f32 %v3433, %v3528
        %v3530 = vpop.f32.mrb[0].mxu0
        %3531 = vmatprep.mubr.f32.mxu0 0.0
        %v3532 = vand.u32 %v195, 4294901760
        %v3533 = vsub.f32 %v195, %v3532
        %3534 = vmatmul.mubr.f32.gmra.mrb[0].mxu0 %v3533
        %v3535 = vpop.f32.mrb[0].mxu0
        %v3536 = vadd.f32 %v3439, %v3535
        %v3537 = vpop.f32.mrb[0].mxu0
        %3538 = vdwg.mxu0
        %3539 = vmatprep.subr.mxu0 0.0
        %v3540 = vand.u32 %v3217, 4294901760
        %3541 = vmatpush1.msra.mxu0 %v3540
        %3542 = vmatprep.subr.mxu0 0.0
        %v3543 = vand.u32 %v3218, 4294901760
        %3544 = vmatpush1.msra.mxu0 %v3543
        %3545 = vmatprep.subr.mxu0 0.0
        %v3546 = vand.u32 %v3219, 4294901760
        %3547 = vmatpush1.msra.mxu0 %v3546
        %3548 = vmatprep.subr.mxu0 0.0
        %v3549 = vand.u32 %v3220, 4294901760
        %3550 = vmatpush1.msra.mxu0 %v3549
        %3551 = vmatprep.subr.mxu0 0.0
        %v3552 = vand.u32 %v3221, 4294901760
        %3553 = vmatpush1.msra.mxu0 %v3552
        %3554 = vmatprep.subr.mxu0 0.0
        %v3555 = vand.u32 %v3222, 4294901760
        %3556 = vmatpush1.msra.mxu0 %v3555
        %3557 = vmatprep.subr.mxu0 0.0
        %v3558 = vand.u32 %v3223, 4294901760
        %3559 = vmatpush1.msra.mxu0 %v3558
        %3560 = vmatprep.subr.mxu0 0.0
        %v3561 = vand.u32 %v3224, 4294901760
        %3562 = vmatpush1.msra.mxu0 %v3561
        %3563 = vmatprep.subr.mxu0 0.0
        %v3564 = vand.u32 %v3225, 4294901760
        %3565 = vmatpush1.msra.mxu0 %v3564
        %3566 = vmatprep.subr.mxu0 0.0
        %3567 = vmatpush1.msra.mxu0 0.0
        %3568 = vmatprep.subr.mxu0 0.0
        %3569 = vmatpush1.msra.mxu0 0.0
        %3570 = vmatprep.subr.mxu0 0.0
        %3571 = vmatpush1.msra.mxu0 0.0
        %3572 = vmatprep.subr.mxu0 0.0
        %3573 = vmatpush1.msra.mxu0 0.0
        %3574 = vmatprep.subr.mxu0 0.0
        %3575 = vmatpush1.msra.mxu0 0.0
        %3576 = vmatprep.subr.mxu0 0.0
        %3577 = vmatpush1.msra.mxu0 0.0
        %3578 = vmatprep.subr.mxu0 0.0
        %3579 = vmatpush1.msra.mxu0 0.0
        %3580 = vmatprep.subr.mxu0 0.0
        %3581 = vmatpush1.msra.mxu0 0.0
        %3582 = vmatprep.subr.mxu0 0.0
        %3583 = vmatpush1.msra.mxu0 0.0
        %3584 = vmatprep.subr.mxu0 0.0
        %3585 = vmatpush1.msra.mxu0 0.0
        %3586 = vmatprep.subr.mxu0 0.0
        %3587 = vmatpush1.msra.mxu0 0.0
        %3588 = vmatprep.subr.mxu0 0.0
        %3589 = vmatpush1.msra.mxu0 0.0
        %3590 = vmatprep.subr.mxu0 0.0
        %3591 = vmatpush1.msra.mxu0 0.0
        %3592 = vmatprep.subr.mxu0 0.0
        %3593 = vmatpush1.msra.mxu0 0.0
        %3594 = vmatprep.subr.mxu0 0.0
        %3595 = vmatpush1.msra.mxu0 0.0
        %3596 = vmatprep.subr.mxu0 0.0
        %3597 = vmatpush1.msra.mxu0 0.0
        %3598 = vmatprep.subr.mxu0 0.0
        %3599 = vmatpush1.msra.mxu0 0.0
        %3600 = vmatprep.subr.mxu0 0.0
        %3601 = vmatpush1.msra.mxu0 0.0
        %3602 = vmatprep.subr.mxu0 0.0
        %3603 = vmatpush1.msra.mxu0 0.0
        %3604 = vmatprep.subr.mxu0 0.0
        %3605 = vmatpush1.msra.mxu0 0.0
        %3606 = vmatprep.subr.mxu0 0.0
        %3607 = vmatpush1.msra.mxu0 0.0
        %3608 = vmatprep.subr.mxu0 0.0
        %3609 = vmatpush1.msra.mxu0 0.0
        %3610 = vmatprep.subr.mxu0 0.0
        %3611 = vmatpush1.msra.mxu0 0.0
        %3612 = vmatprep.mubr.f32.mxu0 0.0
        %v3613 = vand.u32 %v192, 4294901760
        %v3614 = vsub.f32 %v192, %v3613
        %v3615 = vand.u32 %v3614, 4294901760
        %3616 = vmatmul.mubr.f32.gmra.mrb[0].mxu0 %v3615
        %v3617 = vpop.f32.mrb[0].mxu0
        %v3618 = vadd.f32 %v3529, %v3617
        %v3619 = vpop.f32.mrb[0].mxu0
        %3620 = vmatprep.mubr.f32.mxu0 0.0
        %v3621 = vand.u32 %v195, 4294901760
        %v3622 = vsub.f32 %v195, %v3621
        %v3623 = vand.u32 %v3622, 4294901760
        %3624 = vmatmul.mubr.f32.gmra.mrb[0].mxu0 %v3623
        %v3625 = vpop.f32.mrb[0].mxu0
        %v3626 = vadd.f32 %v3536, %v3625
        %v3627 = vpop.f32.mrb[0].mxu0
        %3628 = vdwg.mxu0
        %3629 = vmatprep.subr.mxu0 0.0
        %v3630 = vand.u32 %v3217, 4294901760
        %v3631 = vsub.f32 %v3217, %v3630
        %v3632 = vand.u32 %v3631, 4294901760
        %3633 = vmatpush1.msra.mxu0 %v3632
        %3634 = vmatprep.subr.mxu0 0.0
        %v3635 = vand.u32 %v3218, 4294901760
        %v3636 = vsub.f32 %v3218, %v3635
        %v3637 = vand.u32 %v3636, 4294901760
        %3638 = vmatpush1.msra.mxu0 %v3637
        %3639 = vmatprep.subr.mxu0 0.0
        %v3640 = vand.u32 %v3219, 4294901760
        %v3641 = vsub.f32 %v3219, %v3640
        %v3642 = vand.u32 %v3641, 4294901760
        %3643 = vmatpush1.msra.mxu0 %v3642
        %3644 = vmatprep.subr.mxu0 0.0
        %v3645 = vand.u32 %v3220, 4294901760
        %v3646 = vsub.f32 %v3220, %v3645
        %v3647 = vand.u32 %v3646, 4294901760
        %3648 = vmatpush1.msra.mxu0 %v3647
        %3649 = vmatprep.subr.mxu0 0.0
        %v3650 = vand.u32 %v3221, 4294901760
        %v3651 = vsub.f32 %v3221, %v3650
        %v3652 = vand.u32 %v3651, 4294901760
        %3653 = vmatpush1.msra.mxu0 %v3652
        %3654 = vmatprep.subr.mxu0 0.0
        %v3655 = vand.u32 %v3222, 4294901760
        %v3656 = vsub.f32 %v3222, %v3655
        %v3657 = vand.u32 %v3656, 4294901760
        %3658 = vmatpush1.msra.mxu0 %v3657
        %3659 = vmatprep.subr.mxu0 0.0
        %v3660 = vand.u32 %v3223, 4294901760
        %v3661 = vsub.f32 %v3223, %v3660
        %v3662 = vand.u32 %v3661, 4294901760
        %3663 = vmatpush1.msra.mxu0 %v3662
        %3664 = vmatprep.subr.mxu0 0.0
        %v3665 = vand.u32 %v3224, 4294901760
        %v3666 = vsub.f32 %v3224, %v3665
        %v3667 = vand.u32 %v3666, 4294901760
        %3668 = vmatpush1.msra.mxu0 %v3667
        %3669 = vmatprep.subr.mxu0 0.0
        %v3670 = vand.u32 %v3225, 4294901760
        %v3671 = vsub.f32 %v3225, %v3670
        %v3672 = vand.u32 %v3671, 4294901760
        %3673 = vmatpush1.msra.mxu0 %v3672
        %3674 = vmatprep.subr.mxu0 0.0
        %3675 = vmatpush1.msra.mxu0 0.0
        %3676 = vmatprep.subr.mxu0 0.0
        %3677 = vmatpush1.msra.mxu0 0.0
        %3678 = vmatprep.subr.mxu0 0.0
        %3679 = vmatpush1.msra.mxu0 0.0
        %3680 = vmatprep.subr.mxu0 0.0
        %3681 = vmatpush1.msra.mxu0 0.0
        %3682 = vmatprep.subr.mxu0 0.0
        %3683 = vmatpush1.msra.mxu0 0.0
        %3684 = vmatprep.subr.mxu0 0.0
        %3685 = vmatpush1.msra.mxu0 0.0
        %3686 = vmatprep.subr.mxu0 0.0
        %3687 = vmatpush1.msra.mxu0 0.0
        %3688 = vmatprep.subr.mxu0 0.0
        %3689 = vmatpush1.msra.mxu0 0.0
        %3690 = vmatprep.subr.mxu0 0.0
        %3691 = vmatpush1.msra.mxu0 0.0
        %3692 = vmatprep.subr.mxu0 0.0
        %3693 = vmatpush1.msra.mxu0 0.0
        %3694 = vmatprep.subr.mxu0 0.0
        %3695 = vmatpush1.msra.mxu0 0.0
        %3696 = vmatprep.subr.mxu0 0.0
        %3697 = vmatpush1.msra.mxu0 0.0
        %3698 = vmatprep.subr.mxu0 0.0
        %3699 = vmatpush1.msra.mxu0 0.0
        %3700 = vmatprep.subr.mxu0 0.0
        %3701 = vmatpush1.msra.mxu0 0.0
        %3702 = vmatprep.subr.mxu0 0.0
        %3703 = vmatpush1.msra.mxu0 0.0
        %3704 = vmatprep.subr.mxu0 0.0
        %3705 = vmatpush1.msra.mxu0 0.0
        %3706 = vmatprep.subr.mxu0 0.0
        %3707 = vmatpush1.msra.mxu0 0.0
        %3708 = vmatprep.subr.mxu0 0.0
        %3709 = vmatpush1.msra.mxu0 0.0
        %3710 = vmatprep.subr.mxu0 0.0
        %3711 = vmatpush1.msra.mxu0 0.0
        %3712 = vmatprep.subr.mxu0 0.0
        %3713 = vmatpush1.msra.mxu0 0.0
        %3714 = vmatprep.subr.mxu0 0.0
        %3715 = vmatpush1.msra.mxu0 0.0
        %3716 = vmatprep.subr.mxu0 0.0
        %3717 = vmatpush1.msra.mxu0 0.0
        %3718 = vmatprep.subr.mxu0 0.0
        %3719 = vmatpush1.msra.mxu0 0.0
        %3720 = vmatprep.mubr.f32.mxu0 0.0
        %v3721 = vand.u32 %v192, 4294901760
        %3722 = vmatmul.mubr.f32.gmra.mrb[0].mxu0 %v3721
        %v3723 = vpop.f32.mrb[0].mxu0
        %v3724 = vadd.f32 %v3618, %v3723
        %v3725 = vpop.f32.mrb[0].mxu0
        %3726 = vmatprep.mubr.f32.mxu0 0.0
        %v3727 = vand.u32 %v195, 4294901760
        %3728 = vmatmul.mubr.f32.gmra.mrb[0].mxu0 %v3727
        %v3729 = vpop.f32.mrb[0].mxu0
        %v3730 = vadd.f32 %v3626, %v3729
        %v3731 = vpop.f32.mrb[0].mxu0
        %3732 = vdwg.mxu0
        %3733 = vmatprep.subr.mxu0 0.0
        %v3734 = vand.u32 %v3217, 4294901760
        %3735 = vmatpush1.msra.mxu0 %v3734
        %3736 = vmatprep.subr.mxu0 0.0
        %v3737 = vand.u32 %v3218, 4294901760
        %3738 = vmatpush1.msra.mxu0 %v3737
        %3739 = vmatprep.subr.mxu0 0.0
        %v3740 = vand.u32 %v3219, 4294901760
        %3741 = vmatpush1.msra.mxu0 %v3740
        %3742 = vmatprep.subr.mxu0 0.0
        %v3743 = vand.u32 %v3220, 4294901760
        %3744 = vmatpush1.msra.mxu0 %v3743
        %3745 = vmatprep.subr.mxu0 0.0
        %v3746 = vand.u32 %v3221, 4294901760
        %3747 = vmatpush1.msra.mxu0 %v3746
        %3748 = vmatprep.subr.mxu0 0.0
        %v3749 = vand.u32 %v3222, 4294901760
        %3750 = vmatpush1.msra.mxu0 %v3749
        %3751 = vmatprep.subr.mxu0 0.0
        %v3752 = vand.u32 %v3223, 4294901760
        %3753 = vmatpush1.msra.mxu0 %v3752
        %3754 = vmatprep.subr.mxu0 0.0
        %v3755 = vand.u32 %v3224, 4294901760
        %3756 = vmatpush1.msra.mxu0 %v3755
        %3757 = vmatprep.subr.mxu0 0.0
        %v3758 = vand.u32 %v3225, 4294901760
        %3759 = vmatpush1.msra.mxu0 %v3758
        %3760 = vmatprep.subr.mxu0 0.0
        %3761 = vmatpush1.msra.mxu0 0.0
        %3762 = vmatprep.subr.mxu0 0.0
        %3763 = vmatpush1.msra.mxu0 0.0
        %3764 = vmatprep.subr.mxu0 0.0
        %3765 = vmatpush1.msra.mxu0 0.0
        %3766 = vmatprep.subr.mxu0 0.0
        %3767 = vmatpush1.msra.mxu0 0.0
        %3768 = vmatprep.subr.mxu0 0.0
        %3769 = vmatpush1.msra.mxu0 0.0
        %3770 = vmatprep.subr.mxu0 0.0
        %3771 = vmatpush1.msra.mxu0 0.0
        %3772 = vmatprep.subr.mxu0 0.0
        %3773 = vmatpush1.msra.mxu0 0.0
        %3774 = vmatprep.subr.mxu0 0.0
        %3775 = vmatpush1.msra.mxu0 0.0
        %3776 = vmatprep.subr.mxu0 0.0
        %3777 = vmatpush1.msra.mxu0 0.0
        %3778 = vmatprep.subr.mxu0 0.0
        %3779 = vmatpush1.msra.mxu0 0.0
        %3780 = vmatprep.subr.mxu0 0.0
        %3781 = vmatpush1.msra.mxu0 0.0
        %3782 = vmatprep.subr.mxu0 0.0
        %3783 = vmatpush1.msra.mxu0 0.0
        %3784 = vmatprep.subr.mxu0 0.0
        %3785 = vmatpush1.msra.mxu0 0.0
        %3786 = vmatprep.subr.mxu0 0.0
        %3787 = vmatpush1.msra.mxu0 0.0
        %3788 = vmatprep.subr.mxu0 0.0
        %3789 = vmatpush1.msra.mxu0 0.0
        %3790 = vmatprep.subr.mxu0 0.0
        %3791 = vmatpush1.msra.mxu0 0.0
        %3792 = vmatprep.subr.mxu0 0.0
        %3793 = vmatpush1.msra.mxu0 0.0
        %3794 = vmatprep.subr.mxu0 0.0
        %3795 = vmatpush1.msra.mxu0 0.0
        %3796 = vmatprep.subr.mxu0 0.0
        %3797 = vmatpush1.msra.mxu0 0.0
        %3798 = vmatprep.subr.mxu0 0.0
        %3799 = vmatpush1.msra.mxu0 0.0
        %3800 = vmatprep.subr.mxu0 0.0
        %3801 = vmatpush1.msra.mxu0 0.0
        %3802 = vmatprep.subr.mxu0 0.0
        %3803 = vmatpush1.msra.mxu0 0.0
        %3804 = vmatprep.subr.mxu0 0.0
        %3805 = vmatpush1.msra.mxu0 0.0
        %3806 = vmatprep.mubr.f32.mxu0 0.0
        %v3807 = vand.u32 %v192, 4294901760
        %3808 = vmatmul.mubr.f32.gmra.mrb[0].mxu0 %v3807
        %v3809 = vpop.f32.mrb[0].mxu0
        %v3810 = vadd.f32 %v3724, %v3809
        %v3811 = vpop.f32.mrb[0].mxu0
        %3812 = vmatprep.mubr.f32.mxu0 0.0
        %v3813 = vand.u32 %v195, 4294901760
        %3814 = vmatmul.mubr.f32.gmra.mrb[0].mxu0 %v3813
        %v3815 = vpop.f32.mrb[0].mxu0
        %v3816 = vadd.f32 %v3730, %v3815
        %v3817 = vpop.f32.mrb[0].mxu0
        %3818 = vdwg.mxu0
        %s3819 = scalar_lea.vmem %s176, 40 [#allocation7]
        %3820 = vst.msk [vmem:[%s3819] sm:$0xff] %vm190, %v3810
        %3821 = vst.msk [vmem:[%s3819 + $0x40] sm:$0xff] %vm190, %v3816
        %s3822 = scalar_lea.vmem [#allocation5], 432
        %v3823 = vld [vmem:[%s3822] sm:$0xff]
        %v3824 = vld [vmem:[%s3822 + $0x8] sm:$0xff]
        %v3825 = vld [vmem:[%s3822 + $0x10] sm:$0xff]
        %v3826 = vld [vmem:[%s3822 + $0x18] sm:$0xff]
        %v3827 = vld [vmem:[%s3822 + $0x20] sm:$0xff]
        %v3828 = vld [vmem:[%s3822 + $0x28] sm:$0xff]
        %v3829 = vld [vmem:[%s3822 + $0x30] sm:$0xff]
        %v3830 = vld [vmem:[%s3822 + $0x38] sm:$0xff]
        %v3831 = vld [vmem:[%s3822 + $0x40] sm:$0xff]
        %3832 = vmatprep.subr.mxu0 0.0
        %v3833 = vand.u32 %v3823, 4294901760
        %3834 = vmatpush1.msra.mxu0 %v3833
        %3835 = vmatprep.subr.mxu0 0.0
        %v3836 = vand.u32 %v3824, 4294901760
        %3837 = vmatpush1.msra.mxu0 %v3836
        %3838 = vmatprep.subr.mxu0 0.0
        %v3839 = vand.u32 %v3825, 4294901760
        %3840 = vmatpush1.msra.mxu0 %v3839
        %3841 = vmatprep.subr.mxu0 0.0
        %v3842 = vand.u32 %v3826, 4294901760
        %3843 = vmatpush1.msra.mxu0 %v3842
        %3844 = vmatprep.subr.mxu0 0.0
        %v3845 = vand.u32 %v3827, 4294901760
        %3846 = vmatpush1.msra.mxu0 %v3845
        %3847 = vmatprep.subr.mxu0 0.0
        %v3848 = vand.u32 %v3828, 4294901760
        %3849 = vmatpush1.msra.mxu0 %v3848
        %3850 = vmatprep.subr.mxu0 0.0
        %v3851 = vand.u32 %v3829, 4294901760
        %3852 = vmatpush1.msra.mxu0 %v3851
        %3853 = vmatprep.subr.mxu0 0.0
        %v3854 = vand.u32 %v3830, 4294901760
        %3855 = vmatpush1.msra.mxu0 %v3854
        %3856 = vmatprep.subr.mxu0 0.0
        %v3857 = vand.u32 %v3831, 4294901760
        %3858 = vmatpush1.msra.mxu0 %v3857
        %3859 = vmatprep.subr.mxu0 0.0
        %3860 = vmatpush1.msra.mxu0 0.0
        %3861 = vmatprep.subr.mxu0 0.0
        %3862 = vmatpush1.msra.mxu0 0.0
        %3863 = vmatprep.subr.mxu0 0.0
        %3864 = vmatpush1.msra.mxu0 0.0
        %3865 = vmatprep.subr.mxu0 0.0
        %3866 = vmatpush1.msra.mxu0 0.0
        %3867 = vmatprep.subr.mxu0 0.0
        %3868 = vmatpush1.msra.mxu0 0.0
        %3869 = vmatprep.subr.mxu0 0.0
        %3870 = vmatpush1.msra.mxu0 0.0
        %3871 = vmatprep.subr.mxu0 0.0
        %3872 = vmatpush1.msra.mxu0 0.0
        %3873 = vmatprep.subr.mxu0 0.0
        %3874 = vmatpush1.msra.mxu0 0.0
        %3875 = vmatprep.subr.mxu0 0.0
        %3876 = vmatpush1.msra.mxu0 0.0
        %3877 = vmatprep.subr.mxu0 0.0
        %3878 = vmatpush1.msra.mxu0 0.0
        %3879 = vmatprep.subr.mxu0 0.0
        %3880 = vmatpush1.msra.mxu0 0.0
        %3881 = vmatprep.subr.mxu0 0.0
        %3882 = vmatpush1.msra.mxu0 0.0
        %3883 = vmatprep.subr.mxu0 0.0
        %3884 = vmatpush1.msra.mxu0 0.0
        %3885 = vmatprep.subr.mxu0 0.0
        %3886 = vmatpush1.msra.mxu0 0.0
        %3887 = vmatprep.subr.mxu0 0.0
        %3888 = vmatpush1.msra.mxu0 0.0
        %3889 = vmatprep.subr.mxu0 0.0
        %3890 = vmatpush1.msra.mxu0 0.0
        %3891 = vmatprep.subr.mxu0 0.0
        %3892 = vmatpush1.msra.mxu0 0.0
        %3893 = vmatprep.subr.mxu0 0.0
        %3894 = vmatpush1.msra.mxu0 0.0
        %3895 = vmatprep.subr.mxu0 0.0
        %3896 = vmatpush1.msra.mxu0 0.0
        %3897 = vmatprep.subr.mxu0 0.0
        %3898 = vmatpush1.msra.mxu0 0.0
        %3899 = vmatprep.subr.mxu0 0.0
        %3900 = vmatpush1.msra.mxu0 0.0
        %3901 = vmatprep.subr.mxu0 0.0
        %3902 = vmatpush1.msra.mxu0 0.0
        %3903 = vmatprep.subr.mxu0 0.0
        %3904 = vmatpush1.msra.mxu0 0.0
        %3905 = vmatprep.mubr.f32.mxu0 0.0
        %v3906 = vand.u32 %v192, 4294901760
        %v3907 = vsub.f32 %v192, %v3906
        %v3908 = vand.u32 %v3907, 4294901760
        %v3909 = vsub.f32 %v3907, %v3908
        %v3910 = vand.u32 %v3909, 4294901760
        %3911 = vmatmul.mubr.f32.gmra.mrb[0].mxu0 %v3910
        %v3912 = vpop.f32.mrb[0].mxu0
        %v3913 = vadd.f32 0.0, %v3912
        %v3914 = vpop.f32.mrb[0].mxu0
        %3915 = vmatprep.mubr.f32.mxu0 0.0
        %v3916 = vand.u32 %v195, 4294901760
        %v3917 = vsub.f32 %v195, %v3916
        %v3918 = vand.u32 %v3917, 4294901760
        %v3919 = vsub.f32 %v3917, %v3918
        %v3920 = vand.u32 %v3919, 4294901760
        %3921 = vmatmul.mubr.f32.gmra.mrb[0].mxu0 %v3920
        %v3922 = vpop.f32.mrb[0].mxu0
        %v3923 = vadd.f32 0.0, %v3922
        %v3924 = vpop.f32.mrb[0].mxu0
        %3925 = vdwg.mxu0
        %3926 = vmatprep.subr.mxu0 0.0
        %v3927 = vand.u32 %v3823, 4294901760
        %v3928 = vsub.f32 %v3823, %v3927
        %v3929 = vand.u32 %v3928, 4294901760
        %v3930 = vsub.f32 %v3928, %v3929
        %v3931 = vand.u32 %v3930, 4294901760
        %3932 = vmatpush1.msra.mxu0 %v3931
        %3933 = vmatprep.subr.mxu0 0.0
        %v3934 = vand.u32 %v3824, 4294901760
        %v3935 = vsub.f32 %v3824, %v3934
        %v3936 = vand.u32 %v3935, 4294901760
        %v3937 = vsub.f32 %v3935, %v3936
        %v3938 = vand.u32 %v3937, 4294901760
        %3939 = vmatpush1.msra.mxu0 %v3938
        %3940 = vmatprep.subr.mxu0 0.0
        %v3941 = vand.u32 %v3825, 4294901760
        %v3942 = vsub.f32 %v3825, %v3941
        %v3943 = vand.u32 %v3942, 4294901760
        %v3944 = vsub.f32 %v3942, %v3943
        %v3945 = vand.u32 %v3944, 4294901760
        %3946 = vmatpush1.msra.mxu0 %v3945
        %3947 = vmatprep.subr.mxu0 0.0
        %v3948 = vand.u32 %v3826, 4294901760
        %v3949 = vsub.f32 %v3826, %v3948
        %v3950 = vand.u32 %v3949, 4294901760
        %v3951 = vsub.f32 %v3949, %v3950
        %v3952 = vand.u32 %v3951, 4294901760
        %3953 = vmatpush1.msra.mxu0 %v3952
        %3954 = vmatprep.subr.mxu0 0.0
        %v3955 = vand.u32 %v3827, 4294901760
        %v3956 = vsub.f32 %v3827, %v3955
        %v3957 = vand.u32 %v3956, 4294901760
        %v3958 = vsub.f32 %v3956, %v3957
        %v3959 = vand.u32 %v3958, 4294901760
        %3960 = vmatpush1.msra.mxu0 %v3959
        %3961 = vmatprep.subr.mxu0 0.0
        %v3962 = vand.u32 %v3828, 4294901760
        %v3963 = vsub.f32 %v3828, %v3962
        %v3964 = vand.u32 %v3963, 4294901760
        %v3965 = vsub.f32 %v3963, %v3964
        %v3966 = vand.u32 %v3965, 4294901760
        %3967 = vmatpush1.msra.mxu0 %v3966
        %3968 = vmatprep.subr.mxu0 0.0
        %v3969 = vand.u32 %v3829, 4294901760
        %v3970 = vsub.f32 %v3829, %v3969
        %v3971 = vand.u32 %v3970, 4294901760
        %v3972 = vsub.f32 %v3970, %v3971
        %v3973 = vand.u32 %v3972, 4294901760
        %3974 = vmatpush1.msra.mxu0 %v3973
        %3975 = vmatprep.subr.mxu0 0.0
        %v3976 = vand.u32 %v3830, 4294901760
        %v3977 = vsub.f32 %v3830, %v3976
        %v3978 = vand.u32 %v3977, 4294901760
        %v3979 = vsub.f32 %v3977, %v3978
        %v3980 = vand.u32 %v3979, 4294901760
        %3981 = vmatpush1.msra.mxu0 %v3980
        %3982 = vmatprep.subr.mxu0 0.0
        %v3983 = vand.u32 %v3831, 4294901760
        %v3984 = vsub.f32 %v3831, %v3983
        %v3985 = vand.u32 %v3984, 4294901760
        %v3986 = vsub.f32 %v3984, %v3985
        %v3987 = vand.u32 %v3986, 4294901760
        %3988 = vmatpush1.msra.mxu0 %v3987
        %3989 = vmatprep.subr.mxu0 0.0
        %3990 = vmatpush1.msra.mxu0 0.0
        %3991 = vmatprep.subr.mxu0 0.0
        %3992 = vmatpush1.msra.mxu0 0.0
        %3993 = vmatprep.subr.mxu0 0.0
        %3994 = vmatpush1.msra.mxu0 0.0
        %3995 = vmatprep.subr.mxu0 0.0
        %3996 = vmatpush1.msra.mxu0 0.0
        %3997 = vmatprep.subr.mxu0 0.0
        %3998 = vmatpush1.msra.mxu0 0.0
        %3999 = vmatprep.subr.mxu0 0.0
        %4000 = vmatpush1.msra.mxu0 0.0
        %4001 = vmatprep.subr.mxu0 0.0
        %4002 = vmatpush1.msra.mxu0 0.0
        %4003 = vmatprep.subr.mxu0 0.0
        %4004 = vmatpush1.msra.mxu0 0.0
        %4005 = vmatprep.subr.mxu0 0.0
        %4006 = vmatpush1.msra.mxu0 0.0
        %4007 = vmatprep.subr.mxu0 0.0
        %4008 = vmatpush1.msra.mxu0 0.0
        %4009 = vmatprep.subr.mxu0 0.0
        %4010 = vmatpush1.msra.mxu0 0.0
        %4011 = vmatprep.subr.mxu0 0.0
        %4012 = vmatpush1.msra.mxu0 0.0
        %4013 = vmatprep.subr.mxu0 0.0
        %4014 = vmatpush1.msra.mxu0 0.0
        %4015 = vmatprep.subr.mxu0 0.0
        %4016 = vmatpush1.msra.mxu0 0.0
        %4017 = vmatprep.subr.mxu0 0.0
        %4018 = vmatpush1.msra.mxu0 0.0
        %4019 = vmatprep.subr.mxu0 0.0
        %4020 = vmatpush1.msra.mxu0 0.0
        %4021 = vmatprep.subr.mxu0 0.0
        %4022 = vmatpush1.msra.mxu0 0.0
        %4023 = vmatprep.subr.mxu0 0.0
        %4024 = vmatpush1.msra.mxu0 0.0
        %4025 = vmatprep.subr.mxu0 0.0
        %4026 = vmatpush1.msra.mxu0 0.0
        %4027 = vmatprep.subr.mxu0 0.0
        %4028 = vmatpush1.msra.mxu0 0.0
        %4029 = vmatprep.subr.mxu0 0.0
        %4030 = vmatpush1.msra.mxu0 0.0
        %4031 = vmatprep.subr.mxu0 0.0
        %4032 = vmatpush1.msra.mxu0 0.0
        %4033 = vmatprep.subr.mxu0 0.0
        %4034 = vmatpush1.msra.mxu0 0.0
        %4035 = vmatprep.mubr.f32.mxu0 0.0
        %v4036 = vand.u32 %v192, 4294901760
        %4037 = vmatmul.mubr.f32.gmra.mrb[0].mxu0 %v4036
        %v4038 = vpop.f32.mrb[0].mxu0
        %v4039 = vadd.f32 %v3913, %v4038
        %v4040 = vpop.f32.mrb[0].mxu0
        %4041 = vmatprep.mubr.f32.mxu0 0.0
        %v4042 = vand.u32 %v195, 4294901760
        %4043 = vmatmul.mubr.f32.gmra.mrb[0].mxu0 %v4042
        %v4044 = vpop.f32.mrb[0].mxu0
        %v4045 = vadd.f32 %v3923, %v4044
        %v4046 = vpop.f32.mrb[0].mxu0
        %4047 = vdwg.mxu0
        %4048 = vmatprep.subr.mxu0 0.0
        %v4049 = vand.u32 %v3823, 4294901760
        %v4050 = vsub.f32 %v3823, %v4049
        %4051 = vmatpush1.msra.mxu0 %v4050
        %4052 = vmatprep.subr.mxu0 0.0
        %v4053 = vand.u32 %v3824, 4294901760
        %v4054 = vsub.f32 %v3824, %v4053
        %4055 = vmatpush1.msra.mxu0 %v4054
        %4056 = vmatprep.subr.mxu0 0.0
        %v4057 = vand.u32 %v3825, 4294901760
        %v4058 = vsub.f32 %v3825, %v4057
        %4059 = vmatpush1.msra.mxu0 %v4058
        %4060 = vmatprep.subr.mxu0 0.0
        %v4061 = vand.u32 %v3826, 4294901760
        %v4062 = vsub.f32 %v3826, %v4061
        %4063 = vmatpush1.msra.mxu0 %v4062
        %4064 = vmatprep.subr.mxu0 0.0
        %v4065 = vand.u32 %v3827, 4294901760
        %v4066 = vsub.f32 %v3827, %v4065
        %4067 = vmatpush1.msra.mxu0 %v4066
        %4068 = vmatprep.subr.mxu0 0.0
        %v4069 = vand.u32 %v3828, 4294901760
        %v4070 = vsub.f32 %v3828, %v4069
        %4071 = vmatpush1.msra.mxu0 %v4070
        %4072 = vmatprep.subr.mxu0 0.0
        %v4073 = vand.u32 %v3829, 4294901760
        %v4074 = vsub.f32 %v3829, %v4073
        %4075 = vmatpush1.msra.mxu0 %v4074
        %4076 = vmatprep.subr.mxu0 0.0
        %v4077 = vand.u32 %v3830, 4294901760
        %v4078 = vsub.f32 %v3830, %v4077
        %4079 = vmatpush1.msra.mxu0 %v4078
        %4080 = vmatprep.subr.mxu0 0.0
        %v4081 = vand.u32 %v3831, 4294901760
        %v4082 = vsub.f32 %v3831, %v4081
        %4083 = vmatpush1.msra.mxu0 %v4082
        %4084 = vmatprep.subr.mxu0 0.0
        %4085 = vmatpush1.msra.mxu0 0.0
        %4086 = vmatprep.subr.mxu0 0.0
        %4087 = vmatpush1.msra.mxu0 0.0
        %4088 = vmatprep.subr.mxu0 0.0
        %4089 = vmatpush1.msra.mxu0 0.0
        %4090 = vmatprep.subr.mxu0 0.0
        %4091 = vmatpush1.msra.mxu0 0.0
        %4092 = vmatprep.subr.mxu0 0.0
        %4093 = vmatpush1.msra.mxu0 0.0
        %4094 = vmatprep.subr.mxu0 0.0
        %4095 = vmatpush1.msra.mxu0 0.0
        %4096 = vmatprep.subr.mxu0 0.0
        %4097 = vmatpush1.msra.mxu0 0.0
        %4098 = vmatprep.subr.mxu0 0.0
        %4099 = vmatpush1.msra.mxu0 0.0
        %4100 = vmatprep.subr.mxu0 0.0
        %4101 = vmatpush1.msra.mxu0 0.0
        %4102 = vmatprep.subr.mxu0 0.0
        %4103 = vmatpush1.msra.mxu0 0.0
        %4104 = vmatprep.subr.mxu0 0.0
        %4105 = vmatpush1.msra.mxu0 0.0
        %4106 = vmatprep.subr.mxu0 0.0
        %4107 = vmatpush1.msra.mxu0 0.0
        %4108 = vmatprep.subr.mxu0 0.0
        %4109 = vmatpush1.msra.mxu0 0.0
        %4110 = vmatprep.subr.mxu0 0.0
        %4111 = vmatpush1.msra.mxu0 0.0
        %4112 = vmatprep.subr.mxu0 0.0
        %4113 = vmatpush1.msra.mxu0 0.0
        %4114 = vmatprep.subr.mxu0 0.0
        %4115 = vmatpush1.msra.mxu0 0.0
        %4116 = vmatprep.subr.mxu0 0.0
        %4117 = vmatpush1.msra.mxu0 0.0
        %4118 = vmatprep.subr.mxu0 0.0
        %4119 = vmatpush1.msra.mxu0 0.0
        %4120 = vmatprep.subr.mxu0 0.0
        %4121 = vmatpush1.msra.mxu0 0.0
        %4122 = vmatprep.subr.mxu0 0.0
        %4123 = vmatpush1.msra.mxu0 0.0
        %4124 = vmatprep.subr.mxu0 0.0
        %4125 = vmatpush1.msra.mxu0 0.0
        %4126 = vmatprep.subr.mxu0 0.0
        %4127 = vmatpush1.msra.mxu0 0.0
        %4128 = vmatprep.subr.mxu0 0.0
        %4129 = vmatpush1.msra.mxu0 0.0
        %4130 = vmatprep.mubr.f32.mxu0 0.0
        %v4131 = vand.u32 %v192, 4294901760
        %v4132 = vsub.f32 %v192, %v4131
        %4133 = vmatmul.mubr.f32.gmra.mrb[0].mxu0 %v4132
        %v4134 = vpop.f32.mrb[0].mxu0
        %v4135 = vadd.f32 %v4039, %v4134
        %v4136 = vpop.f32.mrb[0].mxu0
        %4137 = vmatprep.mubr.f32.mxu0 0.0
        %v4138 = vand.u32 %v195, 4294901760
        %v4139 = vsub.f32 %v195, %v4138
        %4140 = vmatmul.mubr.f32.gmra.mrb[0].mxu0 %v4139
        %v4141 = vpop.f32.mrb[0].mxu0
        %v4142 = vadd.f32 %v4045, %v4141
        %v4143 = vpop.f32.mrb[0].mxu0
        %4144 = vdwg.mxu0
        %4145 = vmatprep.subr.mxu0 0.0
        %v4146 = vand.u32 %v3823, 4294901760
        %4147 = vmatpush1.msra.mxu0 %v4146
        %4148 = vmatprep.subr.mxu0 0.0
        %v4149 = vand.u32 %v3824, 4294901760
        %4150 = vmatpush1.msra.mxu0 %v4149
        %4151 = vmatprep.subr.mxu0 0.0
        %v4152 = vand.u32 %v3825, 4294901760
        %4153 = vmatpush1.msra.mxu0 %v4152
        %4154 = vmatprep.subr.mxu0 0.0
        %v4155 = vand.u32 %v3826, 4294901760
        %4156 = vmatpush1.msra.mxu0 %v4155
        %4157 = vmatprep.subr.mxu0 0.0
        %v4158 = vand.u32 %v3827, 4294901760
        %4159 = vmatpush1.msra.mxu0 %v4158
        %4160 = vmatprep.subr.mxu0 0.0
        %v4161 = vand.u32 %v3828, 4294901760
        %4162 = vmatpush1.msra.mxu0 %v4161
        %4163 = vmatprep.subr.mxu0 0.0
        %v4164 = vand.u32 %v3829, 4294901760
        %4165 = vmatpush1.msra.mxu0 %v4164
        %4166 = vmatprep.subr.mxu0 0.0
        %v4167 = vand.u32 %v3830, 4294901760
        %4168 = vmatpush1.msra.mxu0 %v4167
        %4169 = vmatprep.subr.mxu0 0.0
        %v4170 = vand.u32 %v3831, 4294901760
        %4171 = vmatpush1.msra.mxu0 %v4170
        %4172 = vmatprep.subr.mxu0 0.0
        %4173 = vmatpush1.msra.mxu0 0.0
        %4174 = vmatprep.subr.mxu0 0.0
        %4175 = vmatpush1.msra.mxu0 0.0
        %4176 = vmatprep.subr.mxu0 0.0
        %4177 = vmatpush1.msra.mxu0 0.0
        %4178 = vmatprep.subr.mxu0 0.0
        %4179 = vmatpush1.msra.mxu0 0.0
        %4180 = vmatprep.subr.mxu0 0.0
        %4181 = vmatpush1.msra.mxu0 0.0
        %4182 = vmatprep.subr.mxu0 0.0
        %4183 = vmatpush1.msra.mxu0 0.0
        %4184 = vmatprep.subr.mxu0 0.0
        %4185 = vmatpush1.msra.mxu0 0.0
        %4186 = vmatprep.subr.mxu0 0.0
        %4187 = vmatpush1.msra.mxu0 0.0
        %4188 = vmatprep.subr.mxu0 0.0
        %4189 = vmatpush1.msra.mxu0 0.0
        %4190 = vmatprep.subr.mxu0 0.0
        %4191 = vmatpush1.msra.mxu0 0.0
        %4192 = vmatprep.subr.mxu0 0.0
        %4193 = vmatpush1.msra.mxu0 0.0
        %4194 = vmatprep.subr.mxu0 0.0
        %4195 = vmatpush1.msra.mxu0 0.0
        %4196 = vmatprep.subr.mxu0 0.0
        %4197 = vmatpush1.msra.mxu0 0.0
        %4198 = vmatprep.subr.mxu0 0.0
        %4199 = vmatpush1.msra.mxu0 0.0
        %4200 = vmatprep.subr.mxu0 0.0
        %4201 = vmatpush1.msra.mxu0 0.0
        %4202 = vmatprep.subr.mxu0 0.0
        %4203 = vmatpush1.msra.mxu0 0.0
        %4204 = vmatprep.subr.mxu0 0.0
        %4205 = vmatpush1.msra.mxu0 0.0
        %4206 = vmatprep.subr.mxu0 0.0
        %4207 = vmatpush1.msra.mxu0 0.0
        %4208 = vmatprep.subr.mxu0 0.0
        %4209 = vmatpush1.msra.mxu0 0.0
        %4210 = vmatprep.subr.mxu0 0.0
        %4211 = vmatpush1.msra.mxu0 0.0
        %4212 = vmatprep.subr.mxu0 0.0
        %4213 = vmatpush1.msra.mxu0 0.0
        %4214 = vmatprep.subr.mxu0 0.0
        %4215 = vmatpush1.msra.mxu0 0.0
        %4216 = vmatprep.subr.mxu0 0.0
        %4217 = vmatpush1.msra.mxu0 0.0
        %4218 = vmatprep.mubr.f32.mxu0 0.0
        %v4219 = vand.u32 %v192, 4294901760
        %v4220 = vsub.f32 %v192, %v4219
        %v4221 = vand.u32 %v4220, 4294901760
        %4222 = vmatmul.mubr.f32.gmra.mrb[0].mxu0 %v4221
        %v4223 = vpop.f32.mrb[0].mxu0
        %v4224 = vadd.f32 %v4135, %v4223
        %v4225 = vpop.f32.mrb[0].mxu0
        %4226 = vmatprep.mubr.f32.mxu0 0.0
        %v4227 = vand.u32 %v195, 4294901760
        %v4228 = vsub.f32 %v195, %v4227
        %v4229 = vand.u32 %v4228, 4294901760
        %4230 = vmatmul.mubr.f32.gmra.mrb[0].mxu0 %v4229
        %v4231 = vpop.f32.mrb[0].mxu0
        %v4232 = vadd.f32 %v4142, %v4231
        %v4233 = vpop.f32.mrb[0].mxu0
        %4234 = vdwg.mxu0
        %4235 = vmatprep.subr.mxu0 0.0
        %v4236 = vand.u32 %v3823, 4294901760
        %v4237 = vsub.f32 %v3823, %v4236
        %v4238 = vand.u32 %v4237, 4294901760
        %4239 = vmatpush1.msra.mxu0 %v4238
        %4240 = vmatprep.subr.mxu0 0.0
        %v4241 = vand.u32 %v3824, 4294901760
        %v4242 = vsub.f32 %v3824, %v4241
        %v4243 = vand.u32 %v4242, 4294901760
        %4244 = vmatpush1.msra.mxu0 %v4243
        %4245 = vmatprep.subr.mxu0 0.0
        %v4246 = vand.u32 %v3825, 4294901760
        %v4247 = vsub.f32 %v3825, %v4246
        %v4248 = vand.u32 %v4247, 4294901760
        %4249 = vmatpush1.msra.mxu0 %v4248
        %4250 = vmatprep.subr.mxu0 0.0
        %v4251 = vand.u32 %v3826, 4294901760
        %v4252 = vsub.f32 %v3826, %v4251
        %v4253 = vand.u32 %v4252, 4294901760
        %4254 = vmatpush1.msra.mxu0 %v4253
        %4255 = vmatprep.subr.mxu0 0.0
        %v4256 = vand.u32 %v3827, 4294901760
        %v4257 = vsub.f32 %v3827, %v4256
        %v4258 = vand.u32 %v4257, 4294901760
        %4259 = vmatpush1.msra.mxu0 %v4258
        %4260 = vmatprep.subr.mxu0 0.0
        %v4261 = vand.u32 %v3828, 4294901760
        %v4262 = vsub.f32 %v3828, %v4261
        %v4263 = vand.u32 %v4262, 4294901760
        %4264 = vmatpush1.msra.mxu0 %v4263
        %4265 = vmatprep.subr.mxu0 0.0
        %v4266 = vand.u32 %v3829, 4294901760
        %v4267 = vsub.f32 %v3829, %v4266
        %v4268 = vand.u32 %v4267, 4294901760
        %4269 = vmatpush1.msra.mxu0 %v4268
        %4270 = vmatprep.subr.mxu0 0.0
        %v4271 = vand.u32 %v3830, 4294901760
        %v4272 = vsub.f32 %v3830, %v4271
        %v4273 = vand.u32 %v4272, 4294901760
        %4274 = vmatpush1.msra.mxu0 %v4273
        %4275 = vmatprep.subr.mxu0 0.0
        %v4276 = vand.u32 %v3831, 4294901760
        %v4277 = vsub.f32 %v3831, %v4276
        %v4278 = vand.u32 %v4277, 4294901760
        %4279 = vmatpush1.msra.mxu0 %v4278
        %4280 = vmatprep.subr.mxu0 0.0
        %4281 = vmatpush1.msra.mxu0 0.0
        %4282 = vmatprep.subr.mxu0 0.0
        %4283 = vmatpush1.msra.mxu0 0.0
        %4284 = vmatprep.subr.mxu0 0.0
        %4285 = vmatpush1.msra.mxu0 0.0
        %4286 = vmatprep.subr.mxu0 0.0
        %4287 = vmatpush1.msra.mxu0 0.0
        %4288 = vmatprep.subr.mxu0 0.0
        %4289 = vmatpush1.msra.mxu0 0.0
        %4290 = vmatprep.subr.mxu0 0.0
        %4291 = vmatpush1.msra.mxu0 0.0
        %4292 = vmatprep.subr.mxu0 0.0
        %4293 = vmatpush1.msra.mxu0 0.0
        %4294 = vmatprep.subr.mxu0 0.0
        %4295 = vmatpush1.msra.mxu0 0.0
        %4296 = vmatprep.subr.mxu0 0.0
        %4297 = vmatpush1.msra.mxu0 0.0
        %4298 = vmatprep.subr.mxu0 0.0
        %4299 = vmatpush1.msra.mxu0 0.0
        %4300 = vmatprep.subr.mxu0 0.0
        %4301 = vmatpush1.msra.mxu0 0.0
        %4302 = vmatprep.subr.mxu0 0.0
        %4303 = vmatpush1.msra.mxu0 0.0
        %4304 = vmatprep.subr.mxu0 0.0
        %4305 = vmatpush1.msra.mxu0 0.0
        %4306 = vmatprep.subr.mxu0 0.0
        %4307 = vmatpush1.msra.mxu0 0.0
        %4308 = vmatprep.subr.mxu0 0.0
        %4309 = vmatpush1.msra.mxu0 0.0
        %4310 = vmatprep.subr.mxu0 0.0
        %4311 = vmatpush1.msra.mxu0 0.0
        %4312 = vmatprep.subr.mxu0 0.0
        %4313 = vmatpush1.msra.mxu0 0.0
        %4314 = vmatprep.subr.mxu0 0.0
        %4315 = vmatpush1.msra.mxu0 0.0
        %4316 = vmatprep.subr.mxu0 0.0
        %4317 = vmatpush1.msra.mxu0 0.0
        %4318 = vmatprep.subr.mxu0 0.0
        %4319 = vmatpush1.msra.mxu0 0.0
        %4320 = vmatprep.subr.mxu0 0.0
        %4321 = vmatpush1.msra.mxu0 0.0
        %4322 = vmatprep.subr.mxu0 0.0
        %4323 = vmatpush1.msra.mxu0 0.0
        %4324 = vmatprep.subr.mxu0 0.0
        %4325 = vmatpush1.msra.mxu0 0.0
        %4326 = vmatprep.mubr.f32.mxu0 0.0
        %v4327 = vand.u32 %v192, 4294901760
        %4328 = vmatmul.mubr.f32.gmra.mrb[0].mxu0 %v4327
        %v4329 = vpop.f32.mrb[0].mxu0
        %v4330 = vadd.f32 %v4224, %v4329
        %v4331 = vpop.f32.mrb[0].mxu0
        %4332 = vmatprep.mubr.f32.mxu0 0.0
        %v4333 = vand.u32 %v195, 4294901760
        %4334 = vmatmul.mubr.f32.gmra.mrb[0].mxu0 %v4333
        %v4335 = vpop.f32.mrb[0].mxu0
        %v4336 = vadd.f32 %v4232, %v4335
        %v4337 = vpop.f32.mrb[0].mxu0
        %4338 = vdwg.mxu0
        %4339 = vmatprep.subr.mxu0 0.0
        %v4340 = vand.u32 %v3823, 4294901760
        %4341 = vmatpush1.msra.mxu0 %v4340
        %4342 = vmatprep.subr.mxu0 0.0
        %v4343 = vand.u32 %v3824, 4294901760
        %4344 = vmatpush1.msra.mxu0 %v4343
        %4345 = vmatprep.subr.mxu0 0.0
        %v4346 = vand.u32 %v3825, 4294901760
        %4347 = vmatpush1.msra.mxu0 %v4346
        %4348 = vmatprep.subr.mxu0 0.0
        %v4349 = vand.u32 %v3826, 4294901760
        %4350 = vmatpush1.msra.mxu0 %v4349
        %4351 = vmatprep.subr.mxu0 0.0
        %v4352 = vand.u32 %v3827, 4294901760
        %4353 = vmatpush1.msra.mxu0 %v4352
        %4354 = vmatprep.subr.mxu0 0.0
        %v4355 = vand.u32 %v3828, 4294901760
        %4356 = vmatpush1.msra.mxu0 %v4355
        %4357 = vmatprep.subr.mxu0 0.0
        %v4358 = vand.u32 %v3829, 4294901760
        %4359 = vmatpush1.msra.mxu0 %v4358
        %4360 = vmatprep.subr.mxu0 0.0
        %v4361 = vand.u32 %v3830, 4294901760
        %4362 = vmatpush1.msra.mxu0 %v4361
        %4363 = vmatprep.subr.mxu0 0.0
        %v4364 = vand.u32 %v3831, 4294901760
        %4365 = vmatpush1.msra.mxu0 %v4364
        %4366 = vmatprep.subr.mxu0 0.0
        %4367 = vmatpush1.msra.mxu0 0.0
        %4368 = vmatprep.subr.mxu0 0.0
        %4369 = vmatpush1.msra.mxu0 0.0
        %4370 = vmatprep.subr.mxu0 0.0
        %4371 = vmatpush1.msra.mxu0 0.0
        %4372 = vmatprep.subr.mxu0 0.0
        %4373 = vmatpush1.msra.mxu0 0.0
        %4374 = vmatprep.subr.mxu0 0.0
        %4375 = vmatpush1.msra.mxu0 0.0
        %4376 = vmatprep.subr.mxu0 0.0
        %4377 = vmatpush1.msra.mxu0 0.0
        %4378 = vmatprep.subr.mxu0 0.0
        %4379 = vmatpush1.msra.mxu0 0.0
        %4380 = vmatprep.subr.mxu0 0.0
        %4381 = vmatpush1.msra.mxu0 0.0
        %4382 = vmatprep.subr.mxu0 0.0
        %4383 = vmatpush1.msra.mxu0 0.0
        %4384 = vmatprep.subr.mxu0 0.0
        %4385 = vmatpush1.msra.mxu0 0.0
        %4386 = vmatprep.subr.mxu0 0.0
        %4387 = vmatpush1.msra.mxu0 0.0
        %4388 = vmatprep.subr.mxu0 0.0
        %4389 = vmatpush1.msra.mxu0 0.0
        %4390 = vmatprep.subr.mxu0 0.0
        %4391 = vmatpush1.msra.mxu0 0.0
        %4392 = vmatprep.subr.mxu0 0.0
        %4393 = vmatpush1.msra.mxu0 0.0
        %4394 = vmatprep.subr.mxu0 0.0
        %4395 = vmatpush1.msra.mxu0 0.0
        %4396 = vmatprep.subr.mxu0 0.0
        %4397 = vmatpush1.msra.mxu0 0.0
        %4398 = vmatprep.subr.mxu0 0.0
        %4399 = vmatpush1.msra.mxu0 0.0
        %4400 = vmatprep.subr.mxu0 0.0
        %4401 = vmatpush1.msra.mxu0 0.0
        %4402 = vmatprep.subr.mxu0 0.0
        %4403 = vmatpush1.msra.mxu0 0.0
        %4404 = vmatprep.subr.mxu0 0.0
        %4405 = vmatpush1.msra.mxu0 0.0
        %4406 = vmatprep.subr.mxu0 0.0
        %4407 = vmatpush1.msra.mxu0 0.0
        %4408 = vmatprep.subr.mxu0 0.0
        %4409 = vmatpush1.msra.mxu0 0.0
        %4410 = vmatprep.subr.mxu0 0.0
        %4411 = vmatpush1.msra.mxu0 0.0
        %4412 = vmatprep.mubr.f32.mxu0 0.0
        %v4413 = vand.u32 %v192, 4294901760
        %4414 = vmatmul.mubr.f32.gmra.mrb[0].mxu0 %v4413
        %v4415 = vpop.f32.mrb[0].mxu0
        %v4416 = vadd.f32 %v4330, %v4415
        %v4417 = vpop.f32.mrb[0].mxu0
        %4418 = vmatprep.mubr.f32.mxu0 0.0
        %v4419 = vand.u32 %v195, 4294901760
        %4420 = vmatmul.mubr.f32.gmra.mrb[0].mxu0 %v4419
        %v4421 = vpop.f32.mrb[0].mxu0
        %v4422 = vadd.f32 %v4336, %v4421
        %v4423 = vpop.f32.mrb[0].mxu0
        %4424 = vdwg.mxu0
        %s4425 = scalar_lea.vmem %s176, 48 [#allocation7]
        %4426 = vst.msk [vmem:[%s4425] sm:$0xff] %vm190, %v4416
        %4427 = vst.msk [vmem:[%s4425 + $0x40] sm:$0xff] %vm190, %v4422
        %s4428 = scalar_lea.vmem [#allocation5], 504
        %v4429 = vld [vmem:[%s4428] sm:$0xff]
        %v4430 = vld [vmem:[%s4428 + $0x8] sm:$0xff]
        %v4431 = vld [vmem:[%s4428 + $0x10] sm:$0xff]
        %v4432 = vld [vmem:[%s4428 + $0x18] sm:$0xff]
        %v4433 = vld [vmem:[%s4428 + $0x20] sm:$0xff]
        %v4434 = vld [vmem:[%s4428 + $0x28] sm:$0xff]
        %v4435 = vld [vmem:[%s4428 + $0x30] sm:$0xff]
        %v4436 = vld [vmem:[%s4428 + $0x38] sm:$0xff]
        %v4437 = vld [vmem:[%s4428 + $0x40] sm:$0xff]
        %4438 = vmatprep.subr.mxu0 0.0
        %v4439 = vand.u32 %v4429, 4294901760
        %4440 = vmatpush1.msra.mxu0 %v4439
        %4441 = vmatprep.subr.mxu0 0.0
        %v4442 = vand.u32 %v4430, 4294901760
        %4443 = vmatpush1.msra.mxu0 %v4442
        %4444 = vmatprep.subr.mxu0 0.0
        %v4445 = vand.u32 %v4431, 4294901760
        %4446 = vmatpush1.msra.mxu0 %v4445
        %4447 = vmatprep.subr.mxu0 0.0
        %v4448 = vand.u32 %v4432, 4294901760
        %4449 = vmatpush1.msra.mxu0 %v4448
        %4450 = vmatprep.subr.mxu0 0.0
        %v4451 = vand.u32 %v4433, 4294901760
        %4452 = vmatpush1.msra.mxu0 %v4451
        %4453 = vmatprep.subr.mxu0 0.0
        %v4454 = vand.u32 %v4434, 4294901760
        %4455 = vmatpush1.msra.mxu0 %v4454
        %4456 = vmatprep.subr.mxu0 0.0
        %v4457 = vand.u32 %v4435, 4294901760
        %4458 = vmatpush1.msra.mxu0 %v4457
        %4459 = vmatprep.subr.mxu0 0.0
        %v4460 = vand.u32 %v4436, 4294901760
        %4461 = vmatpush1.msra.mxu0 %v4460
        %4462 = vmatprep.subr.mxu0 0.0
        %v4463 = vand.u32 %v4437, 4294901760
        %4464 = vmatpush1.msra.mxu0 %v4463
        %4465 = vmatprep.subr.mxu0 0.0
        %4466 = vmatpush1.msra.mxu0 0.0
        %4467 = vmatprep.subr.mxu0 0.0
        %4468 = vmatpush1.msra.mxu0 0.0
        %4469 = vmatprep.subr.mxu0 0.0
        %4470 = vmatpush1.msra.mxu0 0.0
        %4471 = vmatprep.subr.mxu0 0.0
        %4472 = vmatpush1.msra.mxu0 0.0
        %4473 = vmatprep.subr.mxu0 0.0
        %4474 = vmatpush1.msra.mxu0 0.0
        %4475 = vmatprep.subr.mxu0 0.0
        %4476 = vmatpush1.msra.mxu0 0.0
        %4477 = vmatprep.subr.mxu0 0.0
        %4478 = vmatpush1.msra.mxu0 0.0
        %4479 = vmatprep.subr.mxu0 0.0
        %4480 = vmatpush1.msra.mxu0 0.0
        %4481 = vmatprep.subr.mxu0 0.0
        %4482 = vmatpush1.msra.mxu0 0.0
        %4483 = vmatprep.subr.mxu0 0.0
        %4484 = vmatpush1.msra.mxu0 0.0
        %4485 = vmatprep.subr.mxu0 0.0
        %4486 = vmatpush1.msra.mxu0 0.0
        %4487 = vmatprep.subr.mxu0 0.0
        %4488 = vmatpush1.msra.mxu0 0.0
        %4489 = vmatprep.subr.mxu0 0.0
        %4490 = vmatpush1.msra.mxu0 0.0
        %4491 = vmatprep.subr.mxu0 0.0
        %4492 = vmatpush1.msra.mxu0 0.0
        %4493 = vmatprep.subr.mxu0 0.0
        %4494 = vmatpush1.msra.mxu0 0.0
        %4495 = vmatprep.subr.mxu0 0.0
        %4496 = vmatpush1.msra.mxu0 0.0
        %4497 = vmatprep.subr.mxu0 0.0
        %4498 = vmatpush1.msra.mxu0 0.0
        %4499 = vmatprep.subr.mxu0 0.0
        %4500 = vmatpush1.msra.mxu0 0.0
        %4501 = vmatprep.subr.mxu0 0.0
        %4502 = vmatpush1.msra.mxu0 0.0
        %4503 = vmatprep.subr.mxu0 0.0
        %4504 = vmatpush1.msra.mxu0 0.0
        %4505 = vmatprep.subr.mxu0 0.0
        %4506 = vmatpush1.msra.mxu0 0.0
        %4507 = vmatprep.subr.mxu0 0.0
        %4508 = vmatpush1.msra.mxu0 0.0
        %4509 = vmatprep.subr.mxu0 0.0
        %4510 = vmatpush1.msra.mxu0 0.0
        %4511 = vmatprep.mubr.f32.mxu0 0.0
        %v4512 = vand.u32 %v192, 4294901760
        %v4513 = vsub.f32 %v192, %v4512
        %v4514 = vand.u32 %v4513, 4294901760
        %v4515 = vsub.f32 %v4513, %v4514
        %v4516 = vand.u32 %v4515, 4294901760
        %4517 = vmatmul.mubr.f32.gmra.mrb[0].mxu0 %v4516
        %v4518 = vpop.f32.mrb[0].mxu0
        %v4519 = vadd.f32 0.0, %v4518
        %v4520 = vpop.f32.mrb[0].mxu0
        %4521 = vmatprep.mubr.f32.mxu0 0.0
        %v4522 = vand.u32 %v195, 4294901760
        %v4523 = vsub.f32 %v195, %v4522
        %v4524 = vand.u32 %v4523, 4294901760
        %v4525 = vsub.f32 %v4523, %v4524
        %v4526 = vand.u32 %v4525, 4294901760
        %4527 = vmatmul.mubr.f32.gmra.mrb[0].mxu0 %v4526
        %v4528 = vpop.f32.mrb[0].mxu0
        %v4529 = vadd.f32 0.0, %v4528
        %v4530 = vpop.f32.mrb[0].mxu0
        %4531 = vdwg.mxu0
        %4532 = vmatprep.subr.mxu0 0.0
        %v4533 = vand.u32 %v4429, 4294901760
        %v4534 = vsub.f32 %v4429, %v4533
        %v4535 = vand.u32 %v4534, 4294901760
        %v4536 = vsub.f32 %v4534, %v4535
        %v4537 = vand.u32 %v4536, 4294901760
        %4538 = vmatpush1.msra.mxu0 %v4537
        %4539 = vmatprep.subr.mxu0 0.0
        %v4540 = vand.u32 %v4430, 4294901760
        %v4541 = vsub.f32 %v4430, %v4540
        %v4542 = vand.u32 %v4541, 4294901760
        %v4543 = vsub.f32 %v4541, %v4542
        %v4544 = vand.u32 %v4543, 4294901760
        %4545 = vmatpush1.msra.mxu0 %v4544
        %4546 = vmatprep.subr.mxu0 0.0
        %v4547 = vand.u32 %v4431, 4294901760
        %v4548 = vsub.f32 %v4431, %v4547
        %v4549 = vand.u32 %v4548, 4294901760
        %v4550 = vsub.f32 %v4548, %v4549
        %v4551 = vand.u32 %v4550, 4294901760
        %4552 = vmatpush1.msra.mxu0 %v4551
        %4553 = vmatprep.subr.mxu0 0.0
        %v4554 = vand.u32 %v4432, 4294901760
        %v4555 = vsub.f32 %v4432, %v4554
        %v4556 = vand.u32 %v4555, 4294901760
        %v4557 = vsub.f32 %v4555, %v4556
        %v4558 = vand.u32 %v4557, 4294901760
        %4559 = vmatpush1.msra.mxu0 %v4558
        %4560 = vmatprep.subr.mxu0 0.0
        %v4561 = vand.u32 %v4433, 4294901760
        %v4562 = vsub.f32 %v4433, %v4561
        %v4563 = vand.u32 %v4562, 4294901760
        %v4564 = vsub.f32 %v4562, %v4563
        %v4565 = vand.u32 %v4564, 4294901760
        %4566 = vmatpush1.msra.mxu0 %v4565
        %4567 = vmatprep.subr.mxu0 0.0
        %v4568 = vand.u32 %v4434, 4294901760
        %v4569 = vsub.f32 %v4434, %v4568
        %v4570 = vand.u32 %v4569, 4294901760
        %v4571 = vsub.f32 %v4569, %v4570
        %v4572 = vand.u32 %v4571, 4294901760
        %4573 = vmatpush1.msra.mxu0 %v4572
        %4574 = vmatprep.subr.mxu0 0.0
        %v4575 = vand.u32 %v4435, 4294901760
        %v4576 = vsub.f32 %v4435, %v4575
        %v4577 = vand.u32 %v4576, 4294901760
        %v4578 = vsub.f32 %v4576, %v4577
        %v4579 = vand.u32 %v4578, 4294901760
        %4580 = vmatpush1.msra.mxu0 %v4579
        %4581 = vmatprep.subr.mxu0 0.0
        %v4582 = vand.u32 %v4436, 4294901760
        %v4583 = vsub.f32 %v4436, %v4582
        %v4584 = vand.u32 %v4583, 4294901760
        %v4585 = vsub.f32 %v4583, %v4584
        %v4586 = vand.u32 %v4585, 4294901760
        %4587 = vmatpush1.msra.mxu0 %v4586
        %4588 = vmatprep.subr.mxu0 0.0
        %v4589 = vand.u32 %v4437, 4294901760
        %v4590 = vsub.f32 %v4437, %v4589
        %v4591 = vand.u32 %v4590, 4294901760
        %v4592 = vsub.f32 %v4590, %v4591
        %v4593 = vand.u32 %v4592, 4294901760
        %4594 = vmatpush1.msra.mxu0 %v4593
        %4595 = vmatprep.subr.mxu0 0.0
        %4596 = vmatpush1.msra.mxu0 0.0
        %4597 = vmatprep.subr.mxu0 0.0
        %4598 = vmatpush1.msra.mxu0 0.0
        %4599 = vmatprep.subr.mxu0 0.0
        %4600 = vmatpush1.msra.mxu0 0.0
        %4601 = vmatprep.subr.mxu0 0.0
        %4602 = vmatpush1.msra.mxu0 0.0
        %4603 = vmatprep.subr.mxu0 0.0
        %4604 = vmatpush1.msra.mxu0 0.0
        %4605 = vmatprep.subr.mxu0 0.0
        %4606 = vmatpush1.msra.mxu0 0.0
        %4607 = vmatprep.subr.mxu0 0.0
        %4608 = vmatpush1.msra.mxu0 0.0
        %4609 = vmatprep.subr.mxu0 0.0
        %4610 = vmatpush1.msra.mxu0 0.0
        %4611 = vmatprep.subr.mxu0 0.0
        %4612 = vmatpush1.msra.mxu0 0.0
        %4613 = vmatprep.subr.mxu0 0.0
        %4614 = vmatpush1.msra.mxu0 0.0
        %4615 = vmatprep.subr.mxu0 0.0
        %4616 = vmatpush1.msra.mxu0 0.0
        %4617 = vmatprep.subr.mxu0 0.0
        %4618 = vmatpush1.msra.mxu0 0.0
        %4619 = vmatprep.subr.mxu0 0.0
        %4620 = vmatpush1.msra.mxu0 0.0
        %4621 = vmatprep.subr.mxu0 0.0
        %4622 = vmatpush1.msra.mxu0 0.0
        %4623 = vmatprep.subr.mxu0 0.0
        %4624 = vmatpush1.msra.mxu0 0.0
        %4625 = vmatprep.subr.mxu0 0.0
        %4626 = vmatpush1.msra.mxu0 0.0
        %4627 = vmatprep.subr.mxu0 0.0
        %4628 = vmatpush1.msra.mxu0 0.0
        %4629 = vmatprep.subr.mxu0 0.0
        %4630 = vmatpush1.msra.mxu0 0.0
        %4631 = vmatprep.subr.mxu0 0.0
        %4632 = vmatpush1.msra.mxu0 0.0
        %4633 = vmatprep.subr.mxu0 0.0
        %4634 = vmatpush1.msra.mxu0 0.0
        %4635 = vmatprep.subr.mxu0 0.0
        %4636 = vmatpush1.msra.mxu0 0.0
        %4637 = vmatprep.subr.mxu0 0.0
        %4638 = vmatpush1.msra.mxu0 0.0
        %4639 = vmatprep.subr.mxu0 0.0
        %4640 = vmatpush1.msra.mxu0 0.0
        %4641 = vmatprep.mubr.f32.mxu0 0.0
        %v4642 = vand.u32 %v192, 4294901760
        %4643 = vmatmul.mubr.f32.gmra.mrb[0].mxu0 %v4642
        %v4644 = vpop.f32.mrb[0].mxu0
        %v4645 = vadd.f32 %v4519, %v4644
        %v4646 = vpop.f32.mrb[0].mxu0
        %4647 = vmatprep.mubr.f32.mxu0 0.0
        %v4648 = vand.u32 %v195, 4294901760
        %4649 = vmatmul.mubr.f32.gmra.mrb[0].mxu0 %v4648
        %v4650 = vpop.f32.mrb[0].mxu0
        %v4651 = vadd.f32 %v4529, %v4650
        %v4652 = vpop.f32.mrb[0].mxu0
        %4653 = vdwg.mxu0
        %4654 = vmatprep.subr.mxu0 0.0
        %v4655 = vand.u32 %v4429, 4294901760
        %v4656 = vsub.f32 %v4429, %v4655
        %4657 = vmatpush1.msra.mxu0 %v4656
        %4658 = vmatprep.subr.mxu0 0.0
        %v4659 = vand.u32 %v4430, 4294901760
        %v4660 = vsub.f32 %v4430, %v4659
        %4661 = vmatpush1.msra.mxu0 %v4660
        %4662 = vmatprep.subr.mxu0 0.0
        %v4663 = vand.u32 %v4431, 4294901760
        %v4664 = vsub.f32 %v4431, %v4663
        %4665 = vmatpush1.msra.mxu0 %v4664
        %4666 = vmatprep.subr.mxu0 0.0
        %v4667 = vand.u32 %v4432, 4294901760
        %v4668 = vsub.f32 %v4432, %v4667
        %4669 = vmatpush1.msra.mxu0 %v4668
        %4670 = vmatprep.subr.mxu0 0.0
        %v4671 = vand.u32 %v4433, 4294901760
        %v4672 = vsub.f32 %v4433, %v4671
        %4673 = vmatpush1.msra.mxu0 %v4672
        %4674 = vmatprep.subr.mxu0 0.0
        %v4675 = vand.u32 %v4434, 4294901760
        %v4676 = vsub.f32 %v4434, %v4675
        %4677 = vmatpush1.msra.mxu0 %v4676
        %4678 = vmatprep.subr.mxu0 0.0
        %v4679 = vand.u32 %v4435, 4294901760
        %v4680 = vsub.f32 %v4435, %v4679
        %4681 = vmatpush1.msra.mxu0 %v4680
        %4682 = vmatprep.subr.mxu0 0.0
        %v4683 = vand.u32 %v4436, 4294901760
        %v4684 = vsub.f32 %v4436, %v4683
        %4685 = vmatpush1.msra.mxu0 %v4684
        %4686 = vmatprep.subr.mxu0 0.0
        %v4687 = vand.u32 %v4437, 4294901760
        %v4688 = vsub.f32 %v4437, %v4687
        %4689 = vmatpush1.msra.mxu0 %v4688
        %4690 = vmatprep.subr.mxu0 0.0
        %4691 = vmatpush1.msra.mxu0 0.0
        %4692 = vmatprep.subr.mxu0 0.0
        %4693 = vmatpush1.msra.mxu0 0.0
        %4694 = vmatprep.subr.mxu0 0.0
        %4695 = vmatpush1.msra.mxu0 0.0
        %4696 = vmatprep.subr.mxu0 0.0
        %4697 = vmatpush1.msra.mxu0 0.0
        %4698 = vmatprep.subr.mxu0 0.0
        %4699 = vmatpush1.msra.mxu0 0.0
        %4700 = vmatprep.subr.mxu0 0.0
        %4701 = vmatpush1.msra.mxu0 0.0
        %4702 = vmatprep.subr.mxu0 0.0
        %4703 = vmatpush1.msra.mxu0 0.0
        %4704 = vmatprep.subr.mxu0 0.0
        %4705 = vmatpush1.msra.mxu0 0.0
        %4706 = vmatprep.subr.mxu0 0.0
        %4707 = vmatpush1.msra.mxu0 0.0
        %4708 = vmatprep.subr.mxu0 0.0
        %4709 = vmatpush1.msra.mxu0 0.0
        %4710 = vmatprep.subr.mxu0 0.0
        %4711 = vmatpush1.msra.mxu0 0.0
        %4712 = vmatprep.subr.mxu0 0.0
        %4713 = vmatpush1.msra.mxu0 0.0
        %4714 = vmatprep.subr.mxu0 0.0
        %4715 = vmatpush1.msra.mxu0 0.0
        %4716 = vmatprep.subr.mxu0 0.0
        %4717 = vmatpush1.msra.mxu0 0.0
        %4718 = vmatprep.subr.mxu0 0.0
        %4719 = vmatpush1.msra.mxu0 0.0
        %4720 = vmatprep.subr.mxu0 0.0
        %4721 = vmatpush1.msra.mxu0 0.0
        %4722 = vmatprep.subr.mxu0 0.0
        %4723 = vmatpush1.msra.mxu0 0.0
        %4724 = vmatprep.subr.mxu0 0.0
        %4725 = vmatpush1.msra.mxu0 0.0
        %4726 = vmatprep.subr.mxu0 0.0
        %4727 = vmatpush1.msra.mxu0 0.0
        %4728 = vmatprep.subr.mxu0 0.0
        %4729 = vmatpush1.msra.mxu0 0.0
        %4730 = vmatprep.subr.mxu0 0.0
        %4731 = vmatpush1.msra.mxu0 0.0
        %4732 = vmatprep.subr.mxu0 0.0
        %4733 = vmatpush1.msra.mxu0 0.0
        %4734 = vmatprep.subr.mxu0 0.0
        %4735 = vmatpush1.msra.mxu0 0.0
        %4736 = vmatprep.mubr.f32.mxu0 0.0
        %v4737 = vand.u32 %v192, 4294901760
        %v4738 = vsub.f32 %v192, %v4737
        %4739 = vmatmul.mubr.f32.gmra.mrb[0].mxu0 %v4738
        %v4740 = vpop.f32.mrb[0].mxu0
        %v4741 = vadd.f32 %v4645, %v4740
        %v4742 = vpop.f32.mrb[0].mxu0
        %4743 = vmatprep.mubr.f32.mxu0 0.0
        %v4744 = vand.u32 %v195, 4294901760
        %v4745 = vsub.f32 %v195, %v4744
        %4746 = vmatmul.mubr.f32.gmra.mrb[0].mxu0 %v4745
        %v4747 = vpop.f32.mrb[0].mxu0
        %v4748 = vadd.f32 %v4651, %v4747
        %v4749 = vpop.f32.mrb[0].mxu0
        %4750 = vdwg.mxu0
        %4751 = vmatprep.subr.mxu0 0.0
        %v4752 = vand.u32 %v4429, 4294901760
        %4753 = vmatpush1.msra.mxu0 %v4752
        %4754 = vmatprep.subr.mxu0 0.0
        %v4755 = vand.u32 %v4430, 4294901760
        %4756 = vmatpush1.msra.mxu0 %v4755
        %4757 = vmatprep.subr.mxu0 0.0
        %v4758 = vand.u32 %v4431, 4294901760
        %4759 = vmatpush1.msra.mxu0 %v4758
        %4760 = vmatprep.subr.mxu0 0.0
        %v4761 = vand.u32 %v4432, 4294901760
        %4762 = vmatpush1.msra.mxu0 %v4761
        %4763 = vmatprep.subr.mxu0 0.0
        %v4764 = vand.u32 %v4433, 4294901760
        %4765 = vmatpush1.msra.mxu0 %v4764
        %4766 = vmatprep.subr.mxu0 0.0
        %v4767 = vand.u32 %v4434, 4294901760
        %4768 = vmatpush1.msra.mxu0 %v4767
        %4769 = vmatprep.subr.mxu0 0.0
        %v4770 = vand.u32 %v4435, 4294901760
        %4771 = vmatpush1.msra.mxu0 %v4770
        %4772 = vmatprep.subr.mxu0 0.0
        %v4773 = vand.u32 %v4436, 4294901760
        %4774 = vmatpush1.msra.mxu0 %v4773
        %4775 = vmatprep.subr.mxu0 0.0
        %v4776 = vand.u32 %v4437, 4294901760
        %4777 = vmatpush1.msra.mxu0 %v4776
        %4778 = vmatprep.subr.mxu0 0.0
        %4779 = vmatpush1.msra.mxu0 0.0
        %4780 = vmatprep.subr.mxu0 0.0
        %4781 = vmatpush1.msra.mxu0 0.0
        %4782 = vmatprep.subr.mxu0 0.0
        %4783 = vmatpush1.msra.mxu0 0.0
        %4784 = vmatprep.subr.mxu0 0.0
        %4785 = vmatpush1.msra.mxu0 0.0
        %4786 = vmatprep.subr.mxu0 0.0
        %4787 = vmatpush1.msra.mxu0 0.0
        %4788 = vmatprep.subr.mxu0 0.0
        %4789 = vmatpush1.msra.mxu0 0.0
        %4790 = vmatprep.subr.mxu0 0.0
        %4791 = vmatpush1.msra.mxu0 0.0
        %4792 = vmatprep.subr.mxu0 0.0
        %4793 = vmatpush1.msra.mxu0 0.0
        %4794 = vmatprep.subr.mxu0 0.0
        %4795 = vmatpush1.msra.mxu0 0.0
        %4796 = vmatprep.subr.mxu0 0.0
        %4797 = vmatpush1.msra.mxu0 0.0
        %4798 = vmatprep.subr.mxu0 0.0
        %4799 = vmatpush1.msra.mxu0 0.0
        %4800 = vmatprep.subr.mxu0 0.0
        %4801 = vmatpush1.msra.mxu0 0.0
        %4802 = vmatprep.subr.mxu0 0.0
        %4803 = vmatpush1.msra.mxu0 0.0
        %4804 = vmatprep.subr.mxu0 0.0
        %4805 = vmatpush1.msra.mxu0 0.0
        %4806 = vmatprep.subr.mxu0 0.0
        %4807 = vmatpush1.msra.mxu0 0.0
        %4808 = vmatprep.subr.mxu0 0.0
        %4809 = vmatpush1.msra.mxu0 0.0
        %4810 = vmatprep.subr.mxu0 0.0
        %4811 = vmatpush1.msra.mxu0 0.0
        %4812 = vmatprep.subr.mxu0 0.0
        %4813 = vmatpush1.msra.mxu0 0.0
        %4814 = vmatprep.subr.mxu0 0.0
        %4815 = vmatpush1.msra.mxu0 0.0
        %4816 = vmatprep.subr.mxu0 0.0
        %4817 = vmatpush1.msra.mxu0 0.0
        %4818 = vmatprep.subr.mxu0 0.0
        %4819 = vmatpush1.msra.mxu0 0.0
        %4820 = vmatprep.subr.mxu0 0.0
        %4821 = vmatpush1.msra.mxu0 0.0
        %4822 = vmatprep.subr.mxu0 0.0
        %4823 = vmatpush1.msra.mxu0 0.0
        %4824 = vmatprep.mubr.f32.mxu0 0.0
        %v4825 = vand.u32 %v192, 4294901760
        %v4826 = vsub.f32 %v192, %v4825
        %v4827 = vand.u32 %v4826, 4294901760
        %4828 = vmatmul.mubr.f32.gmra.mrb[0].mxu0 %v4827
        %v4829 = vpop.f32.mrb[0].mxu0
        %v4830 = vadd.f32 %v4741, %v4829
        %v4831 = vpop.f32.mrb[0].mxu0
        %4832 = vmatprep.mubr.f32.mxu0 0.0
        %v4833 = vand.u32 %v195, 4294901760
        %v4834 = vsub.f32 %v195, %v4833
        %v4835 = vand.u32 %v4834, 4294901760
        %4836 = vmatmul.mubr.f32.gmra.mrb[0].mxu0 %v4835
        %v4837 = vpop.f32.mrb[0].mxu0
        %v4838 = vadd.f32 %v4748, %v4837
        %v4839 = vpop.f32.mrb[0].mxu0
        %4840 = vdwg.mxu0
        %4841 = vmatprep.subr.mxu0 0.0
        %v4842 = vand.u32 %v4429, 4294901760
        %v4843 = vsub.f32 %v4429, %v4842
        %v4844 = vand.u32 %v4843, 4294901760
        %4845 = vmatpush1.msra.mxu0 %v4844
        %4846 = vmatprep.subr.mxu0 0.0
        %v4847 = vand.u32 %v4430, 4294901760
        %v4848 = vsub.f32 %v4430, %v4847
        %v4849 = vand.u32 %v4848, 4294901760
        %4850 = vmatpush1.msra.mxu0 %v4849
        %4851 = vmatprep.subr.mxu0 0.0
        %v4852 = vand.u32 %v4431, 4294901760
        %v4853 = vsub.f32 %v4431, %v4852
        %v4854 = vand.u32 %v4853, 4294901760
        %4855 = vmatpush1.msra.mxu0 %v4854
        %4856 = vmatprep.subr.mxu0 0.0
        %v4857 = vand.u32 %v4432, 4294901760
        %v4858 = vsub.f32 %v4432, %v4857
        %v4859 = vand.u32 %v4858, 4294901760
        %4860 = vmatpush1.msra.mxu0 %v4859
        %4861 = vmatprep.subr.mxu0 0.0
        %v4862 = vand.u32 %v4433, 4294901760
        %v4863 = vsub.f32 %v4433, %v4862
        %v4864 = vand.u32 %v4863, 4294901760
        %4865 = vmatpush1.msra.mxu0 %v4864
        %4866 = vmatprep.subr.mxu0 0.0
        %v4867 = vand.u32 %v4434, 4294901760
        %v4868 = vsub.f32 %v4434, %v4867
        %v4869 = vand.u32 %v4868, 4294901760
        %4870 = vmatpush1.msra.mxu0 %v4869
        %4871 = vmatprep.subr.mxu0 0.0
        %v4872 = vand.u32 %v4435, 4294901760
        %v4873 = vsub.f32 %v4435, %v4872
        %v4874 = vand.u32 %v4873, 4294901760
        %4875 = vmatpush1.msra.mxu0 %v4874
        %4876 = vmatprep.subr.mxu0 0.0
        %v4877 = vand.u32 %v4436, 4294901760
        %v4878 = vsub.f32 %v4436, %v4877
        %v4879 = vand.u32 %v4878, 4294901760
        %4880 = vmatpush1.msra.mxu0 %v4879
        %4881 = vmatprep.subr.mxu0 0.0
        %v4882 = vand.u32 %v4437, 4294901760
        %v4883 = vsub.f32 %v4437, %v4882
        %v4884 = vand.u32 %v4883, 4294901760
        %4885 = vmatpush1.msra.mxu0 %v4884
        %4886 = vmatprep.subr.mxu0 0.0
        %4887 = vmatpush1.msra.mxu0 0.0
        %4888 = vmatprep.subr.mxu0 0.0
        %4889 = vmatpush1.msra.mxu0 0.0
        %4890 = vmatprep.subr.mxu0 0.0
        %4891 = vmatpush1.msra.mxu0 0.0
        %4892 = vmatprep.subr.mxu0 0.0
        %4893 = vmatpush1.msra.mxu0 0.0
        %4894 = vmatprep.subr.mxu0 0.0
        %4895 = vmatpush1.msra.mxu0 0.0
        %4896 = vmatprep.subr.mxu0 0.0
        %4897 = vmatpush1.msra.mxu0 0.0
        %4898 = vmatprep.subr.mxu0 0.0
        %4899 = vmatpush1.msra.mxu0 0.0
        %4900 = vmatprep.subr.mxu0 0.0
        %4901 = vmatpush1.msra.mxu0 0.0
        %4902 = vmatprep.subr.mxu0 0.0
        %4903 = vmatpush1.msra.mxu0 0.0
        %4904 = vmatprep.subr.mxu0 0.0
        %4905 = vmatpush1.msra.mxu0 0.0
        %4906 = vmatprep.subr.mxu0 0.0
        %4907 = vmatpush1.msra.mxu0 0.0
        %4908 = vmatprep.subr.mxu0 0.0
        %4909 = vmatpush1.msra.mxu0 0.0
        %4910 = vmatprep.subr.mxu0 0.0
        %4911 = vmatpush1.msra.mxu0 0.0
        %4912 = vmatprep.subr.mxu0 0.0
        %4913 = vmatpush1.msra.mxu0 0.0
        %4914 = vmatprep.subr.mxu0 0.0
        %4915 = vmatpush1.msra.mxu0 0.0
        %4916 = vmatprep.subr.mxu0 0.0
        %4917 = vmatpush1.msra.mxu0 0.0
        %4918 = vmatprep.subr.mxu0 0.0
        %4919 = vmatpush1.msra.mxu0 0.0
        %4920 = vmatprep.subr.mxu0 0.0
        %4921 = vmatpush1.msra.mxu0 0.0
        %4922 = vmatprep.subr.mxu0 0.0
        %4923 = vmatpush1.msra.mxu0 0.0
        %4924 = vmatprep.subr.mxu0 0.0
        %4925 = vmatpush1.msra.mxu0 0.0
        %4926 = vmatprep.subr.mxu0 0.0
        %4927 = vmatpush1.msra.mxu0 0.0
        %4928 = vmatprep.subr.mxu0 0.0
        %4929 = vmatpush1.msra.mxu0 0.0
        %4930 = vmatprep.subr.mxu0 0.0
        %4931 = vmatpush1.msra.mxu0 0.0
        %4932 = vmatprep.mubr.f32.mxu0 0.0
        %v4933 = vand.u32 %v192, 4294901760
        %4934 = vmatmul.mubr.f32.gmra.mrb[0].mxu0 %v4933
        %v4935 = vpop.f32.mrb[0].mxu0
        %v4936 = vadd.f32 %v4830, %v4935
        %v4937 = vpop.f32.mrb[0].mxu0
        %4938 = vmatprep.mubr.f32.mxu0 0.0
        %v4939 = vand.u32 %v195, 4294901760
        %4940 = vmatmul.mubr.f32.gmra.mrb[0].mxu0 %v4939
        %v4941 = vpop.f32.mrb[0].mxu0
        %v4942 = vadd.f32 %v4838, %v4941
        %v4943 = vpop.f32.mrb[0].mxu0
        %4944 = vdwg.mxu0
        %4945 = vmatprep.subr.mxu0 0.0
        %v4946 = vand.u32 %v4429, 4294901760
        %4947 = vmatpush1.msra.mxu0 %v4946
        %4948 = vmatprep.subr.mxu0 0.0
        %v4949 = vand.u32 %v4430, 4294901760
        %4950 = vmatpush1.msra.mxu0 %v4949
        %4951 = vmatprep.subr.mxu0 0.0
        %v4952 = vand.u32 %v4431, 4294901760
        %4953 = vmatpush1.msra.mxu0 %v4952
        %4954 = vmatprep.subr.mxu0 0.0
        %v4955 = vand.u32 %v4432, 4294901760
        %4956 = vmatpush1.msra.mxu0 %v4955
        %4957 = vmatprep.subr.mxu0 0.0
        %v4958 = vand.u32 %v4433, 4294901760
        %4959 = vmatpush1.msra.mxu0 %v4958
        %4960 = vmatprep.subr.mxu0 0.0
        %v4961 = vand.u32 %v4434, 4294901760
        %4962 = vmatpush1.msra.mxu0 %v4961
        %4963 = vmatprep.subr.mxu0 0.0
        %v4964 = vand.u32 %v4435, 4294901760
        %4965 = vmatpush1.msra.mxu0 %v4964
        %4966 = vmatprep.subr.mxu0 0.0
        %v4967 = vand.u32 %v4436, 4294901760
        %4968 = vmatpush1.msra.mxu0 %v4967
        %4969 = vmatprep.subr.mxu0 0.0
        %v4970 = vand.u32 %v4437, 4294901760
        %4971 = vmatpush1.msra.mxu0 %v4970
        %4972 = vmatprep.subr.mxu0 0.0
        %4973 = vmatpush1.msra.mxu0 0.0
        %4974 = vmatprep.subr.mxu0 0.0
        %4975 = vmatpush1.msra.mxu0 0.0
        %4976 = vmatprep.subr.mxu0 0.0
        %4977 = vmatpush1.msra.mxu0 0.0
        %4978 = vmatprep.subr.mxu0 0.0
        %4979 = vmatpush1.msra.mxu0 0.0
        %4980 = vmatprep.subr.mxu0 0.0
        %4981 = vmatpush1.msra.mxu0 0.0
        %4982 = vmatprep.subr.mxu0 0.0
        %4983 = vmatpush1.msra.mxu0 0.0
        %4984 = vmatprep.subr.mxu0 0.0
        %4985 = vmatpush1.msra.mxu0 0.0
        %4986 = vmatprep.subr.mxu0 0.0
        %4987 = vmatpush1.msra.mxu0 0.0
        %4988 = vmatprep.subr.mxu0 0.0
        %4989 = vmatpush1.msra.mxu0 0.0
        %4990 = vmatprep.subr.mxu0 0.0
        %4991 = vmatpush1.msra.mxu0 0.0
        %4992 = vmatprep.subr.mxu0 0.0
        %4993 = vmatpush1.msra.mxu0 0.0
        %4994 = vmatprep.subr.mxu0 0.0
        %4995 = vmatpush1.msra.mxu0 0.0
        %4996 = vmatprep.subr.mxu0 0.0
        %4997 = vmatpush1.msra.mxu0 0.0
        %4998 = vmatprep.subr.mxu0 0.0
        %4999 = vmatpush1.msra.mxu0 0.0
        %5000 = vmatprep.subr.mxu0 0.0
        %5001 = vmatpush1.msra.mxu0 0.0
        %5002 = vmatprep.subr.mxu0 0.0
        %5003 = vmatpush1.msra.mxu0 0.0
        %5004 = vmatprep.subr.mxu0 0.0
        %5005 = vmatpush1.msra.mxu0 0.0
        %5006 = vmatprep.subr.mxu0 0.0
        %5007 = vmatpush1.msra.mxu0 0.0
        %5008 = vmatprep.subr.mxu0 0.0
        %5009 = vmatpush1.msra.mxu0 0.0
        %5010 = vmatprep.subr.mxu0 0.0
        %5011 = vmatpush1.msra.mxu0 0.0
        %5012 = vmatprep.subr.mxu0 0.0
        %5013 = vmatpush1.msra.mxu0 0.0
        %5014 = vmatprep.subr.mxu0 0.0
        %5015 = vmatpush1.msra.mxu0 0.0
        %5016 = vmatprep.subr.mxu0 0.0
        %5017 = vmatpush1.msra.mxu0 0.0
        %5018 = vmatprep.mubr.f32.mxu0 0.0
        %v5019 = vand.u32 %v192, 4294901760
        %5020 = vmatmul.mubr.f32.gmra.mrb[0].mxu0 %v5019
        %v5021 = vpop.f32.mrb[0].mxu0
        %v5022 = vadd.f32 %v4936, %v5021
        %v5023 = vpop.f32.mrb[0].mxu0
        %5024 = vmatprep.mubr.f32.mxu0 0.0
        %v5025 = vand.u32 %v195, 4294901760
        %5026 = vmatmul.mubr.f32.gmra.mrb[0].mxu0 %v5025
        %v5027 = vpop.f32.mrb[0].mxu0
        %v5028 = vadd.f32 %v4942, %v5027
        %v5029 = vpop.f32.mrb[0].mxu0
        %5030 = vdwg.mxu0
        %s5031 = scalar_lea.vmem %s176, 56 [#allocation7]
        %5032 = vst.msk [vmem:[%s5031] sm:$0xff] %vm190, %v5022
        %5033 = vst.msk [vmem:[%s5031 + $0x40] sm:$0xff] %vm190, %v5028
        %s5034 = sand.u32 %s75, 1
        %s5035 = scalar_lea.sflag [#allocation4], %s5034
        %s5036 = sand.u32 %s75, 1
        %s5037 = smul.addr %s5036, 128
        %s5038 = scalar_lea.vmem [#allocation7], %s5037
        // Predicated region
        $region37: #{tpu_custom_call.1} parent=27 // pred_check
          %p5039 = pneg %p85
        $region38: #{tpu_custom_call.1} parent=27 // pred_check_branch
          %5041 = sbr.rel (%p5039) target = $region40
        $region39: #{tpu_custom_call.1} parent=27 // pred_region
          %s5042 = smul.u32 2, %s20
          %s5044 = ssub.s32 2048, 2048
          %5045 = vsyncadd %s5035, %s5044
          %s5046 = smul.addr %s5042, 8
          %s5047 = smul.addr %s5046, 128
          %s5048 = scalar_lea.hbm %s2, %s5047
          %s5049 = sshll.u32 %s5038, 4
          %s5050 = int_to_ptr.vmem [resolvable:$true] %s5049
          %5055 = dma.vmem_to_hbm [thread:$0]  %s5050, 2048, %s5048, %s5035, 128, 128, 8
        $region40: #{tpu_custom_call.1} parent=27 // pred_fallthru
          _
      $region28: #{tpu_custom_call.1} parent=5 // pred_fallthru
        _
      %p5056 = scmp.le.s32.totalorder 2, %s15
      // Predicated region
      $region41: #{tpu_custom_call.1} parent=5 // pred_check
        %p5057 = pneg %p5056
      $region42: #{tpu_custom_call.1} parent=5 // pred_check_branch
        %5059 = sbr.rel (%p5057) target = $region44
      $region43: #{tpu_custom_call.1} parent=5 // pred_region
        %s5060 = ssub.s32 %s15, 2
        // Predicated region
        $region45: #{tpu_custom_call.1} parent=43 // pred_check
          %p5061 = pneg %p91
        $region46: #{tpu_custom_call.1} parent=43 // pred_check_branch
          %5063 = sbr.rel (%p5061) target = $region48
        $region47: #{tpu_custom_call.1} parent=43 // pred_region
          %s5064 = sand.u32 %s76, 1
          %s5065 = scalar_lea.sflag [#allocation4], %s5064
          %s5066 = sand.u32 %s76, 1
          %s5067 = smul.addr %s5066, 128
          %s5068 = scalar_lea.vmem [#allocation7], %s5067
          %5069 = dma.done %s5065, 2048
        $region48: #{tpu_custom_call.1} parent=43 // pred_fallthru
          _
      $region44: #{tpu_custom_call.1} parent=5 // pred_fallthru
        _
    $region6: #{tpu_custom_call.1} parent=1 // loop_footer
      %s19 = sadd.s32 1, %s15
    $region7: #{tpu_custom_call.1} parent=1 // loop_footer_branch
      %14 = sbr.rel target = $region3
    $region8: #{tpu_custom_call.1} parent=1 // loop_exit
      _
    %5070 = vsyncpa [#allocation3], 1
    %s5071 = scalar_lea.sflag [#allocation3], 1
    %5072 = vsyncpa %s5071, 1
    %5073 = vsyncpa [#allocation6], 1
    %5074 = vsyncpa [#allocation4], 1
    %s5075 = scalar_lea.sflag [#allocation4], 1
    %5076 = vsyncpa %s5075, 1

</llo_original>
